<compile_context>
chip_gen: v7x
topology: tpu7x:2x2x1
jax: 0.10.0
libtpu: 0.0.40
codegen_flags: <defaults>
</compile_context>

<pallas_src>
import functools
import math

import jax
import jax.numpy as jnp
from jax.experimental import pallas as pl
from jax.experimental.pallas import tpu as pltpu


def _round_up(n, m):
    return ((n + m - 1) // m) * m


def _dot(a, b):
    # fp32 operands for fidelity to the fp32 PyTorch reference (no bf16 downcast).
    return jnp.dot(a, b, preferred_element_type=jnp.float32)


def _layernorm(y, g, b, eps=1e-5):
    mu = jnp.mean(y, axis=-1, keepdims=True)
    var = jnp.mean(jnp.square(y - mu), axis=-1, keepdims=True)
    return (y - mu) * jax.lax.rsqrt(var + eps) * g + b


# ---------------- operand packing: a few large DMAs instead of ~35 tiny leaves ----------------

def _pack_operands(params, cfg, T):
    D = cfg["init_dim"]
    H = cfg["num_heads"]
    hd = D // H
    Hd = cfg["hidden_dim"]
    FL = cfg["ffnn_layers"]
    O = cfg["output_size"]
    VW = max(3 * D, 128)                      # widest packed vector (in_proj bias)

    vec_rows, vec_index = [], {}

    def push(name, v):
        v = v.reshape(1, -1).astype(jnp.float32)
        vec_index[name] = (len(vec_rows), v.shape[1])
        vec_rows.append(jnp.pad(v, ((0, 0), (0, VW - v.shape[1]))))

    push("init_b", params["init_b"])
    for li, lp in enumerate(params["layers"]):
        for nm in ("in_proj_b", "out_proj_b", "lin1_b", "lin2_b",
                   "ln1_g", "ln1_b", "ln2_g", "ln2_b"):
            push(f"l{li}_{nm}", lp[nm])
    push("norm_g", params["norm_g"])
    push("norm_b", params["norm_b"])
    if FL > 1:
        push("ffnn0_b", params["ffnn0"]["b"])
        for i, m in enumerate(params["ffnn"]):
            push(f"mid{i}_b", m["b"])
    push("final_b", params["final_b"])

    # Head-segment indicator matrices, hoisted out of the kernel (trace-time constants):
    #   seg[d, h]  = 1/sqrt(hd) if lane d belongs to head h  -> per-head score reduce+scale
    #   segT[h, d] = 1          if lane d belongs to head h  -> probability lane broadcast
    d_idx = jnp.arange(D)[:, None] // hd
    h_idx = jnp.arange(H)[None, :]
    ind = (d_idx == h_idx).astype(jnp.float32)

    ops = {
        "vecs": jnp.concatenate(vec_rows, axis=0),                          # (Nvec, VW)
        "init_w": params["init_w"],                                         # (Fp, D)
        "in_proj_w": jnp.stack([lp["in_proj_w"] for lp in params["layers"]]),   # (L, D, 3D)
        "out_proj_w": jnp.stack([lp["out_proj_w"] for lp in params["layers"]]), # (L, D, D)
        "lin1_w": jnp.stack([lp["lin1_w"] for lp in params["layers"]]),         # (L, D, Hd)
        "lin2_w": jnp.stack([lp["lin2_w"] for lp in params["layers"]]),         # (L, Hd, D)
        "seg": ind / math.sqrt(hd),                                         # (D, H)
        "segT": ind.T,                                                      # (H, D)
    }
    if FL > 1:
        ops["head_w"] = params["ffnn0"]["w_main"].reshape(T, D, Hd)         # fused flatten weights
        ops["w_static"] = params["ffnn0"]["w_static"]
        if params["ffnn"]:
            ops["mids_w"] = jnp.stack([m["w"] for m in params["ffnn"]])
        ops["final_w"] = params["final_w"]                                  # (Hd, O)
    else:
        ops["head_w"] = params["final_w"].reshape(T, D, O)
    return ops, vec_index


# ---------------- fused forward kernel ----------------

def _build_kernel(treedef, vec_index, cfg, B, T):
    D = cfg["init_dim"]
    Hd = cfg["hidden_dim"]
    L = cfg["n_layers"]
    FL = cfg["ffnn_layers"]
    O = cfg["output_size"]
    init_scale = math.sqrt(cfg["num_input_features"])   # self.ninp = num_input_features
    HO = Hd if FL > 1 else O
    n_w = treedef.num_leaves

    def kernel(*refs):
        x_ref, static_ref = refs[0], refs[1]
        w = jax.tree_util.tree_unflatten(treedef, list(refs[2:2 + n_w]))
        o_ref = refs[2 + n_w]
        stage_s = refs[2 + n_w + 1]            # (B*T, D) VMEM staging for the fused flatten

        def vec(name):                         # packed bias/LN vectors: one operand, row slices
            r, width = vec_index[name]
            return w["vecs"][r:r + 1, :][:, :width]

        seg, segT = w["seg"][...], w["segT"][...]

        # ---- init_linear fused with the * sqrt(ninp) scale (bias is scaled too) ----
        src = (_dot(x_ref[...], w["init_w"][...]) + vec("init_b")) * init_scale   # (B*T, D)

        # ---- encoder layers (post-norm; attention over the batch axis per time step) ----
        for li in range(L):
            qkv = _dot(src, w["in_proj_w"][li]) + vec(f"l{li}_in_proj_b")          # (B*T, 3D)
            q, k, v = qkv[:, :D], qkv[:, D:2 * D], qkv[:, 2 * D:]

            # One stacked score matmul over all (query b, key c) pairs:
            # row block (b*B + c) of T rows holds q_b * k_c; @ seg sums per-head lanes.
            q_rep = jnp.concatenate(
                [q[b * T:(b + 1) * T, :] for b in range(B) for _ in range(B)], axis=0)
            k_rep = jnp.concatenate([k] * B, axis=0)
            scores = _dot(q_rep * k_rep, seg)                                      # (B*B*T, H)

            # Softmax over the key-batch axis c (pure VPU work on static slices).
            probs = []
            for b in range(B):
                blk = [scores[(b * B + c) * T:(b * B + c + 1) * T, :] for c in range(B)]
                m = blk[0]
                for c in range(1, B):
                    m = jnp.maximum(m, blk[c])
                e = [jnp.exp(s - m) for s in blk]
                den = e[0]
                for c in range(1, B):
                    den = den + e[c]
                inv = 1.0 / den                       # exact division (fp32 fidelity)
                probs.extend([ei * inv for ei in e])
            p_stack = jnp.concatenate(probs, axis=0)                               # (B*B*T, H)

            # One stacked probability-broadcast matmul; weight V and reduce over c.
            ctx = _dot(p_stack, segT) * jnp.concatenate([v] * B, axis=0)           # (B*B*T, D)
            attn_parts = []
            for b in range(B):
                acc_b = ctx[(b * B) * T:(b * B) * T + T, :]
                for c in range(1, B):
                    acc_b = acc_b + ctx[(b * B + c) * T:(b * B + c + 1) * T, :]
                attn_parts.append(acc_b)
            sa = jnp.concatenate(attn_parts, axis=0)                               # (B*T, D)

            attn = _dot(sa, w["out_proj_w"][li]) + vec(f"l{li}_out_proj_b")
            y = _layernorm(src + attn, vec(f"l{li}_ln1_g"), vec(f"l{li}_ln1_b"))
            ff = jnp.maximum(_dot(y, w["lin1_w"][li]) + vec(f"l{li}_lin1_b"), 0.0)
            ff = _dot(ff, w["lin2_w"][li]) + vec(f"l{li}_lin2_b")
            src = _layernorm(y + ff, vec(f"l{li}_ln2_g"), vec(f"l{li}_ln2_b"))

        # ---- final TransformerEncoder LayerNorm ----
        src = _layernorm(src, vec("norm_g"), vec("norm_b"))

        # ---- fused (B*T, D) -> (B, T*D) flatten + head matmul via strided slices ----
        # rows {b*T + t : b} are picked with a strided sublane load; head_w[t] is the
        # (D, HO) block of w_main corresponding to flat index t*D + d.
        stage_s[...] = src
        acc = jnp.zeros((B, HO), jnp.float32)
        for t in range(T):
            rows_t = stage_s[pl.ds(t, B, stride=T), :]                             # (B, D)
            acc = acc + _dot(rows_t, w["head_w"][t])

        # ---- FFNN head (no activation between layers, as in the reference) ----
        if FL > 1:
            # concat([flat, static]) @ W  ==  flat @ w_main + static @ w_static
            out = acc + _dot(static_ref[...], w["w_static"][...]) + vec("ffnn0_b")
            for i in range(FL - 2):
                out = _dot(out, w["mids_w"][i]) + vec(f"mid{i}_b")
            out = _dot(out, w["final_w"][...]) + vec("final_b")
        else:
            out = acc + vec("final_b")
        o_ref[...] = out

    return kernel


def drought_net_forward(params, x, static, cfg):
    B, T, F = x.shape
    D = cfg["init_dim"]
    Fp = params["init_w"].shape[0]

    x2 = jnp.pad(x.astype(jnp.float32).reshape(B * T, F), ((0, 0), (0, Fp - F)))
    if cfg["ffnn_layers"] > 1 and static is not None:
        Sp = params["ffnn0"]["w_static"].shape[0]
        st = jnp.pad(static.astype(jnp.float32), ((0, 0), (0, Sp - static.shape[1])))
    else:
        st = jnp.zeros((B, 8), jnp.float32)   # unused (reference ignores static here)

    ops, vec_index = _pack_operands(params, cfg, T)
    flat_ops, treedef = jax.tree_util.tree_flatten(ops)
    kernel = _build_kernel(treedef, vec_index, cfg, B, T)

    # No grid: the whole problem (~1 MiB weights, 16 live rows) is VMEM-resident, so the
    # default scoped VMEM is ample (vmem_limit dropped per review).
    # TODO(synk): for production throughput, stack many independent requests along the
    # row dimension (fill 128/256 MXU rows) and add a "parallel" grid axis over request
    # groups (dimension_semantics) so both v7x TensorCores are used; attention couples
    # the samples inside one request group, so B=2 here cannot be split further.
    return pl.pallas_call(
        kernel,
        out_shape=jax.ShapeDtypeStruct((B, cfg["output_size"]), jnp.float32),
        scratch_shapes=[pltpu.VMEM((B * T, D), jnp.float32)],
    )(x2, st, *flat_ops)


# ---------------- deterministic synthetic parameters ----------------

def _uniform(key, shape, bound):
    return jax.random.uniform(key, shape, jnp.float32, -bound, bound)


def _dense(key, fan_in, fan_out, pad_in_to=None):
    kw, kb = jax.random.split(key)
    bound = 1.0 / math.sqrt(fan_in)
    wm = _uniform(kw, (fan_in, fan_out), bound)
    if pad_in_to is not None and pad_in_to > fan_in:
        wm = jnp.pad(wm, ((0, pad_in_to - fan_in), (0, 0)))
    return wm, _uniform(kb, (fan_out,), bound).reshape(1, fan_out)


def init_params(key, cfg):
    D, Hd = cfg["init_dim"], cfg["hidden_dim"]
    F, T, S, O = cfg["num_input_features"], cfg["input_length"], cfg["static_dim"], cfg["output_size"]
    Fp, Sp = _round_up(F, 8), _round_up(S, 8)

    keys = jax.random.split(key, 1 + cfg["n_layers"] + cfg["ffnn_layers"] + 2)
    params = {}
    params["init_w"], params["init_b"] = _dense(keys[0], F, D, pad_in_to=Fp)

    layers = []
    for li in range(cfg["n_layers"]):
        lk = jax.random.split(keys[1 + li], 4)
        lp = {}
        lp["in_proj_w"], lp["in_proj_b"] = _dense(lk[0], D, 3 * D)   # q|k|v stacked on columns
        lp["out_proj_w"], lp["out_proj_b"] = _dense(lk[1], D, D)
        lp["lin1_w"], lp["lin1_b"] = _dense(lk[2], D, Hd)
        lp["lin2_w"], lp["lin2_b"] = _dense(lk[3], Hd, D)
        lp["ln1_g"] = jnp.ones((1, D), jnp.float32)
        lp["ln1_b"] = jnp.zeros((1, D), jnp.float32)
        lp["ln2_g"] = jnp.ones((1, D), jnp.float32)
        lp["ln2_b"] = jnp.zeros((1, D), jnp.float32)
        layers.append(lp)
    params["layers"] = layers

    params["norm_g"] = jnp.ones((1, D), jnp.float32)
    params["norm_b"] = jnp.zeros((1, D), jnp.float32)

    kf = keys[1 + cfg["n_layers"]:]
    if cfg["ffnn_layers"] == 1:
        params["final_w"], params["final_b"] = _dense(kf[0], D * T, O)
    else:
        k0w, k0s, k0b = jax.random.split(kf[0], 3)
        bound = 1.0 / math.sqrt(D * T + S)
        params["ffnn0"] = {
            "w_main": _uniform(k0w, (D * T, Hd), bound),
            "w_static": jnp.pad(_uniform(k0s, (S, Hd), bound), ((0, Sp - S), (0, 0))),
            "b": _uniform(k0b, (Hd,), bound).reshape(1, Hd),
        }
        mids = []
        for i in range(cfg["ffnn_layers"] - 2):
            wm, bm = _dense(kf[1 + i], Hd, Hd)
            mids.append({"w": wm, "b": bm})
        params["ffnn"] = mids
        params["final_w"], params["final_b"] = _dense(kf[cfg["ffnn_layers"] - 1], Hd, O)
    return params


# ---------------- pure-JAX reference (same math, XLA ops, HIGHEST precision) ----------------

def _reference_forward(params, x, static, cfg):
    hi = jax.lax.Precision.HIGHEST
    B, T, F = x.shape
    D, H = cfg["init_dim"], cfg["num_heads"]
    hd = D // H
    Fp = params["init_w"].shape[0]

    def ln(y, g, b, eps=1e-5):
        mu = jnp.mean(y, axis=-1, keepdims=True)
        var = jnp.mean(jnp.square(y - mu), axis=-1, keepdims=True)
        return (y - mu) / jnp.sqrt(var + eps) * g + b

    xf = jnp.pad(x.reshape(B * T, F), ((0, 0), (0, Fp - F)))
    src = (jnp.dot(xf, params["init_w"], precision=hi) + params["init_b"]) * math.sqrt(
        cfg["num_input_features"])
    for lp in params["layers"]:
        qkv = jnp.dot(src, lp["in_proj_w"], precision=hi) + lp["in_proj_b"]
        q, k, v = jnp.split(qkv, 3, axis=1)
        qh, kh, vh = (t.reshape(B, T, H, hd) for t in (q, k, v))
        s = jnp.einsum("bthd,cthd->thbc", qh, kh, precision=hi) / math.sqrt(hd)
        p = jax.nn.softmax(s, axis=-1)
        o = jnp.einsum("thbc,cthd->bthd", p, vh, precision=hi).reshape(B * T, D)
        attn = jnp.dot(o, lp["out_proj_w"], precision=hi) + lp["out_proj_b"]
        y = ln(src + attn, lp["ln1_g"], lp["ln1_b"])
        ff = jax.nn.relu(jnp.dot(y, lp["lin1_w"], precision=hi) + lp["lin1_b"])
        ff = jnp.dot(ff, lp["lin2_w"], precision=hi) + lp["lin2_b"]
        src = ln(y + ff, lp["ln2_g"], lp["ln2_b"])
    out = ln(src, params["norm_g"], params["norm_b"]).reshape(B, T * D)
    if cfg["ffnn_layers"] > 1:
        Sp = params["ffnn0"]["w_static"].shape[0]
        stp = jnp.pad(static, ((0, 0), (0, Sp - static.shape[1])))
        out = (jnp.dot(out, params["ffnn0"]["w_main"], precision=hi)
               + jnp.dot(stp, params["ffnn0"]["w_static"], precision=hi)
               + params["ffnn0"]["b"])
        for f in params["ffnn"]:
            out = jnp.dot(out, f["w"], precision=hi) + f["b"]
    return jnp.dot(out, params["final_w"], precision=hi) + params["final_b"]


if __name__ == "__main__":
    cfg = dict(output_size=6, num_input_features=6, hidden_dim=64, n_layers=2,
               ffnn_layers=2, drop_prob=0.1, static_dim=5, num_heads=4,
               input_length=8, init_dim=128)

    key = jax.random.PRNGKey(0)
    kp, kx, ks = jax.random.split(key, 3)
    params = init_params(kp, cfg)

    B = 2
    x = jax.random.normal(kx, (B, cfg["input_length"], cfg["num_input_features"]), jnp.float32)
    static = jax.random.normal(ks, (B, cfg["static_dim"]), jnp.float32)

    fwd = jax.jit(functools.partial(drought_net_forward, cfg=cfg))
    out = fwd(params, x, static)
    jax.block_until_ready(out)

    assert out.shape == (B, cfg["output_size"])
    assert bool(jnp.all(jnp.isfinite(out)))

    # Numerical check against the pure-JAX HIGHEST-precision reference of the same math.
    # Tolerance tightened vs. the previous version (softmax now uses exact division);
    # remaining slack covers the Mosaic default fp32 MXU precision vs. Precision.HIGHEST.
    ref = _reference_forward(params, x, static, cfg)
    err = float(jnp.max(jnp.abs(out - ref)))
    assert bool(jnp.allclose(out, ref, atol=2e-2, rtol=2e-2)), f"max abs diff {err}"

    print("KERNEL_OK")
</pallas_src>

<mosaic_0001>
module attributes {stable_mosaic.version = 11 : i64} {
  func.func @kernel(%arg0: memref<16x8xf32, #tpu.memory_space<vmem>>, %arg1: memref<2x8xf32, #tpu.memory_space<vmem>>, %arg2: memref<64x6xf32, #tpu.memory_space<vmem>>, %arg3: memref<8x128x64xf32, #tpu.memory_space<vmem>>, %arg4: memref<2x128x384xf32, #tpu.memory_space<vmem>>, %arg5: memref<8x128xf32, #tpu.memory_space<vmem>>, %arg6: memref<2x128x64xf32, #tpu.memory_space<vmem>>, %arg7: memref<2x64x128xf32, #tpu.memory_space<vmem>>, %arg8: memref<2x128x128xf32, #tpu.memory_space<vmem>>, %arg9: memref<128x4xf32, #tpu.memory_space<vmem>>, %arg10: memref<4x128xf32, #tpu.memory_space<vmem>>, %arg11: memref<21x384xf32, #tpu.memory_space<vmem>>, %arg12: memref<8x64xf32, #tpu.memory_space<vmem>>, %arg13: memref<2x6xf32, #tpu.memory_space<vmem>>, %arg14: memref<16x128xf32, #tpu.memory_space<vmem>>) attributes {dimension_semantics = [], scalar_prefetch = 0 : i64, scratch_operands = 1 : i64, tpu.core_type = #tpu.core_type<tc>} {
    %c0 = arith.constant 0 : index
    %c0_0 = arith.constant 0 : index
    %0 = vector.load %arg9[%c0, %c0_0] : memref<128x4xf32, #tpu.memory_space<vmem>>, vector<128x4xf32>
    %c0_1 = arith.constant 0 : index
    %c0_2 = arith.constant 0 : index
    %1 = vector.load %arg10[%c0_1, %c0_2] : memref<4x128xf32, #tpu.memory_space<vmem>>, vector<4x128xf32>
    %c0_3 = arith.constant 0 : index
    %c0_4 = arith.constant 0 : index
    %2 = vector.load %arg0[%c0_3, %c0_4] : memref<16x8xf32, #tpu.memory_space<vmem>>, vector<16x8xf32>
    %c0_5 = arith.constant 0 : index
    %c0_6 = arith.constant 0 : index
    %3 = vector.load %arg5[%c0_5, %c0_6] : memref<8x128xf32, #tpu.memory_space<vmem>>, vector<8x128xf32>
    %cst = arith.constant dense<0.000000e+00> : vector<16x128xf32>
    %4 = tpu.matmul %2, %3, %cst {dimension_numbers = #tpu.dot_dimension_numbers<[1], [0], [0], [1], [0, 0, 1, 1], [], []>} : vector<16x8xf32>, vector<8x128xf32>, vector<16x128xf32> -> vector<16x128xf32>
    %c0_7 = arith.constant 0 : index
    %c0_8 = arith.constant 0 : index
    %5 = vector.load %arg11[%c0_7, %c0_8] : memref<21x384xf32, #tpu.memory_space<vmem>>, vector<1x384xf32>
    %6 = vector.extract_strided_slice %5 {offsets = [0, 0], sizes = [1, 128], strides = [1, 1]} : vector<1x384xf32> to vector<1x128xf32>
    %7 = vector.broadcast %6 : vector<1x128xf32> to vector<16x128xf32>
    %8 = arith.addf %4, %7 : vector<16x128xf32>
    %cst_9 = arith.constant 2.44948983 : f32
    %9 = vector.broadcast %cst_9 : f32 to vector<16x128xf32>
    %10 = arith.mulf %8, %9 : vector<16x128xf32>
    %c0_10 = arith.constant 0 : index
    %c0_11 = arith.constant 0 : index
    %c0_12 = arith.constant 0 : index
    %11 = vector.load %arg4[%c0_10, %c0_11, %c0_12] : memref<2x128x384xf32, #tpu.memory_space<vmem>>, vector<1x128x384xf32>
    %12 = vector.shape_cast %11 : vector<1x128x384xf32> to vector<128x384xf32>
    %cst_13 = arith.constant dense<0.000000e+00> : vector<16x384xf32>
    %13 = tpu.matmul %10, %12, %cst_13 {dimension_numbers = #tpu.dot_dimension_numbers<[1], [0], [0], [1], [0, 0, 1, 1], [], []>} : vector<16x128xf32>, vector<128x384xf32>, vector<16x384xf32> -> vector<16x384xf32>
    %c1 = arith.constant 1 : index
    %c0_14 = arith.constant 0 : index
    %14 = vector.load %arg11[%c1, %c0_14] : memref<21x384xf32, #tpu.memory_space<vmem>>, vector<1x384xf32>
    %15 = vector.broadcast %14 : vector<1x384xf32> to vector<16x384xf32>
    %16 = arith.addf %13, %15 : vector<16x384xf32>
    %17 = vector.extract_strided_slice %16 {offsets = [0, 0], sizes = [16, 128], strides = [1, 1]} : vector<16x384xf32> to vector<16x128xf32>
    %18 = vector.extract_strided_slice %16 {offsets = [0, 128], sizes = [16, 128], strides = [1, 1]} : vector<16x384xf32> to vector<16x128xf32>
    %19 = vector.extract_strided_slice %16 {offsets = [0, 256], sizes = [16, 128], strides = [1, 1]} : vector<16x384xf32> to vector<16x128xf32>
    %20 = vector.extract_strided_slice %17 {offsets = [0, 0], sizes = [8, 128], strides = [1, 1]} : vector<16x128xf32> to vector<8x128xf32>
    %21 = vector.extract_strided_slice %17 {offsets = [0, 0], sizes = [8, 128], strides = [1, 1]} : vector<16x128xf32> to vector<8x128xf32>
    %22 = vector.extract_strided_slice %17 {offsets = [8, 0], sizes = [8, 128], strides = [1, 1]} : vector<16x128xf32> to vector<8x128xf32>
    %23 = vector.extract_strided_slice %17 {offsets = [8, 0], sizes = [8, 128], strides = [1, 1]} : vector<16x128xf32> to vector<8x128xf32>
    %24 = tpu.concatenate %20, %21, %22, %23 in 0 : vector<8x128xf32>, vector<8x128xf32>, vector<8x128xf32>, vector<8x128xf32> -> vector<32x128xf32>
    %25 = tpu.concatenate %18, %18 in 0 : vector<16x128xf32>, vector<16x128xf32> -> vector<32x128xf32>
    %26 = arith.mulf %24, %25 : vector<32x128xf32>
    %cst_15 = arith.constant dense<0.000000e+00> : vector<32x4xf32>
    %27 = tpu.matmul %26, %0, %cst_15 {dimension_numbers = #tpu.dot_dimension_numbers<[1], [0], [0], [1], [0, 0, 1, 1], [], []>} : vector<32x128xf32>, vector<128x4xf32>, vector<32x4xf32> -> vector<32x4xf32>
    %28 = vector.extract_strided_slice %27 {offsets = [0, 0], sizes = [8, 4], strides = [1, 1]} : vector<32x4xf32> to vector<8x4xf32>
    %29 = vector.extract_strided_slice %27 {offsets = [8, 0], sizes = [8, 4], strides = [1, 1]} : vector<32x4xf32> to vector<8x4xf32>
    %30 = arith.maximumf %28, %29 : vector<8x4xf32>
    %31 = arith.subf %28, %30 : vector<8x4xf32>
    %32 = math.exp %31 : vector<8x4xf32>
    %33 = arith.subf %29, %30 : vector<8x4xf32>
    %34 = math.exp %33 : vector<8x4xf32>
    %35 = arith.addf %32, %34 : vector<8x4xf32>
    %cst_16 = arith.constant 1.000000e+00 : f32
    %36 = vector.broadcast %cst_16 : f32 to vector<8x4xf32>
    %37 = arith.divf %36, %35 : vector<8x4xf32>
    %38 = arith.mulf %32, %37 : vector<8x4xf32>
    %39 = arith.mulf %34, %37 : vector<8x4xf32>
    %40 = vector.extract_strided_slice %27 {offsets = [16, 0], sizes = [8, 4], strides = [1, 1]} : vector<32x4xf32> to vector<8x4xf32>
    %41 = vector.extract_strided_slice %27 {offsets = [24, 0], sizes = [8, 4], strides = [1, 1]} : vector<32x4xf32> to vector<8x4xf32>
    %42 = arith.maximumf %40, %41 : vector<8x4xf32>
    %43 = arith.subf %40, %42 : vector<8x4xf32>
    %44 = math.exp %43 : vector<8x4xf32>
    %45 = arith.subf %41, %42 : vector<8x4xf32>
    %46 = math.exp %45 : vector<8x4xf32>
    %47 = arith.addf %44, %46 : vector<8x4xf32>
    %cst_17 = arith.constant 1.000000e+00 : f32
    %48 = vector.broadcast %cst_17 : f32 to vector<8x4xf32>
    %49 = arith.divf %48, %47 : vector<8x4xf32>
    %50 = arith.mulf %44, %49 : vector<8x4xf32>
    %51 = arith.mulf %46, %49 : vector<8x4xf32>
    %52 = tpu.concatenate %38, %39, %50, %51 in 0 : vector<8x4xf32>, vector<8x4xf32>, vector<8x4xf32>, vector<8x4xf32> -> vector<32x4xf32>
    %cst_18 = arith.constant dense<0.000000e+00> : vector<32x128xf32>
    %53 = tpu.matmul %52, %1, %cst_18 {dimension_numbers = #tpu.dot_dimension_numbers<[1], [0], [0], [1], [0, 0, 1, 1], [], []>} : vector<32x4xf32>, vector<4x128xf32>, vector<32x128xf32> -> vector<32x128xf32>
    %54 = tpu.concatenate %19, %19 in 0 : vector<16x128xf32>, vector<16x128xf32> -> vector<32x128xf32>
    %55 = arith.mulf %53, %54 : vector<32x128xf32>
    %56 = vector.extract_strided_slice %55 {offsets = [0, 0], sizes = [8, 128], strides = [1, 1]} : vector<32x128xf32> to vector<8x128xf32>
    %57 = vector.extract_strided_slice %55 {offsets = [8, 0], sizes = [8, 128], strides = [1, 1]} : vector<32x128xf32> to vector<8x128xf32>
    %58 = arith.addf %56, %57 : vector<8x128xf32>
    %59 = vector.extract_strided_slice %55 {offsets = [16, 0], sizes = [8, 128], strides = [1, 1]} : vector<32x128xf32> to vector<8x128xf32>
    %60 = vector.extract_strided_slice %55 {offsets = [24, 0], sizes = [8, 128], strides = [1, 1]} : vector<32x128xf32> to vector<8x128xf32>
    %61 = arith.addf %59, %60 : vector<8x128xf32>
    %62 = tpu.concatenate %58, %61 in 0 : vector<8x128xf32>, vector<8x128xf32> -> vector<16x128xf32>
    %c0_19 = arith.constant 0 : index
    %c0_20 = arith.constant 0 : index
    %c0_21 = arith.constant 0 : index
    %63 = vector.load %arg8[%c0_19, %c0_20, %c0_21] : memref<2x128x128xf32, #tpu.memory_space<vmem>>, vector<1x128x128xf32>
    %64 = vector.shape_cast %63 : vector<1x128x128xf32> to vector<128x128xf32>
    %cst_22 = arith.constant dense<0.000000e+00> : vector<16x128xf32>
    %65 = tpu.matmul %62, %64, %cst_22 {dimension_numbers = #tpu.dot_dimension_numbers<[1], [0], [0], [1], [0, 0, 1, 1], [], []>} : vector<16x128xf32>, vector<128x128xf32>, vector<16x128xf32> -> vector<16x128xf32>
    %c2 = arith.constant 2 : index
    %c0_23 = arith.constant 0 : index
    %66 = vector.load %arg11[%c2, %c0_23] : memref<21x384xf32, #tpu.memory_space<vmem>>, vector<1x384xf32>
    %67 = vector.extract_strided_slice %66 {offsets = [0, 0], sizes = [1, 128], strides = [1, 1]} : vector<1x384xf32> to vector<1x128xf32>
    %68 = vector.broadcast %67 : vector<1x128xf32> to vector<16x128xf32>
    %69 = arith.addf %65, %68 : vector<16x128xf32>
    %70 = arith.addf %10, %69 : vector<16x128xf32>
    %c5 = arith.constant 5 : index
    %c0_24 = arith.constant 0 : index
    %71 = vector.load %arg11[%c5, %c0_24] : memref<21x384xf32, #tpu.memory_space<vmem>>, vector<1x384xf32>
    %72 = vector.extract_strided_slice %71 {offsets = [0, 0], sizes = [1, 128], strides = [1, 1]} : vector<1x384xf32> to vector<1x128xf32>
    %c6 = arith.constant 6 : index
    %c0_25 = arith.constant 0 : index
    %73 = vector.load %arg11[%c6, %c0_25] : memref<21x384xf32, #tpu.memory_space<vmem>>, vector<1x384xf32>
    %74 = vector.extract_strided_slice %73 {offsets = [0, 0], sizes = [1, 128], strides = [1, 1]} : vector<1x384xf32> to vector<1x128xf32>
    %cst_26 = arith.constant dense<0.000000e+00> : vector<16xf32>
    %75 = vector.multi_reduction <add>, %70, %cst_26 [1] : vector<16x128xf32> to vector<16xf32>
    %76 = vector.shape_cast %75 : vector<16xf32> to vector<16x1xf32>
    %cst_27 = arith.constant 1.280000e+02 : f32
    %77 = vector.broadcast %cst_27 : f32 to vector<16x1xf32>
    %78 = arith.divf %76, %77 : vector<16x1xf32>
    %79 = vector.broadcast %78 : vector<16x1xf32> to vector<16x128xf32>
    %80 = arith.subf %70, %79 : vector<16x128xf32>
    %81 = arith.mulf %80, %80 : vector<16x128xf32>
    %cst_28 = arith.constant dense<0.000000e+00> : vector<16xf32>
    %82 = vector.multi_reduction <add>, %81, %cst_28 [1] : vector<16x128xf32> to vector<16xf32>
    %83 = vector.shape_cast %82 : vector<16xf32> to vector<16x1xf32>
    %cst_29 = arith.constant 1.280000e+02 : f32
    %84 = vector.broadcast %cst_29 : f32 to vector<16x1xf32>
    %85 = arith.divf %83, %84 : vector<16x1xf32>
    %86 = vector.broadcast %78 : vector<16x1xf32> to vector<16x128xf32>
    %87 = arith.subf %70, %86 : vector<16x128xf32>
    %cst_30 = arith.constant 9.99999974E-6 : f32
    %88 = vector.broadcast %cst_30 : f32 to vector<16x1xf32>
    %89 = arith.addf %85, %88 : vector<16x1xf32>
    %90 = math.rsqrt %89 : vector<16x1xf32>
    %91 = vector.broadcast %90 : vector<16x1xf32> to vector<16x128xf32>
    %92 = arith.mulf %87, %91 : vector<16x128xf32>
    %93 = vector.broadcast %72 : vector<1x128xf32> to vector<16x128xf32>
    %94 = arith.mulf %92, %93 : vector<16x128xf32>
    %95 = vector.broadcast %74 : vector<1x128xf32> to vector<16x128xf32>
    %96 = arith.addf %94, %95 : vector<16x128xf32>
    %c0_31 = arith.constant 0 : index
    %c0_32 = arith.constant 0 : index
    %c0_33 = arith.constant 0 : index
    %97 = vector.load %arg6[%c0_31, %c0_32, %c0_33] : memref<2x128x64xf32, #tpu.memory_space<vmem>>, vector<1x128x64xf32>
    %98 = vector.shape_cast %97 : vector<1x128x64xf32> to vector<128x64xf32>
    %cst_34 = arith.constant dense<0.000000e+00> : vector<16x64xf32>
    %99 = tpu.matmul %96, %98, %cst_34 {dimension_numbers = #tpu.dot_dimension_numbers<[1], [0], [0], [1], [0, 0, 1, 1], [], []>} : vector<16x128xf32>, vector<128x64xf32>, vector<16x64xf32> -> vector<16x64xf32>
    %c3 = arith.constant 3 : index
    %c0_35 = arith.constant 0 : index
    %100 = vector.load %arg11[%c3, %c0_35] : memref<21x384xf32, #tpu.memory_space<vmem>>, vector<1x384xf32>
    %101 = vector.extract_strided_slice %100 {offsets = [0, 0], sizes = [1, 64], strides = [1, 1]} : vector<1x384xf32> to vector<1x64xf32>
    %102 = vector.broadcast %101 : vector<1x64xf32> to vector<16x64xf32>
    %103 = arith.addf %99, %102 : vector<16x64xf32>
    %cst_36 = arith.constant 0.000000e+00 : f32
    %104 = vector.broadcast %cst_36 : f32 to vector<16x64xf32>
    %105 = arith.maximumf %103, %104 : vector<16x64xf32>
    %c0_37 = arith.constant 0 : index
    %c0_38 = arith.constant 0 : index
    %c0_39 = arith.constant 0 : index
    %106 = vector.load %arg7[%c0_37, %c0_38, %c0_39] : memref<2x64x128xf32, #tpu.memory_space<vmem>>, vector<1x64x128xf32>
    %107 = vector.shape_cast %106 : vector<1x64x128xf32> to vector<64x128xf32>
    %cst_40 = arith.constant dense<0.000000e+00> : vector<16x128xf32>
    %108 = tpu.matmul %105, %107, %cst_40 {dimension_numbers = #tpu.dot_dimension_numbers<[1], [0], [0], [1], [0, 0, 1, 1], [], []>} : vector<16x64xf32>, vector<64x128xf32>, vector<16x128xf32> -> vector<16x128xf32>
    %c4 = arith.constant 4 : index
    %c0_41 = arith.constant 0 : index
    %109 = vector.load %arg11[%c4, %c0_41] : memref<21x384xf32, #tpu.memory_space<vmem>>, vector<1x384xf32>
    %110 = vector.extract_strided_slice %109 {offsets = [0, 0], sizes = [1, 128], strides = [1, 1]} : vector<1x384xf32> to vector<1x128xf32>
    %111 = vector.broadcast %110 : vector<1x128xf32> to vector<16x128xf32>
    %112 = arith.addf %108, %111 : vector<16x128xf32>
    %113 = arith.addf %96, %112 : vector<16x128xf32>
    %c7 = arith.constant 7 : index
    %c0_42 = arith.constant 0 : index
    %114 = vector.load %arg11[%c7, %c0_42] : memref<21x384xf32, #tpu.memory_space<vmem>>, vector<1x384xf32>
    %115 = vector.extract_strided_slice %114 {offsets = [0, 0], sizes = [1, 128], strides = [1, 1]} : vector<1x384xf32> to vector<1x128xf32>
    %c8 = arith.constant 8 : index
    %c0_43 = arith.constant 0 : index
    %116 = vector.load %arg11[%c8, %c0_43] : memref<21x384xf32, #tpu.memory_space<vmem>>, vector<1x384xf32>
    %117 = vector.extract_strided_slice %116 {offsets = [0, 0], sizes = [1, 128], strides = [1, 1]} : vector<1x384xf32> to vector<1x128xf32>
    %cst_44 = arith.constant dense<0.000000e+00> : vector<16xf32>
    %118 = vector.multi_reduction <add>, %113, %cst_44 [1] : vector<16x128xf32> to vector<16xf32>
    %119 = vector.shape_cast %118 : vector<16xf32> to vector<16x1xf32>
    %cst_45 = arith.constant 1.280000e+02 : f32
    %120 = vector.broadcast %cst_45 : f32 to vector<16x1xf32>
    %121 = arith.divf %119, %120 : vector<16x1xf32>
    %122 = vector.broadcast %121 : vector<16x1xf32> to vector<16x128xf32>
    %123 = arith.subf %113, %122 : vector<16x128xf32>
    %124 = arith.mulf %123, %123 : vector<16x128xf32>
    %cst_46 = arith.constant dense<0.000000e+00> : vector<16xf32>
    %125 = vector.multi_reduction <add>, %124, %cst_46 [1] : vector<16x128xf32> to vector<16xf32>
    %126 = vector.shape_cast %125 : vector<16xf32> to vector<16x1xf32>
    %cst_47 = arith.constant 1.280000e+02 : f32
    %127 = vector.broadcast %cst_47 : f32 to vector<16x1xf32>
    %128 = arith.divf %126, %127 : vector<16x1xf32>
    %129 = vector.broadcast %121 : vector<16x1xf32> to vector<16x128xf32>
    %130 = arith.subf %113, %129 : vector<16x128xf32>
    %cst_48 = arith.constant 9.99999974E-6 : f32
    %131 = vector.broadcast %cst_48 : f32 to vector<16x1xf32>
    %132 = arith.addf %128, %131 : vector<16x1xf32>
    %133 = math.rsqrt %132 : vector<16x1xf32>
    %134 = vector.broadcast %133 : vector<16x1xf32> to vector<16x128xf32>
    %135 = arith.mulf %130, %134 : vector<16x128xf32>
    %136 = vector.broadcast %115 : vector<1x128xf32> to vector<16x128xf32>
    %137 = arith.mulf %135, %136 : vector<16x128xf32>
    %138 = vector.broadcast %117 : vector<1x128xf32> to vector<16x128xf32>
    %139 = arith.addf %137, %138 : vector<16x128xf32>
    %c1_49 = arith.constant 1 : index
    %c0_50 = arith.constant 0 : index
    %c0_51 = arith.constant 0 : index
    %140 = vector.load %arg4[%c1_49, %c0_50, %c0_51] : memref<2x128x384xf32, #tpu.memory_space<vmem>>, vector<1x128x384xf32>
    %141 = vector.shape_cast %140 : vector<1x128x384xf32> to vector<128x384xf32>
    %cst_52 = arith.constant dense<0.000000e+00> : vector<16x384xf32>
    %142 = tpu.matmul %139, %141, %cst_52 {dimension_numbers = #tpu.dot_dimension_numbers<[1], [0], [0], [1], [0, 0, 1, 1], [], []>} : vector<16x128xf32>, vector<128x384xf32>, vector<16x384xf32> -> vector<16x384xf32>
    %c9 = arith.constant 9 : index
    %c0_53 = arith.constant 0 : index
    %143 = vector.load %arg11[%c9, %c0_53] : memref<21x384xf32, #tpu.memory_space<vmem>>, vector<1x384xf32>
    %144 = vector.broadcast %143 : vector<1x384xf32> to vector<16x384xf32>
    %145 = arith.addf %142, %144 : vector<16x384xf32>
    %146 = vector.extract_strided_slice %145 {offsets = [0, 0], sizes = [16, 128], strides = [1, 1]} : vector<16x384xf32> to vector<16x128xf32>
    %147 = vector.extract_strided_slice %145 {offsets = [0, 128], sizes = [16, 128], strides = [1, 1]} : vector<16x384xf32> to vector<16x128xf32>
    %148 = vector.extract_strided_slice %145 {offsets = [0, 256], sizes = [16, 128], strides = [1, 1]} : vector<16x384xf32> to vector<16x128xf32>
    %149 = vector.extract_strided_slice %146 {offsets = [0, 0], sizes = [8, 128], strides = [1, 1]} : vector<16x128xf32> to vector<8x128xf32>
    %150 = vector.extract_strided_slice %146 {offsets = [0, 0], sizes = [8, 128], strides = [1, 1]} : vector<16x128xf32> to vector<8x128xf32>
    %151 = vector.extract_strided_slice %146 {offsets = [8, 0], sizes = [8, 128], strides = [1, 1]} : vector<16x128xf32> to vector<8x128xf32>
    %152 = vector.extract_strided_slice %146 {offsets = [8, 0], sizes = [8, 128], strides = [1, 1]} : vector<16x128xf32> to vector<8x128xf32>
    %153 = tpu.concatenate %149, %150, %151, %152 in 0 : vector<8x128xf32>, vector<8x128xf32>, vector<8x128xf32>, vector<8x128xf32> -> vector<32x128xf32>
    %154 = tpu.concatenate %147, %147 in 0 : vector<16x128xf32>, vector<16x128xf32> -> vector<32x128xf32>
    %155 = arith.mulf %153, %154 : vector<32x128xf32>
    %cst_54 = arith.constant dense<0.000000e+00> : vector<32x4xf32>
    %156 = tpu.matmul %155, %0, %cst_54 {dimension_numbers = #tpu.dot_dimension_numbers<[1], [0], [0], [1], [0, 0, 1, 1], [], []>} : vector<32x128xf32>, vector<128x4xf32>, vector<32x4xf32> -> vector<32x4xf32>
    %157 = vector.extract_strided_slice %156 {offsets = [0, 0], sizes = [8, 4], strides = [1, 1]} : vector<32x4xf32> to vector<8x4xf32>
    %158 = vector.extract_strided_slice %156 {offsets = [8, 0], sizes = [8, 4], strides = [1, 1]} : vector<32x4xf32> to vector<8x4xf32>
    %159 = arith.maximumf %157, %158 : vector<8x4xf32>
    %160 = arith.subf %157, %159 : vector<8x4xf32>
    %161 = math.exp %160 : vector<8x4xf32>
    %162 = arith.subf %158, %159 : vector<8x4xf32>
    %163 = math.exp %162 : vector<8x4xf32>
    %164 = arith.addf %161, %163 : vector<8x4xf32>
    %cst_55 = arith.constant 1.000000e+00 : f32
    %165 = vector.broadcast %cst_55 : f32 to vector<8x4xf32>
    %166 = arith.divf %165, %164 : vector<8x4xf32>
    %167 = arith.mulf %161, %166 : vector<8x4xf32>
    %168 = arith.mulf %163, %166 : vector<8x4xf32>
    %169 = vector.extract_strided_slice %156 {offsets = [16, 0], sizes = [8, 4], strides = [1, 1]} : vector<32x4xf32> to vector<8x4xf32>
    %170 = vector.extract_strided_slice %156 {offsets = [24, 0], sizes = [8, 4], strides = [1, 1]} : vector<32x4xf32> to vector<8x4xf32>
    %171 = arith.maximumf %169, %170 : vector<8x4xf32>
    %172 = arith.subf %169, %171 : vector<8x4xf32>
    %173 = math.exp %172 : vector<8x4xf32>
    %174 = arith.subf %170, %171 : vector<8x4xf32>
    %175 = math.exp %174 : vector<8x4xf32>
    %176 = arith.addf %173, %175 : vector<8x4xf32>
    %cst_56 = arith.constant 1.000000e+00 : f32
    %177 = vector.broadcast %cst_56 : f32 to vector<8x4xf32>
    %178 = arith.divf %177, %176 : vector<8x4xf32>
    %179 = arith.mulf %173, %178 : vector<8x4xf32>
    %180 = arith.mulf %175, %178 : vector<8x4xf32>
    %181 = tpu.concatenate %167, %168, %179, %180 in 0 : vector<8x4xf32>, vector<8x4xf32>, vector<8x4xf32>, vector<8x4xf32> -> vector<32x4xf32>
    %cst_57 = arith.constant dense<0.000000e+00> : vector<32x128xf32>
    %182 = tpu.matmul %181, %1, %cst_57 {dimension_numbers = #tpu.dot_dimension_numbers<[1], [0], [0], [1], [0, 0, 1, 1], [], []>} : vector<32x4xf32>, vector<4x128xf32>, vector<32x128xf32> -> vector<32x128xf32>
    %183 = tpu.concatenate %148, %148 in 0 : vector<16x128xf32>, vector<16x128xf32> -> vector<32x128xf32>
    %184 = arith.mulf %182, %183 : vector<32x128xf32>
    %185 = vector.extract_strided_slice %184 {offsets = [0, 0], sizes = [8, 128], strides = [1, 1]} : vector<32x128xf32> to vector<8x128xf32>
    %186 = vector.extract_strided_slice %184 {offsets = [8, 0], sizes = [8, 128], strides = [1, 1]} : vector<32x128xf32> to vector<8x128xf32>
    %187 = arith.addf %185, %186 : vector<8x128xf32>
    %188 = vector.extract_strided_slice %184 {offsets = [16, 0], sizes = [8, 128], strides = [1, 1]} : vector<32x128xf32> to vector<8x128xf32>
    %189 = vector.extract_strided_slice %184 {offsets = [24, 0], sizes = [8, 128], strides = [1, 1]} : vector<32x128xf32> to vector<8x128xf32>
    %190 = arith.addf %188, %189 : vector<8x128xf32>
    %191 = tpu.concatenate %187, %190 in 0 : vector<8x128xf32>, vector<8x128xf32> -> vector<16x128xf32>
    %c1_58 = arith.constant 1 : index
    %c0_59 = arith.constant 0 : index
    %c0_60 = arith.constant 0 : index
    %192 = vector.load %arg8[%c1_58, %c0_59, %c0_60] : memref<2x128x128xf32, #tpu.memory_space<vmem>>, vector<1x128x128xf32>
    %193 = vector.shape_cast %192 : vector<1x128x128xf32> to vector<128x128xf32>
    %cst_61 = arith.constant dense<0.000000e+00> : vector<16x128xf32>
    %194 = tpu.matmul %191, %193, %cst_61 {dimension_numbers = #tpu.dot_dimension_numbers<[1], [0], [0], [1], [0, 0, 1, 1], [], []>} : vector<16x128xf32>, vector<128x128xf32>, vector<16x128xf32> -> vector<16x128xf32>
    %c10 = arith.constant 10 : index
    %c0_62 = arith.constant 0 : index
    %195 = vector.load %arg11[%c10, %c0_62] : memref<21x384xf32, #tpu.memory_space<vmem>>, vector<1x384xf32>
    %196 = vector.extract_strided_slice %195 {offsets = [0, 0], sizes = [1, 128], strides = [1, 1]} : vector<1x384xf32> to vector<1x128xf32>
    %197 = vector.broadcast %196 : vector<1x128xf32> to vector<16x128xf32>
    %198 = arith.addf %194, %197 : vector<16x128xf32>
    %199 = arith.addf %139, %198 : vector<16x128xf32>
    %c13 = arith.constant 13 : index
    %c0_63 = arith.constant 0 : index
    %200 = vector.load %arg11[%c13, %c0_63] : memref<21x384xf32, #tpu.memory_space<vmem>>, vector<1x384xf32>
    %201 = vector.extract_strided_slice %200 {offsets = [0, 0], sizes = [1, 128], strides = [1, 1]} : vector<1x384xf32> to vector<1x128xf32>
    %c14 = arith.constant 14 : index
    %c0_64 = arith.constant 0 : index
    %202 = vector.load %arg11[%c14, %c0_64] : memref<21x384xf32, #tpu.memory_space<vmem>>, vector<1x384xf32>
    %203 = vector.extract_strided_slice %202 {offsets = [0, 0], sizes = [1, 128], strides = [1, 1]} : vector<1x384xf32> to vector<1x128xf32>
    %cst_65 = arith.constant dense<0.000000e+00> : vector<16xf32>
    %204 = vector.multi_reduction <add>, %199, %cst_65 [1] : vector<16x128xf32> to vector<16xf32>
    %205 = vector.shape_cast %204 : vector<16xf32> to vector<16x1xf32>
    %cst_66 = arith.constant 1.280000e+02 : f32
    %206 = vector.broadcast %cst_66 : f32 to vector<16x1xf32>
    %207 = arith.divf %205, %206 : vector<16x1xf32>
    %208 = vector.broadcast %207 : vector<16x1xf32> to vector<16x128xf32>
    %209 = arith.subf %199, %208 : vector<16x128xf32>
    %210 = arith.mulf %209, %209 : vector<16x128xf32>
    %cst_67 = arith.constant dense<0.000000e+00> : vector<16xf32>
    %211 = vector.multi_reduction <add>, %210, %cst_67 [1] : vector<16x128xf32> to vector<16xf32>
    %212 = vector.shape_cast %211 : vector<16xf32> to vector<16x1xf32>
    %cst_68 = arith.constant 1.280000e+02 : f32
    %213 = vector.broadcast %cst_68 : f32 to vector<16x1xf32>
    %214 = arith.divf %212, %213 : vector<16x1xf32>
    %215 = vector.broadcast %207 : vector<16x1xf32> to vector<16x128xf32>
    %216 = arith.subf %199, %215 : vector<16x128xf32>
    %cst_69 = arith.constant 9.99999974E-6 : f32
    %217 = vector.broadcast %cst_69 : f32 to vector<16x1xf32>
    %218 = arith.addf %214, %217 : vector<16x1xf32>
    %219 = math.rsqrt %218 : vector<16x1xf32>
    %220 = vector.broadcast %219 : vector<16x1xf32> to vector<16x128xf32>
    %221 = arith.mulf %216, %220 : vector<16x128xf32>
    %222 = vector.broadcast %201 : vector<1x128xf32> to vector<16x128xf32>
    %223 = arith.mulf %221, %222 : vector<16x128xf32>
    %224 = vector.broadcast %203 : vector<1x128xf32> to vector<16x128xf32>
    %225 = arith.addf %223, %224 : vector<16x128xf32>
    %c1_70 = arith.constant 1 : index
    %c0_71 = arith.constant 0 : index
    %c0_72 = arith.constant 0 : index
    %226 = vector.load %arg6[%c1_70, %c0_71, %c0_72] : memref<2x128x64xf32, #tpu.memory_space<vmem>>, vector<1x128x64xf32>
    %227 = vector.shape_cast %226 : vector<1x128x64xf32> to vector<128x64xf32>
    %cst_73 = arith.constant dense<0.000000e+00> : vector<16x64xf32>
    %228 = tpu.matmul %225, %227, %cst_73 {dimension_numbers = #tpu.dot_dimension_numbers<[1], [0], [0], [1], [0, 0, 1, 1], [], []>} : vector<16x128xf32>, vector<128x64xf32>, vector<16x64xf32> -> vector<16x64xf32>
    %c11 = arith.constant 11 : index
    %c0_74 = arith.constant 0 : index
    %229 = vector.load %arg11[%c11, %c0_74] : memref<21x384xf32, #tpu.memory_space<vmem>>, vector<1x384xf32>
    %230 = vector.extract_strided_slice %229 {offsets = [0, 0], sizes = [1, 64], strides = [1, 1]} : vector<1x384xf32> to vector<1x64xf32>
    %231 = vector.broadcast %230 : vector<1x64xf32> to vector<16x64xf32>
    %232 = arith.addf %228, %231 : vector<16x64xf32>
    %cst_75 = arith.constant 0.000000e+00 : f32
    %233 = vector.broadcast %cst_75 : f32 to vector<16x64xf32>
    %234 = arith.maximumf %232, %233 : vector<16x64xf32>
    %c1_76 = arith.constant 1 : index
    %c0_77 = arith.constant 0 : index
    %c0_78 = arith.constant 0 : index
    %235 = vector.load %arg7[%c1_76, %c0_77, %c0_78] : memref<2x64x128xf32, #tpu.memory_space<vmem>>, vector<1x64x128xf32>
    %236 = vector.shape_cast %235 : vector<1x64x128xf32> to vector<64x128xf32>
    %cst_79 = arith.constant dense<0.000000e+00> : vector<16x128xf32>
    %237 = tpu.matmul %234, %236, %cst_79 {dimension_numbers = #tpu.dot_dimension_numbers<[1], [0], [0], [1], [0, 0, 1, 1], [], []>} : vector<16x64xf32>, vector<64x128xf32>, vector<16x128xf32> -> vector<16x128xf32>
    %c12 = arith.constant 12 : index
    %c0_80 = arith.constant 0 : index
    %238 = vector.load %arg11[%c12, %c0_80] : memref<21x384xf32, #tpu.memory_space<vmem>>, vector<1x384xf32>
    %239 = vector.extract_strided_slice %238 {offsets = [0, 0], sizes = [1, 128], strides = [1, 1]} : vector<1x384xf32> to vector<1x128xf32>
    %240 = vector.broadcast %239 : vector<1x128xf32> to vector<16x128xf32>
    %241 = arith.addf %237, %240 : vector<16x128xf32>
    %242 = arith.addf %225, %241 : vector<16x128xf32>
    %c15 = arith.constant 15 : index
    %c0_81 = arith.constant 0 : index
    %243 = vector.load %arg11[%c15, %c0_81] : memref<21x384xf32, #tpu.memory_space<vmem>>, vector<1x384xf32>
    %244 = vector.extract_strided_slice %243 {offsets = [0, 0], sizes = [1, 128], strides = [1, 1]} : vector<1x384xf32> to vector<1x128xf32>
    %c16 = arith.constant 16 : index
    %c0_82 = arith.constant 0 : index
    %245 = vector.load %arg11[%c16, %c0_82] : memref<21x384xf32, #tpu.memory_space<vmem>>, vector<1x384xf32>
    %246 = vector.extract_strided_slice %245 {offsets = [0, 0], sizes = [1, 128], strides = [1, 1]} : vector<1x384xf32> to vector<1x128xf32>
    %cst_83 = arith.constant dense<0.000000e+00> : vector<16xf32>
    %247 = vector.multi_reduction <add>, %242, %cst_83 [1] : vector<16x128xf32> to vector<16xf32>
    %248 = vector.shape_cast %247 : vector<16xf32> to vector<16x1xf32>
    %cst_84 = arith.constant 1.280000e+02 : f32
    %249 = vector.broadcast %cst_84 : f32 to vector<16x1xf32>
    %250 = arith.divf %248, %249 : vector<16x1xf32>
    %251 = vector.broadcast %250 : vector<16x1xf32> to vector<16x128xf32>
    %252 = arith.subf %242, %251 : vector<16x128xf32>
    %253 = arith.mulf %252, %252 : vector<16x128xf32>
    %cst_85 = arith.constant dense<0.000000e+00> : vector<16xf32>
    %254 = vector.multi_reduction <add>, %253, %cst_85 [1] : vector<16x128xf32> to vector<16xf32>
    %255 = vector.shape_cast %254 : vector<16xf32> to vector<16x1xf32>
    %cst_86 = arith.constant 1.280000e+02 : f32
    %256 = vector.broadcast %cst_86 : f32 to vector<16x1xf32>
    %257 = arith.divf %255, %256 : vector<16x1xf32>
    %258 = vector.broadcast %250 : vector<16x1xf32> to vector<16x128xf32>
    %259 = arith.subf %242, %258 : vector<16x128xf32>
    %cst_87 = arith.constant 9.99999974E-6 : f32
    %260 = vector.broadcast %cst_87 : f32 to vector<16x1xf32>
    %261 = arith.addf %257, %260 : vector<16x1xf32>
    %262 = math.rsqrt %261 : vector<16x1xf32>
    %263 = vector.broadcast %262 : vector<16x1xf32> to vector<16x128xf32>
    %264 = arith.mulf %259, %263 : vector<16x128xf32>
    %265 = vector.broadcast %244 : vector<1x128xf32> to vector<16x128xf32>
    %266 = arith.mulf %264, %265 : vector<16x128xf32>
    %267 = vector.broadcast %246 : vector<1x128xf32> to vector<16x128xf32>
    %268 = arith.addf %266, %267 : vector<16x128xf32>
    %c17 = arith.constant 17 : index
    %c0_88 = arith.constant 0 : index
    %269 = vector.load %arg11[%c17, %c0_88] : memref<21x384xf32, #tpu.memory_space<vmem>>, vector<1x384xf32>
    %270 = vector.extract_strided_slice %269 {offsets = [0, 0], sizes = [1, 128], strides = [1, 1]} : vector<1x384xf32> to vector<1x128xf32>
    %c18 = arith.constant 18 : index
    %c0_89 = arith.constant 0 : index
    %271 = vector.load %arg11[%c18, %c0_89] : memref<21x384xf32, #tpu.memory_space<vmem>>, vector<1x384xf32>
    %272 = vector.extract_strided_slice %271 {offsets = [0, 0], sizes = [1, 128], strides = [1, 1]} : vector<1x384xf32> to vector<1x128xf32>
    %cst_90 = arith.constant dense<0.000000e+00> : vector<16xf32>
    %273 = vector.multi_reduction <add>, %268, %cst_90 [1] : vector<16x128xf32> to vector<16xf32>
    %274 = vector.shape_cast %273 : vector<16xf32> to vector<16x1xf32>
    %cst_91 = arith.constant 1.280000e+02 : f32
    %275 = vector.broadcast %cst_91 : f32 to vector<16x1xf32>
    %276 = arith.divf %274, %275 : vector<16x1xf32>
    %277 = vector.broadcast %276 : vector<16x1xf32> to vector<16x128xf32>
    %278 = arith.subf %268, %277 : vector<16x128xf32>
    %279 = arith.mulf %278, %278 : vector<16x128xf32>
    %cst_92 = arith.constant dense<0.000000e+00> : vector<16xf32>
    %280 = vector.multi_reduction <add>, %279, %cst_92 [1] : vector<16x128xf32> to vector<16xf32>
    %281 = vector.shape_cast %280 : vector<16xf32> to vector<16x1xf32>
    %cst_93 = arith.constant 1.280000e+02 : f32
    %282 = vector.broadcast %cst_93 : f32 to vector<16x1xf32>
    %283 = arith.divf %281, %282 : vector<16x1xf32>
    %284 = vector.broadcast %276 : vector<16x1xf32> to vector<16x128xf32>
    %285 = arith.subf %268, %284 : vector<16x128xf32>
    %cst_94 = arith.constant 9.99999974E-6 : f32
    %286 = vector.broadcast %cst_94 : f32 to vector<16x1xf32>
    %287 = arith.addf %283, %286 : vector<16x1xf32>
    %288 = math.rsqrt %287 : vector<16x1xf32>
    %289 = vector.broadcast %288 : vector<16x1xf32> to vector<16x128xf32>
    %290 = arith.mulf %285, %289 : vector<16x128xf32>
    %291 = vector.broadcast %270 : vector<1x128xf32> to vector<16x128xf32>
    %292 = arith.mulf %290, %291 : vector<16x128xf32>
    %293 = vector.broadcast %272 : vector<1x128xf32> to vector<16x128xf32>
    %294 = arith.addf %292, %293 : vector<16x128xf32>
    %c0_95 = arith.constant 0 : index
    %c0_96 = arith.constant 0 : index
    %295 = vector.load %arg14[%c0_95, %c0_96] : memref<16x128xf32, #tpu.memory_space<vmem>>, vector<16x128xf32>
    tpu.vector_store %arg14[%c0_95, %c0_96], %294 {strides = array<i32>} : memref<16x128xf32, #tpu.memory_space<vmem>>, vector<16x128xf32>,
    %cst_97 = arith.constant 0.000000e+00 : f32
    %296 = vector.broadcast %cst_97 : f32 to vector<2x64xf32>
    %c0_98 = arith.constant 0 : index
    %c0_99 = arith.constant 0 : index
    %297 = tpu.strided_load %arg14[%c0_98, %c0_99] {strides = array<i32: 8, 1>} : memref<16x128xf32, #tpu.memory_space<vmem>>, vector<2x128xf32>
    %c0_100 = arith.constant 0 : index
    %c0_101 = arith.constant 0 : index
    %c0_102 = arith.constant 0 : index
    %298 = vector.load %arg3[%c0_100, %c0_101, %c0_102] : memref<8x128x64xf32, #tpu.memory_space<vmem>>, vector<1x128x64xf32>
    %299 = vector.shape_cast %298 : vector<1x128x64xf32> to vector<128x64xf32>
    %cst_103 = arith.constant dense<0.000000e+00> : vector<2x64xf32>
    %300 = tpu.matmul %297, %299, %cst_103 {dimension_numbers = #tpu.dot_dimension_numbers<[1], [0], [0], [1], [0, 0, 1, 1], [], []>} : vector<2x128xf32>, vector<128x64xf32>, vector<2x64xf32> -> vector<2x64xf32>
    %301 = arith.addf %296, %300 : vector<2x64xf32>
    %c1_104 = arith.constant 1 : index
    %c0_105 = arith.constant 0 : index
    %302 = tpu.strided_load %arg14[%c1_104, %c0_105] {strides = array<i32: 8, 1>} : memref<16x128xf32, #tpu.memory_space<vmem>>, vector<2x128xf32>
    %c1_106 = arith.constant 1 : index
    %c0_107 = arith.constant 0 : index
    %c0_108 = arith.constant 0 : index
    %303 = vector.load %arg3[%c1_106, %c0_107, %c0_108] : memref<8x128x64xf32, #tpu.memory_space<vmem>>, vector<1x128x64xf32>
    %304 = vector.shape_cast %303 : vector<1x128x64xf32> to vector<128x64xf32>
    %cst_109 = arith.constant dense<0.000000e+00> : vector<2x64xf32>
    %305 = tpu.matmul %302, %304, %cst_109 {dimension_numbers = #tpu.dot_dimension_numbers<[1], [0], [0], [1], [0, 0, 1, 1], [], []>} : vector<2x128xf32>, vector<128x64xf32>, vector<2x64xf32> -> vector<2x64xf32>
    %306 = arith.addf %301, %305 : vector<2x64xf32>
    %c2_110 = arith.constant 2 : index
    %c0_111 = arith.constant 0 : index
    %307 = tpu.strided_load %arg14[%c2_110, %c0_111] {strides = array<i32: 8, 1>} : memref<16x128xf32, #tpu.memory_space<vmem>>, vector<2x128xf32>
    %c2_112 = arith.constant 2 : index
    %c0_113 = arith.constant 0 : index
    %c0_114 = arith.constant 0 : index
    %308 = vector.load %arg3[%c2_112, %c0_113, %c0_114] : memref<8x128x64xf32, #tpu.memory_space<vmem>>, vector<1x128x64xf32>
    %309 = vector.shape_cast %308 : vector<1x128x64xf32> to vector<128x64xf32>
    %cst_115 = arith.constant dense<0.000000e+00> : vector<2x64xf32>
    %310 = tpu.matmul %307, %309, %cst_115 {dimension_numbers = #tpu.dot_dimension_numbers<[1], [0], [0], [1], [0, 0, 1, 1], [], []>} : vector<2x128xf32>, vector<128x64xf32>, vector<2x64xf32> -> vector<2x64xf32>
    %311 = arith.addf %306, %310 : vector<2x64xf32>
    %c3_116 = arith.constant 3 : index
    %c0_117 = arith.constant 0 : index
    %312 = tpu.strided_load %arg14[%c3_116, %c0_117] {strides = array<i32: 8, 1>} : memref<16x128xf32, #tpu.memory_space<vmem>>, vector<2x128xf32>
    %c3_118 = arith.constant 3 : index
    %c0_119 = arith.constant 0 : index
    %c0_120 = arith.constant 0 : index
    %313 = vector.load %arg3[%c3_118, %c0_119, %c0_120] : memref<8x128x64xf32, #tpu.memory_space<vmem>>, vector<1x128x64xf32>
    %314 = vector.shape_cast %313 : vector<1x128x64xf32> to vector<128x64xf32>
    %cst_121 = arith.constant dense<0.000000e+00> : vector<2x64xf32>
    %315 = tpu.matmul %312, %314, %cst_121 {dimension_numbers = #tpu.dot_dimension_numbers<[1], [0], [0], [1], [0, 0, 1, 1], [], []>} : vector<2x128xf32>, vector<128x64xf32>, vector<2x64xf32> -> vector<2x64xf32>
    %316 = arith.addf %311, %315 : vector<2x64xf32>
    %c4_122 = arith.constant 4 : index
    %c0_123 = arith.constant 0 : index
    %317 = tpu.strided_load %arg14[%c4_122, %c0_123] {strides = array<i32: 8, 1>} : memref<16x128xf32, #tpu.memory_space<vmem>>, vector<2x128xf32>
    %c4_124 = arith.constant 4 : index
    %c0_125 = arith.constant 0 : index
    %c0_126 = arith.constant 0 : index
    %318 = vector.load %arg3[%c4_124, %c0_125, %c0_126] : memref<8x128x64xf32, #tpu.memory_space<vmem>>, vector<1x128x64xf32>
    %319 = vector.shape_cast %318 : vector<1x128x64xf32> to vector<128x64xf32>
    %cst_127 = arith.constant dense<0.000000e+00> : vector<2x64xf32>
    %320 = tpu.matmul %317, %319, %cst_127 {dimension_numbers = #tpu.dot_dimension_numbers<[1], [0], [0], [1], [0, 0, 1, 1], [], []>} : vector<2x128xf32>, vector<128x64xf32>, vector<2x64xf32> -> vector<2x64xf32>
    %321 = arith.addf %316, %320 : vector<2x64xf32>
    %c5_128 = arith.constant 5 : index
    %c0_129 = arith.constant 0 : index
    %322 = tpu.strided_load %arg14[%c5_128, %c0_129] {strides = array<i32: 8, 1>} : memref<16x128xf32, #tpu.memory_space<vmem>>, vector<2x128xf32>
    %c5_130 = arith.constant 5 : index
    %c0_131 = arith.constant 0 : index
    %c0_132 = arith.constant 0 : index
    %323 = vector.load %arg3[%c5_130, %c0_131, %c0_132] : memref<8x128x64xf32, #tpu.memory_space<vmem>>, vector<1x128x64xf32>
    %324 = vector.shape_cast %323 : vector<1x128x64xf32> to vector<128x64xf32>
    %cst_133 = arith.constant dense<0.000000e+00> : vector<2x64xf32>
    %325 = tpu.matmul %322, %324, %cst_133 {dimension_numbers = #tpu.dot_dimension_numbers<[1], [0], [0], [1], [0, 0, 1, 1], [], []>} : vector<2x128xf32>, vector<128x64xf32>, vector<2x64xf32> -> vector<2x64xf32>
    %326 = arith.addf %321, %325 : vector<2x64xf32>
    %c6_134 = arith.constant 6 : index
    %c0_135 = arith.constant 0 : index
    %327 = tpu.strided_load %arg14[%c6_134, %c0_135] {strides = array<i32: 8, 1>} : memref<16x128xf32, #tpu.memory_space<vmem>>, vector<2x128xf32>
    %c6_136 = arith.constant 6 : index
    %c0_137 = arith.constant 0 : index
    %c0_138 = arith.constant 0 : index
    %328 = vector.load %arg3[%c6_136, %c0_137, %c0_138] : memref<8x128x64xf32, #tpu.memory_space<vmem>>, vector<1x128x64xf32>
    %329 = vector.shape_cast %328 : vector<1x128x64xf32> to vector<128x64xf32>
    %cst_139 = arith.constant dense<0.000000e+00> : vector<2x64xf32>
    %330 = tpu.matmul %327, %329, %cst_139 {dimension_numbers = #tpu.dot_dimension_numbers<[1], [0], [0], [1], [0, 0, 1, 1], [], []>} : vector<2x128xf32>, vector<128x64xf32>, vector<2x64xf32> -> vector<2x64xf32>
    %331 = arith.addf %326, %330 : vector<2x64xf32>
    %c7_140 = arith.constant 7 : index
    %c0_141 = arith.constant 0 : index
    %332 = tpu.strided_load %arg14[%c7_140, %c0_141] {strides = array<i32: 8, 1>} : memref<16x128xf32, #tpu.memory_space<vmem>>, vector<2x128xf32>
    %c7_142 = arith.constant 7 : index
    %c0_143 = arith.constant 0 : index
    %c0_144 = arith.constant 0 : index
    %333 = vector.load %arg3[%c7_142, %c0_143, %c0_144] : memref<8x128x64xf32, #tpu.memory_space<vmem>>, vector<1x128x64xf32>
    %334 = vector.shape_cast %333 : vector<1x128x64xf32> to vector<128x64xf32>
    %cst_145 = arith.constant dense<0.000000e+00> : vector<2x64xf32>
    %335 = tpu.matmul %332, %334, %cst_145 {dimension_numbers = #tpu.dot_dimension_numbers<[1], [0], [0], [1], [0, 0, 1, 1], [], []>} : vector<2x128xf32>, vector<128x64xf32>, vector<2x64xf32> -> vector<2x64xf32>
    %336 = arith.addf %331, %335 : vector<2x64xf32>
    %c0_146 = arith.constant 0 : index
    %c0_147 = arith.constant 0 : index
    %337 = vector.load %arg1[%c0_146, %c0_147] : memref<2x8xf32, #tpu.memory_space<vmem>>, vector<2x8xf32>
    %c0_148 = arith.constant 0 : index
    %c0_149 = arith.constant 0 : index
    %338 = vector.load %arg12[%c0_148, %c0_149] : memref<8x64xf32, #tpu.memory_space<vmem>>, vector<8x64xf32>
    %cst_150 = arith.constant dense<0.000000e+00> : vector<2x64xf32>
    %339 = tpu.matmul %337, %338, %cst_150 {dimension_numbers = #tpu.dot_dimension_numbers<[1], [0], [0], [1], [0, 0, 1, 1], [], []>} : vector<2x8xf32>, vector<8x64xf32>, vector<2x64xf32> -> vector<2x64xf32>
    %340 = arith.addf %336, %339 : vector<2x64xf32>
    %c19 = arith.constant 19 : index
    %c0_151 = arith.constant 0 : index
    %341 = vector.load %arg11[%c19, %c0_151] : memref<21x384xf32, #tpu.memory_space<vmem>>, vector<1x384xf32>
    %342 = vector.extract_strided_slice %341 {offsets = [0, 0], sizes = [1, 64], strides = [1, 1]} : vector<1x384xf32> to vector<1x64xf32>
    %343 = vector.broadcast %342 : vector<1x64xf32> to vector<2x64xf32>
    %344 = arith.addf %340, %343 : vector<2x64xf32>
    %c0_152 = arith.constant 0 : index
    %c0_153 = arith.constant 0 : index
    %345 = vector.load %arg2[%c0_152, %c0_153] : memref<64x6xf32, #tpu.memory_space<vmem>>, vector<64x6xf32>
    %cst_154 = arith.constant dense<0.000000e+00> : vector<2x6xf32>
    %346 = tpu.matmul %344, %345, %cst_154 {dimension_numbers = #tpu.dot_dimension_numbers<[1], [0], [0], [1], [0, 0, 1, 1], [], []>} : vector<2x64xf32>, vector<64x6xf32>, vector<2x6xf32> -> vector<2x6xf32>
    %c20 = arith.constant 20 : index
    %c0_155 = arith.constant 0 : index
    %347 = vector.load %arg11[%c20, %c0_155] : memref<21x384xf32, #tpu.memory_space<vmem>>, vector<1x384xf32>
    %348 = vector.extract_strided_slice %347 {offsets = [0, 0], sizes = [1, 6], strides = [1, 1]} : vector<1x384xf32> to vector<1x6xf32>
    %349 = vector.broadcast %348 : vector<1x6xf32> to vector<2x6xf32>
    %350 = arith.addf %346, %349 : vector<2x6xf32>
    %c0_156 = arith.constant 0 : index
    %c0_157 = arith.constant 0 : index
    %351 = vector.load %arg13[%c0_156, %c0_157] : memref<2x6xf32, #tpu.memory_space<vmem>>, vector<2x6xf32>
    tpu.vector_store %arg13[%c0_156, %c0_157], %350 {strides = array<i32>} : memref<2x6xf32, #tpu.memory_space<vmem>>, vector<2x6xf32>,
    return
  }
}

</mosaic_0001>

<llo_original>
// kernel: drought_net_forward.1
$region0: #{drought_net_forward.1}
  #allocation0 [shape = 'u32[]', space=smem, size = 0x4, offset = 0x4, fixed_abs, tag = 'smem constant byte address 0x4 - core index']
  #allocation1 [shape = 'u32[144,128]{1,0:T(1,128)}', space=vmem, size = 0x12000, scoped, tag = 'internal scratch']
  #allocation2 [shape = 'f32[16,128]{1,0:T(8,128)}', space=vmem, size = 0x2000, scoped, tag = 'scratch operand']
  %s0 = inlined_call_operand.vmem [shape: f32[16,8], index: 0, kind: input, shape index: {}]
  %s1 = inlined_call_operand.vmem [shape: f32[2,8], index: 1, kind: input, shape index: {}]
  %s2 = inlined_call_operand.vmem [shape: f32[64,6], index: 2, kind: input, shape index: {}]
  %s3 = inlined_call_operand.vmem [shape: f32[8,128,64], index: 3, kind: input, shape index: {}]
  %s4 = inlined_call_operand.vmem [shape: f32[2,128,384], index: 4, kind: input, shape index: {}]
  %s5 = inlined_call_operand.vmem [shape: f32[8,128], index: 5, kind: input, shape index: {}]
  %s6 = inlined_call_operand.vmem [shape: f32[2,128,64], index: 6, kind: input, shape index: {}]
  %s7 = inlined_call_operand.vmem [shape: f32[2,64,128], index: 7, kind: input, shape index: {}]
  %s8 = inlined_call_operand.vmem [shape: f32[2,128,128], index: 8, kind: input, shape index: {}]
  %s9 = inlined_call_operand.vmem [shape: f32[128,4], index: 9, kind: input, shape index: {}]
  %s10 = inlined_call_operand.vmem [shape: f32[4,128], index: 10, kind: input, shape index: {}]
  %s11 = inlined_call_operand.vmem [shape: f32[21,384], index: 11, kind: input, shape index: {}]
  %s12 = inlined_call_operand.vmem [shape: f32[8,64], index: 12, kind: input, shape index: {}]
  %s13 = inlined_call_operand.hbm [shape: f32[2,6], index: 13, kind: output, shape index: {}]
  %s14 = sld [smem:[#allocation0]]
  $region62: #{drought_net_forward.1} parent=0
    _
  %s16 = ssub.s32 1, %s14
  %s17 = scalar_select 0, %s16, %s14
  $region1: #{drought_net_forward.1} parent=0
    #allocation3 [shape = 'u8[1024]{0}', space=vmem, size = 0x400, scoped, tag = 'output window, operand 0, single buffered']
    #allocation4 [shape = 's32[1]{0}', space=sflag, size = 0x4, scoped, tag = 'scoped memory for drought_net_forward.1']
    %18 = vsyncpa [#allocation4], 0
    // Predicated region
    $region2: #{drought_net_forward.1} parent=1 // pred_check
      _
    $region3: #{drought_net_forward.1} parent=1 // pred_check_branch
      %20 = sbr.rel (0) target = $region5
    $region4: #{drought_net_forward.1} parent=1 // pred_region
      _
    $region5: #{drought_net_forward.1} parent=1 // pred_fallthru
      _
    // Predicated region
    $region6: #{drought_net_forward.1} parent=1 // pred_check
      _
    $region7: #{drought_net_forward.1} parent=1 // pred_check_branch
      %22 = sbr.rel (0) target = $region9
    $region8: #{drought_net_forward.1} parent=1 // pred_region
      _
    $region9: #{drought_net_forward.1} parent=1 // pred_fallthru
      _
    // Predicated region
    $region10: #{drought_net_forward.1} parent=1 // pred_check
      _
    $region11: #{drought_net_forward.1} parent=1 // pred_check_branch
      %24 = sbr.rel (0) target = $region13
    $region12: #{drought_net_forward.1} parent=1 // pred_region
      _
    $region13: #{drought_net_forward.1} parent=1 // pred_fallthru
      _
    // Predicated region
    $region14: #{drought_net_forward.1} parent=1 // pred_check
      _
    $region15: #{drought_net_forward.1} parent=1 // pred_check_branch
      %26 = sbr.rel (0) target = $region17
    $region16: #{drought_net_forward.1} parent=1 // pred_region
      _
    $region17: #{drought_net_forward.1} parent=1 // pred_fallthru
      _
    // Predicated region
    $region18: #{drought_net_forward.1} parent=1 // pred_check
      _
    $region19: #{drought_net_forward.1} parent=1 // pred_check_branch
      %28 = sbr.rel (0) target = $region21
    $region20: #{drought_net_forward.1} parent=1 // pred_region
      _
    $region21: #{drought_net_forward.1} parent=1 // pred_fallthru
      _
    // Predicated region
    $region22: #{drought_net_forward.1} parent=1 // pred_check
      _
    $region23: #{drought_net_forward.1} parent=1 // pred_check_branch
      %30 = sbr.rel (0) target = $region25
    $region24: #{drought_net_forward.1} parent=1 // pred_region
      _
    $region25: #{drought_net_forward.1} parent=1 // pred_fallthru
      _
    // Predicated region
    $region26: #{drought_net_forward.1} parent=1 // pred_check
      _
    $region27: #{drought_net_forward.1} parent=1 // pred_check_branch
      %32 = sbr.rel (0) target = $region29
    $region28: #{drought_net_forward.1} parent=1 // pred_region
      _
    $region29: #{drought_net_forward.1} parent=1 // pred_fallthru
      _
    // Predicated region
    $region30: #{drought_net_forward.1} parent=1 // pred_check
      _
    $region31: #{drought_net_forward.1} parent=1 // pred_check_branch
      %34 = sbr.rel (0) target = $region33
    $region32: #{drought_net_forward.1} parent=1 // pred_region
      _
    $region33: #{drought_net_forward.1} parent=1 // pred_fallthru
      _
    // Predicated region
    $region34: #{drought_net_forward.1} parent=1 // pred_check
      _
    $region35: #{drought_net_forward.1} parent=1 // pred_check_branch
      %36 = sbr.rel (0) target = $region37
    $region36: #{drought_net_forward.1} parent=1 // pred_region
      _
    $region37: #{drought_net_forward.1} parent=1 // pred_fallthru
      _
    // Predicated region
    $region38: #{drought_net_forward.1} parent=1 // pred_check
      _
    $region39: #{drought_net_forward.1} parent=1 // pred_check_branch
      %38 = sbr.rel (0) target = $region41
    $region40: #{drought_net_forward.1} parent=1 // pred_region
      _
    $region41: #{drought_net_forward.1} parent=1 // pred_fallthru
      _
    // Predicated region
    $region42: #{drought_net_forward.1} parent=1 // pred_check
      _
    $region43: #{drought_net_forward.1} parent=1 // pred_check_branch
      %40 = sbr.rel (0) target = $region45
    $region44: #{drought_net_forward.1} parent=1 // pred_region
      _
    $region45: #{drought_net_forward.1} parent=1 // pred_fallthru
      _
    // Predicated region
    $region46: #{drought_net_forward.1} parent=1 // pred_check
      _
    $region47: #{drought_net_forward.1} parent=1 // pred_check_branch
      %42 = sbr.rel (0) target = $region49
    $region48: #{drought_net_forward.1} parent=1 // pred_region
      _
    $region49: #{drought_net_forward.1} parent=1 // pred_fallthru
      _
    // Predicated region
    $region50: #{drought_net_forward.1} parent=1 // pred_check
      _
    $region51: #{drought_net_forward.1} parent=1 // pred_check_branch
      %44 = sbr.rel (0) target = $region53
    $region52: #{drought_net_forward.1} parent=1 // pred_region
      _
    $region53: #{drought_net_forward.1} parent=1 // pred_fallthru
      _
    %v45 = vld [vmem:[%s9] sm:$0xff]
    %v46 = vld [vmem:[%s9 + $0x8] sm:$0xff]
    %v47 = vld [vmem:[%s9 + $0x10] sm:$0xff]
    %v48 = vld [vmem:[%s9 + $0x18] sm:$0xff]
    %v49 = vld [vmem:[%s9 + $0x20] sm:$0xff]
    %v50 = vld [vmem:[%s9 + $0x28] sm:$0xff]
    %v51 = vld [vmem:[%s9 + $0x30] sm:$0xff]
    %v52 = vld [vmem:[%s9 + $0x38] sm:$0xff]
    %v53 = vld [vmem:[%s9 + $0x40] sm:$0xff]
    %v54 = vld [vmem:[%s9 + $0x48] sm:$0xff]
    %v55 = vld [vmem:[%s9 + $0x50] sm:$0xff]
    %v56 = vld [vmem:[%s9 + $0x58] sm:$0xff]
    %v57 = vld [vmem:[%s9 + $0x60] sm:$0xff]
    %v58 = vld [vmem:[%s9 + $0x68] sm:$0xff]
    %v59 = vld [vmem:[%s9 + $0x70] sm:$0xff]
    %v60 = vld [vmem:[%s9 + $0x78] sm:$0xff]
    %v61 = vld [vmem:[%s10] sm:$0xf]
    %v62 = vld [vmem:[%s0] sm:$0xff]
    %v63 = vld [vmem:[%s0 + $0x8] sm:$0xff]
    %v64 = vld [vmem:[%s5] sm:$0xff]
    %v65 = vld [vmem:[%s11] ss:$8 sm:$0x7]
    %v67 = vlaneseq
    %v68 = vshrl.u32 %v67, 7
    %v69 = vsub.s32 0, %v68
    %v70 = vrot.slane %v65, %v69
    %vm72 = vcmask 64512
    %v74 = vsel %vm72, %v62, 0
    %v77 = vsel %vm72, %v63, 0
    %79 = vmatprep.subr.mxu0 0.0
    %80 = vmatpush1.msra.mxu0 %v64
    %81 = vmatprep.subr.mxu0 0.0
    %82 = vmatpush1.msra.mxu0 0.0
    %83 = vmatprep.subr.mxu0 0.0
    %84 = vmatpush1.msra.mxu0 0.0
    %85 = vmatprep.subr.mxu0 0.0
    %86 = vmatpush1.msra.mxu0 0.0
    %87 = vmatprep.subr.mxu0 0.0
    %88 = vmatpush1.msra.mxu0 0.0
    %89 = vmatprep.subr.mxu0 0.0
    %90 = vmatpush1.msra.mxu0 0.0
    %91 = vmatprep.subr.mxu0 0.0
    %92 = vmatpush1.msra.mxu0 0.0
    %93 = vmatprep.subr.mxu0 0.0
    %94 = vmatpush1.msra.mxu0 0.0
    %95 = vmatprep.subr.mxu0 0.0
    %96 = vmatpush1.msra.mxu0 0.0
    %97 = vmatprep.subr.mxu0 0.0
    %98 = vmatpush1.msra.mxu0 0.0
    %99 = vmatprep.subr.mxu0 0.0
    %100 = vmatpush1.msra.mxu0 0.0
    %101 = vmatprep.subr.mxu0 0.0
    %102 = vmatpush1.msra.mxu0 0.0
    %103 = vmatprep.subr.mxu0 0.0
    %104 = vmatpush1.msra.mxu0 0.0
    %105 = vmatprep.subr.mxu0 0.0
    %106 = vmatpush1.msra.mxu0 0.0
    %107 = vmatprep.subr.mxu0 0.0
    %108 = vmatpush1.msra.mxu0 0.0
    %109 = vmatprep.subr.mxu0 0.0
    %110 = vmatpush1.msra.mxu0 0.0
    %111 = vmatprep.subr.mxu0 0.0
    %112 = vmatpush1.msra.mxu0 0.0
    %113 = vmatprep.subr.mxu0 0.0
    %114 = vmatpush1.msra.mxu0 0.0
    %115 = vmatprep.subr.mxu0 0.0
    %116 = vmatpush1.msra.mxu0 0.0
    %117 = vmatprep.subr.mxu0 0.0
    %118 = vmatpush1.msra.mxu0 0.0
    %119 = vmatprep.subr.mxu0 0.0
    %120 = vmatpush1.msra.mxu0 0.0
    %121 = vmatprep.subr.mxu0 0.0
    %122 = vmatpush1.msra.mxu0 0.0
    %123 = vmatprep.subr.mxu0 0.0
    %124 = vmatpush1.msra.mxu0 0.0
    %125 = vmatprep.subr.mxu0 0.0
    %126 = vmatpush1.msra.mxu0 0.0
    %127 = vmatprep.subr.mxu0 0.0
    %128 = vmatpush1.msra.mxu0 0.0
    %129 = vmatprep.subr.mxu0 0.0
    %130 = vmatpush1.msra.mxu0 0.0
    %131 = vmatprep.subr.mxu0 0.0
    %132 = vmatpush1.msra.mxu0 0.0
    %133 = vmatprep.subr.mxu0 0.0
    %134 = vmatpush1.msra.mxu0 0.0
    %135 = vmatprep.subr.mxu0 0.0
    %136 = vmatpush1.msra.mxu0 0.0
    %137 = vmatprep.subr.mxu0 0.0
    %138 = vmatpush1.msra.mxu0 0.0
    %139 = vmatprep.subr.mxu0 0.0
    %140 = vmatpush1.msra.mxu0 0.0
    %141 = vmatprep.subr.mxu0 0.0
    %142 = vmatpush1.msra.mxu0 0.0
    %143 = vmatprep.mubr.f32.mxu0 0.0
    %144 = vmatmul.mubr.f32.gmra.mrb[0].mxu0 %v74
    %v145 = vpop.f32.mrb[0].mxu0
    %v146 = vadd.f32 %v70, %v145
    %v147 = vpop.f32.mrb[0].mxu0
    %148 = vmatprep.mubr.f32.mxu0 0.0
    %149 = vmatmul.mubr.f32.gmra.mrb[0].mxu0 %v77
    %v150 = vpop.f32.mrb[0].mxu0
    %v151 = vadd.f32 %v70, %v150
    %v152 = vpop.f32.mrb[0].mxu0
    %153 = vdwg.mxu0
    %v154 = vmul.f32 %v146, 2.4494898
    %v155 = vmul.f32 %v151, 2.4494898
    %v156 = vld [vmem:[%s4] sm:$0xff]
    %v157 = vld [vmem:[%s4 + $0x8] sm:$0xff]
    %v158 = vld [vmem:[%s4 + $0x10] sm:$0xff]
    %v159 = vld [vmem:[%s4 + $0x18] sm:$0xff]
    %v160 = vld [vmem:[%s4 + $0x20] sm:$0xff]
    %v161 = vld [vmem:[%s4 + $0x28] sm:$0xff]
    %v162 = vld [vmem:[%s4 + $0x30] sm:$0xff]
    %v163 = vld [vmem:[%s4 + $0x38] sm:$0xff]
    %v164 = vld [vmem:[%s4 + $0x40] sm:$0xff]
    %v165 = vld [vmem:[%s4 + $0x48] sm:$0xff]
    %v166 = vld [vmem:[%s4 + $0x50] sm:$0xff]
    %v167 = vld [vmem:[%s4 + $0x58] sm:$0xff]
    %v168 = vld [vmem:[%s4 + $0x60] sm:$0xff]
    %v169 = vld [vmem:[%s4 + $0x68] sm:$0xff]
    %v170 = vld [vmem:[%s4 + $0x70] sm:$0xff]
    %v171 = vld [vmem:[%s4 + $0x78] sm:$0xff]
    %v172 = vld [vmem:[%s4 + $0x80] sm:$0xff]
    %v173 = vld [vmem:[%s4 + $0x88] sm:$0xff]
    %v174 = vld [vmem:[%s4 + $0x90] sm:$0xff]
    %v175 = vld [vmem:[%s4 + $0x98] sm:$0xff]
    %v176 = vld [vmem:[%s4 + $0xa0] sm:$0xff]
    %v177 = vld [vmem:[%s4 + $0xa8] sm:$0xff]
    %v178 = vld [vmem:[%s4 + $0xb0] sm:$0xff]
    %v179 = vld [vmem:[%s4 + $0xb8] sm:$0xff]
    %v180 = vld [vmem:[%s4 + $0xc0] sm:$0xff]
    %v181 = vld [vmem:[%s4 + $0xc8] sm:$0xff]
    %v182 = vld [vmem:[%s4 + $0xd0] sm:$0xff]
    %v183 = vld [vmem:[%s4 + $0xd8] sm:$0xff]
    %v184 = vld [vmem:[%s4 + $0xe0] sm:$0xff]
    %v185 = vld [vmem:[%s4 + $0xe8] sm:$0xff]
    %v186 = vld [vmem:[%s4 + $0xf0] sm:$0xff]
    %v187 = vld [vmem:[%s4 + $0xf8] sm:$0xff]
    %v188 = vld [vmem:[%s4 + $0x100] sm:$0xff]
    %v189 = vld [vmem:[%s4 + $0x108] sm:$0xff]
    %v190 = vld [vmem:[%s4 + $0x110] sm:$0xff]
    %v191 = vld [vmem:[%s4 + $0x118] sm:$0xff]
    %v192 = vld [vmem:[%s4 + $0x120] sm:$0xff]
    %v193 = vld [vmem:[%s4 + $0x128] sm:$0xff]
    %v194 = vld [vmem:[%s4 + $0x130] sm:$0xff]
    %v195 = vld [vmem:[%s4 + $0x138] sm:$0xff]
    %v196 = vld [vmem:[%s4 + $0x140] sm:$0xff]
    %v197 = vld [vmem:[%s4 + $0x148] sm:$0xff]
    %v198 = vld [vmem:[%s4 + $0x150] sm:$0xff]
    %v199 = vld [vmem:[%s4 + $0x158] sm:$0xff]
    %v200 = vld [vmem:[%s4 + $0x160] sm:$0xff]
    %v201 = vld [vmem:[%s4 + $0x168] sm:$0xff]
    %v202 = vld [vmem:[%s4 + $0x170] sm:$0xff]
    %v203 = vld [vmem:[%s4 + $0x178] sm:$0xff]
    %s204 = scalar_lea.vmem %s11, 1
    %v205 = vld [vmem:[%s204] ss:$8 sm:$0x7]
    %v207 = vlaneseq
    %v208 = vshrl.u32 %v207, 7
    %v209 = vsub.s32 0, %v208
    %v210 = vrot.slane %v205, %v209
    %v211 = vlaneseq
    %v212 = vshrl.u32 %v211, 7
    %v213 = vsub.s32 1, %v212
    %v214 = vrot.slane %v205, %v213
    %v215 = vlaneseq
    %v216 = vshrl.u32 %v215, 7
    %v217 = vsub.s32 2, %v216
    %v218 = vrot.slane %v205, %v217
    %222 = vmatprep.subr.mxu0 %v157
    %223 = vmatpush1.msra.mxu0 %v156
    %224 = vmatprep.subr.mxu0 %v160
    %225 = vmatpush1.msra.mxu0 %v159
    %226 = vmatprep.subr.mxu0 %v163
    %227 = vmatpush1.msra.mxu0 %v162
    %228 = vmatprep.subr.mxu0 %v166
    %229 = vmatpush1.msra.mxu0 %v165
    %230 = vmatprep.subr.mxu0 %v169
    %231 = vmatpush1.msra.mxu0 %v168
    %232 = vmatprep.subr.mxu0 %v172
    %233 = vmatpush1.msra.mxu0 %v171
    %234 = vmatprep.subr.mxu0 %v175
    %235 = vmatpush1.msra.mxu0 %v174
    %236 = vmatprep.subr.mxu0 %v178
    %237 = vmatpush1.msra.mxu0 %v177
    %238 = vmatprep.subr.mxu0 %v181
    %239 = vmatpush1.msra.mxu0 %v180
    %240 = vmatprep.subr.mxu0 %v184
    %241 = vmatpush1.msra.mxu0 %v183
    %242 = vmatprep.subr.mxu0 %v187
    %243 = vmatpush1.msra.mxu0 %v186
    %244 = vmatprep.subr.mxu0 %v190
    %245 = vmatpush1.msra.mxu0 %v189
    %246 = vmatprep.subr.mxu0 %v193
    %247 = vmatpush1.msra.mxu0 %v192
    %248 = vmatprep.subr.mxu0 %v196
    %249 = vmatpush1.msra.mxu0 %v195
    %250 = vmatprep.subr.mxu0 %v199
    %251 = vmatpush1.msra.mxu0 %v198
    %252 = vmatprep.subr.mxu0 %v202
    %253 = vmatpush1.msra.mxu0 %v201
    %254 = vmatprep.subr.mxu0 0.0
    %255 = vmatpush1.msra.mxu0 0.0
    %256 = vmatprep.subr.mxu0 0.0
    %257 = vmatpush1.msra.mxu0 0.0
    %258 = vmatprep.subr.mxu0 0.0
    %259 = vmatpush1.msra.mxu0 0.0
    %260 = vmatprep.subr.mxu0 0.0
    %261 = vmatpush1.msra.mxu0 0.0
    %262 = vmatprep.subr.mxu0 0.0
    %263 = vmatpush1.msra.mxu0 0.0
    %264 = vmatprep.subr.mxu0 0.0
    %265 = vmatpush1.msra.mxu0 0.0
    %266 = vmatprep.subr.mxu0 0.0
    %267 = vmatpush1.msra.mxu0 0.0
    %268 = vmatprep.subr.mxu0 0.0
    %269 = vmatpush1.msra.mxu0 0.0
    %270 = vmatprep.subr.mxu0 0.0
    %271 = vmatpush1.msra.mxu0 0.0
    %272 = vmatprep.subr.mxu0 0.0
    %273 = vmatpush1.msra.mxu0 0.0
    %274 = vmatprep.subr.mxu0 0.0
    %275 = vmatpush1.msra.mxu0 0.0
    %276 = vmatprep.subr.mxu0 0.0
    %277 = vmatpush1.msra.mxu0 0.0
    %278 = vmatprep.subr.mxu0 0.0
    %279 = vmatpush1.msra.mxu0 0.0
    %280 = vmatprep.subr.mxu0 0.0
    %281 = vmatpush1.msra.mxu0 0.0
    %282 = vmatprep.subr.mxu0 0.0
    %283 = vmatpush1.msra.mxu0 0.0
    %284 = vmatprep.subr.mxu0 0.0
    %285 = vmatpush1.msra.mxu0 0.0
    %286 = vmatprep.mubr.f32.mxu0 0.0
    %287 = vmatmul.mubr.f32.gmra.mrb[0].mxu0 %v154
    %v288 = vpop.f32.mrb[0].mxu0
    %v289 = vadd.f32 %v210, %v288
    %v290 = vpop.f32.mrb[0].mxu0
    %v291 = vadd.f32 %v214, %v290
    %292 = vmatprep.mubr.f32.mxu0 0.0
    %293 = vmatmul.mubr.f32.gmra.mrb[0].mxu0 %v155
    %v294 = vpop.f32.mrb[0].mxu0
    %v295 = vadd.f32 %v210, %v294
    %v296 = vpop.f32.mrb[0].mxu0
    %v297 = vadd.f32 %v214, %v296
    %298 = vdwg.mxu0
    %299 = vmatprep.subr.mxu0 0.0
    %300 = vmatpush1.msra.mxu0 %v158
    %301 = vmatprep.subr.mxu0 0.0
    %302 = vmatpush1.msra.mxu0 %v161
    %303 = vmatprep.subr.mxu0 0.0
    %304 = vmatpush1.msra.mxu0 %v164
    %305 = vmatprep.subr.mxu0 0.0
    %306 = vmatpush1.msra.mxu0 %v167
    %307 = vmatprep.subr.mxu0 0.0
    %308 = vmatpush1.msra.mxu0 %v170
    %309 = vmatprep.subr.mxu0 0.0
    %310 = vmatpush1.msra.mxu0 %v173
    %311 = vmatprep.subr.mxu0 0.0
    %312 = vmatpush1.msra.mxu0 %v176
    %313 = vmatprep.subr.mxu0 0.0
    %314 = vmatpush1.msra.mxu0 %v179
    %315 = vmatprep.subr.mxu0 0.0
    %316 = vmatpush1.msra.mxu0 %v182
    %317 = vmatprep.subr.mxu0 0.0
    %318 = vmatpush1.msra.mxu0 %v185
    %319 = vmatprep.subr.mxu0 0.0
    %320 = vmatpush1.msra.mxu0 %v188
    %321 = vmatprep.subr.mxu0 0.0
    %322 = vmatpush1.msra.mxu0 %v191
    %323 = vmatprep.subr.mxu0 0.0
    %324 = vmatpush1.msra.mxu0 %v194
    %325 = vmatprep.subr.mxu0 0.0
    %326 = vmatpush1.msra.mxu0 %v197
    %327 = vmatprep.subr.mxu0 0.0
    %328 = vmatpush1.msra.mxu0 %v200
    %329 = vmatprep.subr.mxu0 0.0
    %330 = vmatpush1.msra.mxu0 %v203
    %331 = vmatprep.subr.mxu0 0.0
    %332 = vmatpush1.msra.mxu0 0.0
    %333 = vmatprep.subr.mxu0 0.0
    %334 = vmatpush1.msra.mxu0 0.0
    %335 = vmatprep.subr.mxu0 0.0
    %336 = vmatpush1.msra.mxu0 0.0
    %337 = vmatprep.subr.mxu0 0.0
    %338 = vmatpush1.msra.mxu0 0.0
    %339 = vmatprep.subr.mxu0 0.0
    %340 = vmatpush1.msra.mxu0 0.0
    %341 = vmatprep.subr.mxu0 0.0
    %342 = vmatpush1.msra.mxu0 0.0
    %343 = vmatprep.subr.mxu0 0.0
    %344 = vmatpush1.msra.mxu0 0.0
    %345 = vmatprep.subr.mxu0 0.0
    %346 = vmatpush1.msra.mxu0 0.0
    %347 = vmatprep.subr.mxu0 0.0
    %348 = vmatpush1.msra.mxu0 0.0
    %349 = vmatprep.subr.mxu0 0.0
    %350 = vmatpush1.msra.mxu0 0.0
    %351 = vmatprep.subr.mxu0 0.0
    %352 = vmatpush1.msra.mxu0 0.0
    %353 = vmatprep.subr.mxu0 0.0
    %354 = vmatpush1.msra.mxu0 0.0
    %355 = vmatprep.subr.mxu0 0.0
    %356 = vmatpush1.msra.mxu0 0.0
    %357 = vmatprep.subr.mxu0 0.0
    %358 = vmatpush1.msra.mxu0 0.0
    %359 = vmatprep.subr.mxu0 0.0
    %360 = vmatpush1.msra.mxu0 0.0
    %361 = vmatprep.subr.mxu0 0.0
    %362 = vmatpush1.msra.mxu0 0.0
    %363 = vmatprep.mubr.f32.mxu0 0.0
    %364 = vmatmul.mubr.f32.gmra.mrb[0].mxu0 %v154
    %v365 = vpop.f32.mrb[0].mxu0
    %v366 = vadd.f32 %v218, %v365
    %v367 = vpop.f32.mrb[0].mxu0
    %368 = vmatprep.mubr.f32.mxu0 0.0
    %369 = vmatmul.mubr.f32.gmra.mrb[0].mxu0 %v155
    %v370 = vpop.f32.mrb[0].mxu0
    %v371 = vadd.f32 %v218, %v370
    %v372 = vpop.f32.mrb[0].mxu0
    %373 = vdwg.mxu0
    %v374 = vmul.f32 %v289, %v291
    %v375 = vmul.f32 %v289, %v297
    %v376 = vmul.f32 %v295, %v291
    %v377 = vmul.f32 %v295, %v297
    %378 = vmatprep.subr.mxu0 0.0
    %379 = vmatpush1.msra.mxu0 %v45
    %380 = vmatprep.subr.mxu0 0.0
    %381 = vmatpush1.msra.mxu0 %v46
    %382 = vmatprep.subr.mxu0 0.0
    %383 = vmatpush1.msra.mxu0 %v47
    %384 = vmatprep.subr.mxu0 0.0
    %385 = vmatpush1.msra.mxu0 %v48
    %386 = vmatprep.subr.mxu0 0.0
    %387 = vmatpush1.msra.mxu0 %v49
    %388 = vmatprep.subr.mxu0 0.0
    %389 = vmatpush1.msra.mxu0 %v50
    %390 = vmatprep.subr.mxu0 0.0
    %391 = vmatpush1.msra.mxu0 %v51
    %392 = vmatprep.subr.mxu0 0.0
    %393 = vmatpush1.msra.mxu0 %v52
    %394 = vmatprep.subr.mxu0 0.0
    %395 = vmatpush1.msra.mxu0 %v53
    %396 = vmatprep.subr.mxu0 0.0
    %397 = vmatpush1.msra.mxu0 %v54
    %398 = vmatprep.subr.mxu0 0.0
    %399 = vmatpush1.msra.mxu0 %v55
    %400 = vmatprep.subr.mxu0 0.0
    %401 = vmatpush1.msra.mxu0 %v56
    %402 = vmatprep.subr.mxu0 0.0
    %403 = vmatpush1.msra.mxu0 %v57
    %404 = vmatprep.subr.mxu0 0.0
    %405 = vmatpush1.msra.mxu0 %v58
    %406 = vmatprep.subr.mxu0 0.0
    %407 = vmatpush1.msra.mxu0 %v59
    %408 = vmatprep.subr.mxu0 0.0
    %409 = vmatpush1.msra.mxu0 %v60
    %410 = vmatprep.subr.mxu0 0.0
    %411 = vmatpush1.msra.mxu0 0.0
    %412 = vmatprep.subr.mxu0 0.0
    %413 = vmatpush1.msra.mxu0 0.0
    %414 = vmatprep.subr.mxu0 0.0
    %415 = vmatpush1.msra.mxu0 0.0
    %416 = vmatprep.subr.mxu0 0.0
    %417 = vmatpush1.msra.mxu0 0.0
    %418 = vmatprep.subr.mxu0 0.0
    %419 = vmatpush1.msra.mxu0 0.0
    %420 = vmatprep.subr.mxu0 0.0
    %421 = vmatpush1.msra.mxu0 0.0
    %422 = vmatprep.subr.mxu0 0.0
    %423 = vmatpush1.msra.mxu0 0.0
    %424 = vmatprep.subr.mxu0 0.0
    %425 = vmatpush1.msra.mxu0 0.0
    %426 = vmatprep.subr.mxu0 0.0
    %427 = vmatpush1.msra.mxu0 0.0
    %428 = vmatprep.subr.mxu0 0.0
    %429 = vmatpush1.msra.mxu0 0.0
    %430 = vmatprep.subr.mxu0 0.0
    %431 = vmatpush1.msra.mxu0 0.0
    %432 = vmatprep.subr.mxu0 0.0
    %433 = vmatpush1.msra.mxu0 0.0
    %434 = vmatprep.subr.mxu0 0.0
    %435 = vmatpush1.msra.mxu0 0.0
    %436 = vmatprep.subr.mxu0 0.0
    %437 = vmatpush1.msra.mxu0 0.0
    %438 = vmatprep.subr.mxu0 0.0
    %439 = vmatpush1.msra.mxu0 0.0
    %440 = vmatprep.subr.mxu0 0.0
    %441 = vmatpush1.msra.mxu0 0.0
    %442 = vmatprep.mubr.f32.mxu0 0.0
    %443 = vmatmul.mubr.f32.gmra.mrb[0].mxu0 %v374
    %v444 = vpop.f32.mrb[0].mxu0
    %v445 = vadd.f32 0.0, %v444
    %v446 = vpop.f32.mrb[0].mxu0
    %447 = vmatprep.mubr.f32.mxu0 0.0
    %448 = vmatmul.mubr.f32.gmra.mrb[0].mxu0 %v375
    %v449 = vpop.f32.mrb[0].mxu0
    %v450 = vadd.f32 0.0, %v449
    %v451 = vpop.f32.mrb[0].mxu0
    %452 = vmatprep.mubr.f32.mxu0 0.0
    %453 = vmatmul.mubr.f32.gmra.mrb[0].mxu0 %v376
    %v454 = vpop.f32.mrb[0].mxu0
    %v455 = vadd.f32 0.0, %v454
    %v456 = vpop.f32.mrb[0].mxu0
    %457 = vmatprep.mubr.f32.mxu0 0.0
    %458 = vmatmul.mubr.f32.gmra.mrb[0].mxu0 %v377
    %v459 = vpop.f32.mrb[0].mxu0
    %v460 = vadd.f32 0.0, %v459
    %v461 = vpop.f32.mrb[0].mxu0
    %462 = vdwg.mxu0
    %v463 = vmax.f32 %v445, %v450
    %v464 = vsub.f32 %v445, %v463
    %v465 = vmul.f32 %v464, 1.442695
    %v466 = vpow.pop %v465
    %v467 = vsub.f32 %v450, %v463
    %v468 = vmul.f32 %v467, 1.442695
    %v469 = vpow.pop %v468
    %v470 = vadd.f32 %v466, %v469
    %v471 = vrcp.pop %v470
    %v472 = vmul.f32 1.0, %v471
    %v473 = vmul.f32 %v466, %v472
    %v474 = vmul.f32 %v469, %v472
    %v475 = vmax.f32 %v455, %v460
    %v476 = vsub.f32 %v455, %v475
    %v477 = vmul.f32 %v476, 1.442695
    %v478 = vpow.pop %v477
    %v479 = vsub.f32 %v460, %v475
    %v480 = vmul.f32 %v479, 1.442695
    %v481 = vpow.pop %v480
    %v482 = vadd.f32 %v478, %v481
    %v483 = vrcp.pop %v482
    %v484 = vmul.f32 1.0, %v483
    %v485 = vmul.f32 %v478, %v484
    %v486 = vmul.f32 %v481, %v484
    %vm487 = vcmask 31744
    %v489 = vsel %vm487, %v473, 0
    %v492 = vsel %vm487, %v474, 0
    %v495 = vsel %vm487, %v485, 0
    %v498 = vsel %vm487, %v486, 0
    %vm500 = vcmask 1043456
    %v502 = vsel %vm500, %v61, 0
    %504 = vmatprep.subr.mxu0 0.0
    %505 = vmatpush1.msra.mxu0 %v502
    %506 = vmatprep.subr.mxu0 0.0
    %507 = vmatpush1.msra.mxu0 0.0
    %508 = vmatprep.subr.mxu0 0.0
    %509 = vmatpush1.msra.mxu0 0.0
    %510 = vmatprep.subr.mxu0 0.0
    %511 = vmatpush1.msra.mxu0 0.0
    %512 = vmatprep.subr.mxu0 0.0
    %513 = vmatpush1.msra.mxu0 0.0
    %514 = vmatprep.subr.mxu0 0.0
    %515 = vmatpush1.msra.mxu0 0.0
    %516 = vmatprep.subr.mxu0 0.0
    %517 = vmatpush1.msra.mxu0 0.0
    %518 = vmatprep.subr.mxu0 0.0
    %519 = vmatpush1.msra.mxu0 0.0
    %520 = vmatprep.subr.mxu0 0.0
    %521 = vmatpush1.msra.mxu0 0.0
    %522 = vmatprep.subr.mxu0 0.0
    %523 = vmatpush1.msra.mxu0 0.0
    %524 = vmatprep.subr.mxu0 0.0
    %525 = vmatpush1.msra.mxu0 0.0
    %526 = vmatprep.subr.mxu0 0.0
    %527 = vmatpush1.msra.mxu0 0.0
    %528 = vmatprep.subr.mxu0 0.0
    %529 = vmatpush1.msra.mxu0 0.0
    %530 = vmatprep.subr.mxu0 0.0
    %531 = vmatpush1.msra.mxu0 0.0
    %532 = vmatprep.subr.mxu0 0.0
    %533 = vmatpush1.msra.mxu0 0.0
    %534 = vmatprep.subr.mxu0 0.0
    %535 = vmatpush1.msra.mxu0 0.0
    %536 = vmatprep.subr.mxu0 0.0
    %537 = vmatpush1.msra.mxu0 0.0
    %538 = vmatprep.subr.mxu0 0.0
    %539 = vmatpush1.msra.mxu0 0.0
    %540 = vmatprep.subr.mxu0 0.0
    %541 = vmatpush1.msra.mxu0 0.0
    %542 = vmatprep.subr.mxu0 0.0
    %543 = vmatpush1.msra.mxu0 0.0
    %544 = vmatprep.subr.mxu0 0.0
    %545 = vmatpush1.msra.mxu0 0.0
    %546 = vmatprep.subr.mxu0 0.0
    %547 = vmatpush1.msra.mxu0 0.0
    %548 = vmatprep.subr.mxu0 0.0
    %549 = vmatpush1.msra.mxu0 0.0
    %550 = vmatprep.subr.mxu0 0.0
    %551 = vmatpush1.msra.mxu0 0.0
    %552 = vmatprep.subr.mxu0 0.0
    %553 = vmatpush1.msra.mxu0 0.0
    %554 = vmatprep.subr.mxu0 0.0
    %555 = vmatpush1.msra.mxu0 0.0
    %556 = vmatprep.subr.mxu0 0.0
    %557 = vmatpush1.msra.mxu0 0.0
    %558 = vmatprep.subr.mxu0 0.0
    %559 = vmatpush1.msra.mxu0 0.0
    %560 = vmatprep.subr.mxu0 0.0
    %561 = vmatpush1.msra.mxu0 0.0
    %562 = vmatprep.subr.mxu0 0.0
    %563 = vmatpush1.msra.mxu0 0.0
    %564 = vmatprep.subr.mxu0 0.0
    %565 = vmatpush1.msra.mxu0 0.0
    %566 = vmatprep.subr.mxu0 0.0
    %567 = vmatpush1.msra.mxu0 0.0
    %568 = vmatprep.mubr.f32.mxu0 0.0
    %569 = vmatmul.mubr.f32.gmra.mrb[0].mxu0 %v489
    %v570 = vpop.f32.mrb[0].mxu0
    %v571 = vadd.f32 0.0, %v570
    %v572 = vpop.f32.mrb[0].mxu0
    %573 = vmatprep.mubr.f32.mxu0 0.0
    %574 = vmatmul.mubr.f32.gmra.mrb[0].mxu0 %v492
    %v575 = vpop.f32.mrb[0].mxu0
    %v576 = vadd.f32 0.0, %v575
    %v577 = vpop.f32.mrb[0].mxu0
    %578 = vmatprep.mubr.f32.mxu0 0.0
    %579 = vmatmul.mubr.f32.gmra.mrb[0].mxu0 %v495
    %v580 = vpop.f32.mrb[0].mxu0
    %v581 = vadd.f32 0.0, %v580
    %v582 = vpop.f32.mrb[0].mxu0
    %583 = vmatprep.mubr.f32.mxu0 0.0
    %584 = vmatmul.mubr.f32.gmra.mrb[0].mxu0 %v498
    %v585 = vpop.f32.mrb[0].mxu0
    %v586 = vadd.f32 0.0, %v585
    %v587 = vpop.f32.mrb[0].mxu0
    %588 = vdwg.mxu0
    %v589 = vmul.f32 %v571, %v366
    %v590 = vmul.f32 %v576, %v371
    %v591 = vmul.f32 %v581, %v366
    %v592 = vmul.f32 %v586, %v371
    %v593 = vadd.f32 %v589, %v590
    %v594 = vadd.f32 %v591, %v592
    %v595 = vld [vmem:[%s8] sm:$0xff]
    %v596 = vld [vmem:[%s8 + $0x8] sm:$0xff]
    %v597 = vld [vmem:[%s8 + $0x10] sm:$0xff]
    %v598 = vld [vmem:[%s8 + $0x18] sm:$0xff]
    %v599 = vld [vmem:[%s8 + $0x20] sm:$0xff]
    %v600 = vld [vmem:[%s8 + $0x28] sm:$0xff]
    %v601 = vld [vmem:[%s8 + $0x30] sm:$0xff]
    %v602 = vld [vmem:[%s8 + $0x38] sm:$0xff]
    %v603 = vld [vmem:[%s8 + $0x40] sm:$0xff]
    %v604 = vld [vmem:[%s8 + $0x48] sm:$0xff]
    %v605 = vld [vmem:[%s8 + $0x50] sm:$0xff]
    %v606 = vld [vmem:[%s8 + $0x58] sm:$0xff]
    %v607 = vld [vmem:[%s8 + $0x60] sm:$0xff]
    %v608 = vld [vmem:[%s8 + $0x68] sm:$0xff]
    %v609 = vld [vmem:[%s8 + $0x70] sm:$0xff]
    %v610 = vld [vmem:[%s8 + $0x78] sm:$0xff]
    %s611 = scalar_lea.vmem %s11, 2
    %v612 = vld [vmem:[%s611] ss:$8 sm:$0x7]
    %v614 = vlaneseq
    %v615 = vshrl.u32 %v614, 7
    %v616 = vsub.s32 0, %v615
    %v617 = vrot.slane %v612, %v616
    %619 = vmatprep.subr.mxu0 0.0
    %620 = vmatpush1.msra.mxu0 %v595
    %621 = vmatprep.subr.mxu0 0.0
    %622 = vmatpush1.msra.mxu0 %v596
    %623 = vmatprep.subr.mxu0 0.0
    %624 = vmatpush1.msra.mxu0 %v597
    %625 = vmatprep.subr.mxu0 0.0
    %626 = vmatpush1.msra.mxu0 %v598
    %627 = vmatprep.subr.mxu0 0.0
    %628 = vmatpush1.msra.mxu0 %v599
    %629 = vmatprep.subr.mxu0 0.0
    %630 = vmatpush1.msra.mxu0 %v600
    %631 = vmatprep.subr.mxu0 0.0
    %632 = vmatpush1.msra.mxu0 %v601
    %633 = vmatprep.subr.mxu0 0.0
    %634 = vmatpush1.msra.mxu0 %v602
    %635 = vmatprep.subr.mxu0 0.0
    %636 = vmatpush1.msra.mxu0 %v603
    %637 = vmatprep.subr.mxu0 0.0
    %638 = vmatpush1.msra.mxu0 %v604
    %639 = vmatprep.subr.mxu0 0.0
    %640 = vmatpush1.msra.mxu0 %v605
    %641 = vmatprep.subr.mxu0 0.0
    %642 = vmatpush1.msra.mxu0 %v606
    %643 = vmatprep.subr.mxu0 0.0
    %644 = vmatpush1.msra.mxu0 %v607
    %645 = vmatprep.subr.mxu0 0.0
    %646 = vmatpush1.msra.mxu0 %v608
    %647 = vmatprep.subr.mxu0 0.0
    %648 = vmatpush1.msra.mxu0 %v609
    %649 = vmatprep.subr.mxu0 0.0
    %650 = vmatpush1.msra.mxu0 %v610
    %651 = vmatprep.subr.mxu0 0.0
    %652 = vmatpush1.msra.mxu0 0.0
    %653 = vmatprep.subr.mxu0 0.0
    %654 = vmatpush1.msra.mxu0 0.0
    %655 = vmatprep.subr.mxu0 0.0
    %656 = vmatpush1.msra.mxu0 0.0
    %657 = vmatprep.subr.mxu0 0.0
    %658 = vmatpush1.msra.mxu0 0.0
    %659 = vmatprep.subr.mxu0 0.0
    %660 = vmatpush1.msra.mxu0 0.0
    %661 = vmatprep.subr.mxu0 0.0
    %662 = vmatpush1.msra.mxu0 0.0
    %663 = vmatprep.subr.mxu0 0.0
    %664 = vmatpush1.msra.mxu0 0.0
    %665 = vmatprep.subr.mxu0 0.0
    %666 = vmatpush1.msra.mxu0 0.0
    %667 = vmatprep.subr.mxu0 0.0
    %668 = vmatpush1.msra.mxu0 0.0
    %669 = vmatprep.subr.mxu0 0.0
    %670 = vmatpush1.msra.mxu0 0.0
    %671 = vmatprep.subr.mxu0 0.0
    %672 = vmatpush1.msra.mxu0 0.0
    %673 = vmatprep.subr.mxu0 0.0
    %674 = vmatpush1.msra.mxu0 0.0
    %675 = vmatprep.subr.mxu0 0.0
    %676 = vmatpush1.msra.mxu0 0.0
    %677 = vmatprep.subr.mxu0 0.0
    %678 = vmatpush1.msra.mxu0 0.0
    %679 = vmatprep.subr.mxu0 0.0
    %680 = vmatpush1.msra.mxu0 0.0
    %681 = vmatprep.subr.mxu0 0.0
    %682 = vmatpush1.msra.mxu0 0.0
    %683 = vmatprep.mubr.f32.mxu0 0.0
    %684 = vmatmul.mubr.f32.gmra.mrb[0].mxu0 %v593
    %v685 = vpop.f32.mrb[0].mxu0
    %v686 = vadd.f32 %v617, %v685
    %v687 = vpop.f32.mrb[0].mxu0
    %688 = vmatprep.mubr.f32.mxu0 0.0
    %689 = vmatmul.mubr.f32.gmra.mrb[0].mxu0 %v594
    %v690 = vpop.f32.mrb[0].mxu0
    %v691 = vadd.f32 %v617, %v690
    %v692 = vpop.f32.mrb[0].mxu0
    %693 = vdwg.mxu0
    %v694 = vadd.f32 %v154, %v686
    %v695 = vadd.f32 %v155, %v691
    %s696 = scalar_lea.vmem %s11, 5
    %v697 = vld [vmem:[%s696] ss:$8 sm:$0x7]
    %s698 = scalar_lea.vmem %s11, 6
    %v699 = vld [vmem:[%s698] ss:$8 sm:$0x7]
    %700 = vadd.xlane.f32.xlu0 %v694
    %v701 = vpop.xlane.xlu0 %700
    %702 = vadd.xlane.f32.xlu0 %v695
    %v703 = vpop.xlane.xlu0 %702
    %v704 = vrcp.pop 128.0
    %v705 = vmul.f32 %v701, %v704
    %v706 = vmul.f32 %v703, %v704
    %v707 = vsub.f32 %v694, %v705
    %v708 = vsub.f32 %v695, %v706
    %v709 = vmul.f32 %v707, %v707
    %v710 = vmul.f32 %v708, %v708
    %711 = vadd.xlane.f32.xlu0 %v709
    %v712 = vpop.xlane.xlu0 %711
    %713 = vadd.xlane.f32.xlu0 %v710
    %v714 = vpop.xlane.xlu0 %713
    %v715 = vmul.f32 %v712, %v704
    %v716 = vmul.f32 %v714, %v704
    %v717 = vadd.f32 %v715, 1e-05
    %v718 = vadd.f32 %v716, 1e-05
    %v719 = vrsqrt.pop %v717
    %v720 = vrsqrt.pop %v718
    %v721 = vmul.f32 %v707, %v719
    %v722 = vmul.f32 %v708, %v720
    %v724 = vlaneseq
    %v725 = vshrl.u32 %v724, 7
    %v726 = vsub.s32 0, %v725
    %v727 = vrot.slane %v697, %v726
    %v729 = vmul.f32 %v721, %v727
    %v730 = vmul.f32 %v722, %v727
    %v732 = vlaneseq
    %v733 = vshrl.u32 %v732, 7
    %v734 = vsub.s32 0, %v733
    %v735 = vrot.slane %v699, %v734
    %v737 = vadd.f32 %v729, %v735
    %v738 = vadd.f32 %v730, %v735
    %v739 = vld [vmem:[%s6] sm:$0xff]
    %v740 = vld [vmem:[%s6 + $0x8] sm:$0xff]
    %v741 = vld [vmem:[%s6 + $0x10] sm:$0xff]
    %v742 = vld [vmem:[%s6 + $0x18] sm:$0xff]
    %v743 = vld [vmem:[%s6 + $0x20] sm:$0xff]
    %v744 = vld [vmem:[%s6 + $0x28] sm:$0xff]
    %v745 = vld [vmem:[%s6 + $0x30] sm:$0xff]
    %v746 = vld [vmem:[%s6 + $0x38] sm:$0xff]
    %v747 = vld [vmem:[%s6 + $0x40] sm:$0xff]
    %v748 = vld [vmem:[%s6 + $0x48] sm:$0xff]
    %v749 = vld [vmem:[%s6 + $0x50] sm:$0xff]
    %v750 = vld [vmem:[%s6 + $0x58] sm:$0xff]
    %v751 = vld [vmem:[%s6 + $0x60] sm:$0xff]
    %v752 = vld [vmem:[%s6 + $0x68] sm:$0xff]
    %v753 = vld [vmem:[%s6 + $0x70] sm:$0xff]
    %v754 = vld [vmem:[%s6 + $0x78] sm:$0xff]
    %s755 = scalar_lea.vmem %s11, 3
    %v756 = vld [vmem:[%s755] ss:$8 sm:$0x7]
    %v758 = vlaneseq
    %v759 = vshrl.u32 %v758, 7
    %v760 = vsub.s32 0, %v759
    %v761 = vrot.slane %v756, %v760
    %763 = vmatprep.subr.mxu0 0.0
    %764 = vmatpush1.msra.mxu0 %v739
    %765 = vmatprep.subr.mxu0 0.0
    %766 = vmatpush1.msra.mxu0 %v740
    %767 = vmatprep.subr.mxu0 0.0
    %768 = vmatpush1.msra.mxu0 %v741
    %769 = vmatprep.subr.mxu0 0.0
    %770 = vmatpush1.msra.mxu0 %v742
    %771 = vmatprep.subr.mxu0 0.0
    %772 = vmatpush1.msra.mxu0 %v743
    %773 = vmatprep.subr.mxu0 0.0
    %774 = vmatpush1.msra.mxu0 %v744
    %775 = vmatprep.subr.mxu0 0.0
    %776 = vmatpush1.msra.mxu0 %v745
    %777 = vmatprep.subr.mxu0 0.0
    %778 = vmatpush1.msra.mxu0 %v746
    %779 = vmatprep.subr.mxu0 0.0
    %780 = vmatpush1.msra.mxu0 %v747
    %781 = vmatprep.subr.mxu0 0.0
    %782 = vmatpush1.msra.mxu0 %v748
    %783 = vmatprep.subr.mxu0 0.0
    %784 = vmatpush1.msra.mxu0 %v749
    %785 = vmatprep.subr.mxu0 0.0
    %786 = vmatpush1.msra.mxu0 %v750
    %787 = vmatprep.subr.mxu0 0.0
    %788 = vmatpush1.msra.mxu0 %v751
    %789 = vmatprep.subr.mxu0 0.0
    %790 = vmatpush1.msra.mxu0 %v752
    %791 = vmatprep.subr.mxu0 0.0
    %792 = vmatpush1.msra.mxu0 %v753
    %793 = vmatprep.subr.mxu0 0.0
    %794 = vmatpush1.msra.mxu0 %v754
    %795 = vmatprep.subr.mxu0 0.0
    %796 = vmatpush1.msra.mxu0 0.0
    %797 = vmatprep.subr.mxu0 0.0
    %798 = vmatpush1.msra.mxu0 0.0
    %799 = vmatprep.subr.mxu0 0.0
    %800 = vmatpush1.msra.mxu0 0.0
    %801 = vmatprep.subr.mxu0 0.0
    %802 = vmatpush1.msra.mxu0 0.0
    %803 = vmatprep.subr.mxu0 0.0
    %804 = vmatpush1.msra.mxu0 0.0
    %805 = vmatprep.subr.mxu0 0.0
    %806 = vmatpush1.msra.mxu0 0.0
    %807 = vmatprep.subr.mxu0 0.0
    %808 = vmatpush1.msra.mxu0 0.0
    %809 = vmatprep.subr.mxu0 0.0
    %810 = vmatpush1.msra.mxu0 0.0
    %811 = vmatprep.subr.mxu0 0.0
    %812 = vmatpush1.msra.mxu0 0.0
    %813 = vmatprep.subr.mxu0 0.0
    %814 = vmatpush1.msra.mxu0 0.0
    %815 = vmatprep.subr.mxu0 0.0
    %816 = vmatpush1.msra.mxu0 0.0
    %817 = vmatprep.subr.mxu0 0.0
    %818 = vmatpush1.msra.mxu0 0.0
    %819 = vmatprep.subr.mxu0 0.0
    %820 = vmatpush1.msra.mxu0 0.0
    %821 = vmatprep.subr.mxu0 0.0
    %822 = vmatpush1.msra.mxu0 0.0
    %823 = vmatprep.subr.mxu0 0.0
    %824 = vmatpush1.msra.mxu0 0.0
    %825 = vmatprep.subr.mxu0 0.0
    %826 = vmatpush1.msra.mxu0 0.0
    %827 = vmatprep.mubr.f32.mxu0 0.0
    %828 = vmatmul.mubr.f32.gmra.mrb[0].mxu0 %v737
    %v829 = vpop.f32.mrb[0].mxu0
    %v830 = vadd.f32 %v761, %v829
    %v831 = vpop.f32.mrb[0].mxu0
    %832 = vmatprep.mubr.f32.mxu0 0.0
    %833 = vmatmul.mubr.f32.gmra.mrb[0].mxu0 %v738
    %v834 = vpop.f32.mrb[0].mxu0
    %v835 = vadd.f32 %v761, %v834
    %v836 = vpop.f32.mrb[0].mxu0
    %837 = vdwg.mxu0
    %v838 = vmax.f32 %v830, 0.0
    %v839 = vmax.f32 %v835, 0.0
    %v840 = vld [vmem:[%s7] sm:$0xff]
    %v841 = vld [vmem:[%s7 + $0x8] sm:$0xff]
    %v842 = vld [vmem:[%s7 + $0x10] sm:$0xff]
    %v843 = vld [vmem:[%s7 + $0x18] sm:$0xff]
    %v844 = vld [vmem:[%s7 + $0x20] sm:$0xff]
    %v845 = vld [vmem:[%s7 + $0x28] sm:$0xff]
    %v846 = vld [vmem:[%s7 + $0x30] sm:$0xff]
    %v847 = vld [vmem:[%s7 + $0x38] sm:$0xff]
    %s848 = scalar_lea.vmem %s11, 4
    %v849 = vld [vmem:[%s848] ss:$8 sm:$0x7]
    %v851 = vlaneseq
    %v852 = vshrl.u32 %v851, 7
    %v853 = vsub.s32 0, %v852
    %v854 = vrot.slane %v849, %v853
    %vm856 = vcmask 523264
    %v858 = vsel %vm856, %v838, 0
    %v861 = vsel %vm856, %v839, 0
    %863 = vmatprep.subr.mxu0 0.0
    %864 = vmatpush1.msra.mxu0 %v840
    %865 = vmatprep.subr.mxu0 0.0
    %866 = vmatpush1.msra.mxu0 %v841
    %867 = vmatprep.subr.mxu0 0.0
    %868 = vmatpush1.msra.mxu0 %v842
    %869 = vmatprep.subr.mxu0 0.0
    %870 = vmatpush1.msra.mxu0 %v843
    %871 = vmatprep.subr.mxu0 0.0
    %872 = vmatpush1.msra.mxu0 %v844
    %873 = vmatprep.subr.mxu0 0.0
    %874 = vmatpush1.msra.mxu0 %v845
    %875 = vmatprep.subr.mxu0 0.0
    %876 = vmatpush1.msra.mxu0 %v846
    %877 = vmatprep.subr.mxu0 0.0
    %878 = vmatpush1.msra.mxu0 %v847
    %879 = vmatprep.subr.mxu0 0.0
    %880 = vmatpush1.msra.mxu0 0.0
    %881 = vmatprep.subr.mxu0 0.0
    %882 = vmatpush1.msra.mxu0 0.0
    %883 = vmatprep.subr.mxu0 0.0
    %884 = vmatpush1.msra.mxu0 0.0
    %885 = vmatprep.subr.mxu0 0.0
    %886 = vmatpush1.msra.mxu0 0.0
    %887 = vmatprep.subr.mxu0 0.0
    %888 = vmatpush1.msra.mxu0 0.0
    %889 = vmatprep.subr.mxu0 0.0
    %890 = vmatpush1.msra.mxu0 0.0
    %891 = vmatprep.subr.mxu0 0.0
    %892 = vmatpush1.msra.mxu0 0.0
    %893 = vmatprep.subr.mxu0 0.0
    %894 = vmatpush1.msra.mxu0 0.0
    %895 = vmatprep.subr.mxu0 0.0
    %896 = vmatpush1.msra.mxu0 0.0
    %897 = vmatprep.subr.mxu0 0.0
    %898 = vmatpush1.msra.mxu0 0.0
    %899 = vmatprep.subr.mxu0 0.0
    %900 = vmatpush1.msra.mxu0 0.0
    %901 = vmatprep.subr.mxu0 0.0
    %902 = vmatpush1.msra.mxu0 0.0
    %903 = vmatprep.subr.mxu0 0.0
    %904 = vmatpush1.msra.mxu0 0.0
    %905 = vmatprep.subr.mxu0 0.0
    %906 = vmatpush1.msra.mxu0 0.0
    %907 = vmatprep.subr.mxu0 0.0
    %908 = vmatpush1.msra.mxu0 0.0
    %909 = vmatprep.subr.mxu0 0.0
    %910 = vmatpush1.msra.mxu0 0.0
    %911 = vmatprep.subr.mxu0 0.0
    %912 = vmatpush1.msra.mxu0 0.0
    %913 = vmatprep.subr.mxu0 0.0
    %914 = vmatpush1.msra.mxu0 0.0
    %915 = vmatprep.subr.mxu0 0.0
    %916 = vmatpush1.msra.mxu0 0.0
    %917 = vmatprep.subr.mxu0 0.0
    %918 = vmatpush1.msra.mxu0 0.0
    %919 = vmatprep.subr.mxu0 0.0
    %920 = vmatpush1.msra.mxu0 0.0
    %921 = vmatprep.subr.mxu0 0.0
    %922 = vmatpush1.msra.mxu0 0.0
    %923 = vmatprep.subr.mxu0 0.0
    %924 = vmatpush1.msra.mxu0 0.0
    %925 = vmatprep.subr.mxu0 0.0
    %926 = vmatpush1.msra.mxu0 0.0
    %927 = vmatprep.mubr.f32.mxu0 0.0
    %928 = vmatmul.mubr.f32.gmra.mrb[0].mxu0 %v858
    %v929 = vpop.f32.mrb[0].mxu0
    %v930 = vadd.f32 %v854, %v929
    %v931 = vpop.f32.mrb[0].mxu0
    %932 = vmatprep.mubr.f32.mxu0 0.0
    %933 = vmatmul.mubr.f32.gmra.mrb[0].mxu0 %v861
    %v934 = vpop.f32.mrb[0].mxu0
    %v935 = vadd.f32 %v854, %v934
    %v936 = vpop.f32.mrb[0].mxu0
    %937 = vdwg.mxu0
    %v938 = vadd.f32 %v737, %v930
    %v939 = vadd.f32 %v738, %v935
    %s940 = scalar_lea.vmem %s11, 7
    %v941 = vld [vmem:[%s940] ss:$8 sm:$0x7]
    %s942 = scalar_lea.vmem %s11, 24
    %v943 = vld [vmem:[%s942] ss:$8 sm:$0x7]
    %944 = vadd.xlane.f32.xlu0 %v938
    %v945 = vpop.xlane.xlu0 %944
    %946 = vadd.xlane.f32.xlu0 %v939
    %v947 = vpop.xlane.xlu0 %946
    %v948 = vmul.f32 %v945, %v704
    %v949 = vmul.f32 %v947, %v704
    %v950 = vsub.f32 %v938, %v948
    %v951 = vsub.f32 %v939, %v949
    %v952 = vmul.f32 %v950, %v950
    %v953 = vmul.f32 %v951, %v951
    %954 = vadd.xlane.f32.xlu0 %v952
    %v955 = vpop.xlane.xlu0 %954
    %956 = vadd.xlane.f32.xlu0 %v953
    %v957 = vpop.xlane.xlu0 %956
    %v958 = vmul.f32 %v955, %v704
    %v959 = vmul.f32 %v957, %v704
    %v960 = vadd.f32 %v958, 1e-05
    %v961 = vadd.f32 %v959, 1e-05
    %v962 = vrsqrt.pop %v960
    %v963 = vrsqrt.pop %v961
    %v964 = vmul.f32 %v950, %v962
    %v965 = vmul.f32 %v951, %v963
    %v967 = vlaneseq
    %v968 = vshrl.u32 %v967, 7
    %v969 = vsub.s32 0, %v968
    %v970 = vrot.slane %v941, %v969
    %v972 = vmul.f32 %v964, %v970
    %v973 = vmul.f32 %v965, %v970
    %v975 = vlaneseq
    %v976 = vshrl.u32 %v975, 7
    %v977 = vsub.s32 0, %v976
    %v978 = vrot.slane %v943, %v977
    %v980 = vadd.f32 %v972, %v978
    %v981 = vadd.f32 %v973, %v978
    %s982 = scalar_lea.vmem %s4, 384
    %v983 = vld [vmem:[%s982] sm:$0xff]
    %v984 = vld [vmem:[%s982 + $0x8] sm:$0xff]
    %v985 = vld [vmem:[%s982 + $0x10] sm:$0xff]
    %v986 = vld [vmem:[%s982 + $0x18] sm:$0xff]
    %v987 = vld [vmem:[%s982 + $0x20] sm:$0xff]
    %v988 = vld [vmem:[%s982 + $0x28] sm:$0xff]
    %v989 = vld [vmem:[%s982 + $0x30] sm:$0xff]
    %v990 = vld [vmem:[%s982 + $0x38] sm:$0xff]
    %v991 = vld [vmem:[%s982 + $0x40] sm:$0xff]
    %v992 = vld [vmem:[%s982 + $0x48] sm:$0xff]
    %v993 = vld [vmem:[%s982 + $0x50] sm:$0xff]
    %v994 = vld [vmem:[%s982 + $0x58] sm:$0xff]
    %v995 = vld [vmem:[%s982 + $0x60] sm:$0xff]
    %v996 = vld [vmem:[%s982 + $0x68] sm:$0xff]
    %v997 = vld [vmem:[%s982 + $0x70] sm:$0xff]
    %v998 = vld [vmem:[%s982 + $0x78] sm:$0xff]
    %v999 = vld [vmem:[%s982 + $0x80] sm:$0xff]
    %v1000 = vld [vmem:[%s982 + $0x88] sm:$0xff]
    %v1001 = vld [vmem:[%s982 + $0x90] sm:$0xff]
    %v1002 = vld [vmem:[%s982 + $0x98] sm:$0xff]
    %v1003 = vld [vmem:[%s982 + $0xa0] sm:$0xff]
    %v1004 = vld [vmem:[%s982 + $0xa8] sm:$0xff]
    %v1005 = vld [vmem:[%s982 + $0xb0] sm:$0xff]
    %v1006 = vld [vmem:[%s982 + $0xb8] sm:$0xff]
    %v1007 = vld [vmem:[%s982 + $0xc0] sm:$0xff]
    %v1008 = vld [vmem:[%s982 + $0xc8] sm:$0xff]
    %v1009 = vld [vmem:[%s982 + $0xd0] sm:$0xff]
    %v1010 = vld [vmem:[%s982 + $0xd8] sm:$0xff]
    %v1011 = vld [vmem:[%s982 + $0xe0] sm:$0xff]
    %v1012 = vld [vmem:[%s982 + $0xe8] sm:$0xff]
    %v1013 = vld [vmem:[%s982 + $0xf0] sm:$0xff]
    %v1014 = vld [vmem:[%s982 + $0xf8] sm:$0xff]
    %v1015 = vld [vmem:[%s982 + $0x100] sm:$0xff]
    %v1016 = vld [vmem:[%s982 + $0x108] sm:$0xff]
    %v1017 = vld [vmem:[%s982 + $0x110] sm:$0xff]
    %v1018 = vld [vmem:[%s982 + $0x118] sm:$0xff]
    %v1019 = vld [vmem:[%s982 + $0x120] sm:$0xff]
    %v1020 = vld [vmem:[%s982 + $0x128] sm:$0xff]
    %v1021 = vld [vmem:[%s982 + $0x130] sm:$0xff]
    %v1022 = vld [vmem:[%s982 + $0x138] sm:$0xff]
    %v1023 = vld [vmem:[%s982 + $0x140] sm:$0xff]
    %v1024 = vld [vmem:[%s982 + $0x148] sm:$0xff]
    %v1025 = vld [vmem:[%s982 + $0x150] sm:$0xff]
    %v1026 = vld [vmem:[%s982 + $0x158] sm:$0xff]
    %v1027 = vld [vmem:[%s982 + $0x160] sm:$0xff]
    %v1028 = vld [vmem:[%s982 + $0x168] sm:$0xff]
    %v1029 = vld [vmem:[%s982 + $0x170] sm:$0xff]
    %v1030 = vld [vmem:[%s982 + $0x178] sm:$0xff]
    %s1031 = scalar_lea.vmem %s11, 25
    %v1032 = vld [vmem:[%s1031] ss:$8 sm:$0x7]
    %v1034 = vlaneseq
    %v1035 = vshrl.u32 %v1034, 7
    %v1036 = vsub.s32 0, %v1035
    %v1037 = vrot.slane %v1032, %v1036
    %v1038 = vlaneseq
    %v1039 = vshrl.u32 %v1038, 7
    %v1040 = vsub.s32 1, %v1039
    %v1041 = vrot.slane %v1032, %v1040
    %v1042 = vlaneseq
    %v1043 = vshrl.u32 %v1042, 7
    %v1044 = vsub.s32 2, %v1043
    %v1045 = vrot.slane %v1032, %v1044
    %1049 = vmatprep.subr.mxu0 %v984
    %1050 = vmatpush1.msra.mxu0 %v983
    %1051 = vmatprep.subr.mxu0 %v987
    %1052 = vmatpush1.msra.mxu0 %v986
    %1053 = vmatprep.subr.mxu0 %v990
    %1054 = vmatpush1.msra.mxu0 %v989
    %1055 = vmatprep.subr.mxu0 %v993
    %1056 = vmatpush1.msra.mxu0 %v992
    %1057 = vmatprep.subr.mxu0 %v996
    %1058 = vmatpush1.msra.mxu0 %v995
    %1059 = vmatprep.subr.mxu0 %v999
    %1060 = vmatpush1.msra.mxu0 %v998
    %1061 = vmatprep.subr.mxu0 %v1002
    %1062 = vmatpush1.msra.mxu0 %v1001
    %1063 = vmatprep.subr.mxu0 %v1005
    %1064 = vmatpush1.msra.mxu0 %v1004
    %1065 = vmatprep.subr.mxu0 %v1008
    %1066 = vmatpush1.msra.mxu0 %v1007
    %1067 = vmatprep.subr.mxu0 %v1011
    %1068 = vmatpush1.msra.mxu0 %v1010
    %1069 = vmatprep.subr.mxu0 %v1014
    %1070 = vmatpush1.msra.mxu0 %v1013
    %1071 = vmatprep.subr.mxu0 %v1017
    %1072 = vmatpush1.msra.mxu0 %v1016
    %1073 = vmatprep.subr.mxu0 %v1020
    %1074 = vmatpush1.msra.mxu0 %v1019
    %1075 = vmatprep.subr.mxu0 %v1023
    %1076 = vmatpush1.msra.mxu0 %v1022
    %1077 = vmatprep.subr.mxu0 %v1026
    %1078 = vmatpush1.msra.mxu0 %v1025
    %1079 = vmatprep.subr.mxu0 %v1029
    %1080 = vmatpush1.msra.mxu0 %v1028
    %1081 = vmatprep.subr.mxu0 0.0
    %1082 = vmatpush1.msra.mxu0 0.0
    %1083 = vmatprep.subr.mxu0 0.0
    %1084 = vmatpush1.msra.mxu0 0.0
    %1085 = vmatprep.subr.mxu0 0.0
    %1086 = vmatpush1.msra.mxu0 0.0
    %1087 = vmatprep.subr.mxu0 0.0
    %1088 = vmatpush1.msra.mxu0 0.0
    %1089 = vmatprep.subr.mxu0 0.0
    %1090 = vmatpush1.msra.mxu0 0.0
    %1091 = vmatprep.subr.mxu0 0.0
    %1092 = vmatpush1.msra.mxu0 0.0
    %1093 = vmatprep.subr.mxu0 0.0
    %1094 = vmatpush1.msra.mxu0 0.0
    %1095 = vmatprep.subr.mxu0 0.0
    %1096 = vmatpush1.msra.mxu0 0.0
    %1097 = vmatprep.subr.mxu0 0.0
    %1098 = vmatpush1.msra.mxu0 0.0
    %1099 = vmatprep.subr.mxu0 0.0
    %1100 = vmatpush1.msra.mxu0 0.0
    %1101 = vmatprep.subr.mxu0 0.0
    %1102 = vmatpush1.msra.mxu0 0.0
    %1103 = vmatprep.subr.mxu0 0.0
    %1104 = vmatpush1.msra.mxu0 0.0
    %1105 = vmatprep.subr.mxu0 0.0
    %1106 = vmatpush1.msra.mxu0 0.0
    %1107 = vmatprep.subr.mxu0 0.0
    %1108 = vmatpush1.msra.mxu0 0.0
    %1109 = vmatprep.subr.mxu0 0.0
    %1110 = vmatpush1.msra.mxu0 0.0
    %1111 = vmatprep.subr.mxu0 0.0
    %1112 = vmatpush1.msra.mxu0 0.0
    %1113 = vmatprep.mubr.f32.mxu0 0.0
    %1114 = vmatmul.mubr.f32.gmra.mrb[0].mxu0 %v980
    %v1115 = vpop.f32.mrb[0].mxu0
    %v1116 = vadd.f32 %v1037, %v1115
    %v1117 = vpop.f32.mrb[0].mxu0
    %v1118 = vadd.f32 %v1041, %v1117
    %1119 = vmatprep.mubr.f32.mxu0 0.0
    %1120 = vmatmul.mubr.f32.gmra.mrb[0].mxu0 %v981
    %v1121 = vpop.f32.mrb[0].mxu0
    %v1122 = vadd.f32 %v1037, %v1121
    %v1123 = vpop.f32.mrb[0].mxu0
    %v1124 = vadd.f32 %v1041, %v1123
    %1125 = vdwg.mxu0
    %1126 = vmatprep.subr.mxu0 0.0
    %1127 = vmatpush1.msra.mxu0 %v985
    %1128 = vmatprep.subr.mxu0 0.0
    %1129 = vmatpush1.msra.mxu0 %v988
    %1130 = vmatprep.subr.mxu0 0.0
    %1131 = vmatpush1.msra.mxu0 %v991
    %1132 = vmatprep.subr.mxu0 0.0
    %1133 = vmatpush1.msra.mxu0 %v994
    %1134 = vmatprep.subr.mxu0 0.0
    %1135 = vmatpush1.msra.mxu0 %v997
    %1136 = vmatprep.subr.mxu0 0.0
    %1137 = vmatpush1.msra.mxu0 %v1000
    %1138 = vmatprep.subr.mxu0 0.0
    %1139 = vmatpush1.msra.mxu0 %v1003
    %1140 = vmatprep.subr.mxu0 0.0
    %1141 = vmatpush1.msra.mxu0 %v1006
    %1142 = vmatprep.subr.mxu0 0.0
    %1143 = vmatpush1.msra.mxu0 %v1009
    %1144 = vmatprep.subr.mxu0 0.0
    %1145 = vmatpush1.msra.mxu0 %v1012
    %1146 = vmatprep.subr.mxu0 0.0
    %1147 = vmatpush1.msra.mxu0 %v1015
    %1148 = vmatprep.subr.mxu0 0.0
    %1149 = vmatpush1.msra.mxu0 %v1018
    %1150 = vmatprep.subr.mxu0 0.0
    %1151 = vmatpush1.msra.mxu0 %v1021
    %1152 = vmatprep.subr.mxu0 0.0
    %1153 = vmatpush1.msra.mxu0 %v1024
    %1154 = vmatprep.subr.mxu0 0.0
    %1155 = vmatpush1.msra.mxu0 %v1027
    %1156 = vmatprep.subr.mxu0 0.0
    %1157 = vmatpush1.msra.mxu0 %v1030
    %1158 = vmatprep.subr.mxu0 0.0
    %1159 = vmatpush1.msra.mxu0 0.0
    %1160 = vmatprep.subr.mxu0 0.0
    %1161 = vmatpush1.msra.mxu0 0.0
    %1162 = vmatprep.subr.mxu0 0.0
    %1163 = vmatpush1.msra.mxu0 0.0
    %1164 = vmatprep.subr.mxu0 0.0
    %1165 = vmatpush1.msra.mxu0 0.0
    %1166 = vmatprep.subr.mxu0 0.0
    %1167 = vmatpush1.msra.mxu0 0.0
    %1168 = vmatprep.subr.mxu0 0.0
    %1169 = vmatpush1.msra.mxu0 0.0
    %1170 = vmatprep.subr.mxu0 0.0
    %1171 = vmatpush1.msra.mxu0 0.0
    %1172 = vmatprep.subr.mxu0 0.0
    %1173 = vmatpush1.msra.mxu0 0.0
    %1174 = vmatprep.subr.mxu0 0.0
    %1175 = vmatpush1.msra.mxu0 0.0
    %1176 = vmatprep.subr.mxu0 0.0
    %1177 = vmatpush1.msra.mxu0 0.0
    %1178 = vmatprep.subr.mxu0 0.0
    %1179 = vmatpush1.msra.mxu0 0.0
    %1180 = vmatprep.subr.mxu0 0.0
    %1181 = vmatpush1.msra.mxu0 0.0
    %1182 = vmatprep.subr.mxu0 0.0
    %1183 = vmatpush1.msra.mxu0 0.0
    %1184 = vmatprep.subr.mxu0 0.0
    %1185 = vmatpush1.msra.mxu0 0.0
    %1186 = vmatprep.subr.mxu0 0.0
    %1187 = vmatpush1.msra.mxu0 0.0
    %1188 = vmatprep.subr.mxu0 0.0
    %1189 = vmatpush1.msra.mxu0 0.0
    %1190 = vmatprep.mubr.f32.mxu0 0.0
    %1191 = vmatmul.mubr.f32.gmra.mrb[0].mxu0 %v980
    %v1192 = vpop.f32.mrb[0].mxu0
    %v1193 = vadd.f32 %v1045, %v1192
    %v1194 = vpop.f32.mrb[0].mxu0
    %1195 = vmatprep.mubr.f32.mxu0 0.0
    %1196 = vmatmul.mubr.f32.gmra.mrb[0].mxu0 %v981
    %v1197 = vpop.f32.mrb[0].mxu0
    %v1198 = vadd.f32 %v1045, %v1197
    %v1199 = vpop.f32.mrb[0].mxu0
    %1200 = vdwg.mxu0
    %v1201 = vmul.f32 %v1116, %v1118
    %v1202 = vmul.f32 %v1116, %v1124
    %v1203 = vmul.f32 %v1122, %v1118
    %v1204 = vmul.f32 %v1122, %v1124
    %1205 = vmatprep.subr.mxu0 0.0
    %1206 = vmatpush1.msra.mxu0 %v45
    %1207 = vmatprep.subr.mxu0 0.0
    %1208 = vmatpush1.msra.mxu0 %v46
    %1209 = vmatprep.subr.mxu0 0.0
    %1210 = vmatpush1.msra.mxu0 %v47
    %1211 = vmatprep.subr.mxu0 0.0
    %1212 = vmatpush1.msra.mxu0 %v48
    %1213 = vmatprep.subr.mxu0 0.0
    %1214 = vmatpush1.msra.mxu0 %v49
    %1215 = vmatprep.subr.mxu0 0.0
    %1216 = vmatpush1.msra.mxu0 %v50
    %1217 = vmatprep.subr.mxu0 0.0
    %1218 = vmatpush1.msra.mxu0 %v51
    %1219 = vmatprep.subr.mxu0 0.0
    %1220 = vmatpush1.msra.mxu0 %v52
    %1221 = vmatprep.subr.mxu0 0.0
    %1222 = vmatpush1.msra.mxu0 %v53
    %1223 = vmatprep.subr.mxu0 0.0
    %1224 = vmatpush1.msra.mxu0 %v54
    %1225 = vmatprep.subr.mxu0 0.0
    %1226 = vmatpush1.msra.mxu0 %v55
    %1227 = vmatprep.subr.mxu0 0.0
    %1228 = vmatpush1.msra.mxu0 %v56
    %1229 = vmatprep.subr.mxu0 0.0
    %1230 = vmatpush1.msra.mxu0 %v57
    %1231 = vmatprep.subr.mxu0 0.0
    %1232 = vmatpush1.msra.mxu0 %v58
    %1233 = vmatprep.subr.mxu0 0.0
    %1234 = vmatpush1.msra.mxu0 %v59
    %1235 = vmatprep.subr.mxu0 0.0
    %1236 = vmatpush1.msra.mxu0 %v60
    %1237 = vmatprep.subr.mxu0 0.0
    %1238 = vmatpush1.msra.mxu0 0.0
    %1239 = vmatprep.subr.mxu0 0.0
    %1240 = vmatpush1.msra.mxu0 0.0
    %1241 = vmatprep.subr.mxu0 0.0
    %1242 = vmatpush1.msra.mxu0 0.0
    %1243 = vmatprep.subr.mxu0 0.0
    %1244 = vmatpush1.msra.mxu0 0.0
    %1245 = vmatprep.subr.mxu0 0.0
    %1246 = vmatpush1.msra.mxu0 0.0
    %1247 = vmatprep.subr.mxu0 0.0
    %1248 = vmatpush1.msra.mxu0 0.0
    %1249 = vmatprep.subr.mxu0 0.0
    %1250 = vmatpush1.msra.mxu0 0.0
    %1251 = vmatprep.subr.mxu0 0.0
    %1252 = vmatpush1.msra.mxu0 0.0
    %1253 = vmatprep.subr.mxu0 0.0
    %1254 = vmatpush1.msra.mxu0 0.0
    %1255 = vmatprep.subr.mxu0 0.0
    %1256 = vmatpush1.msra.mxu0 0.0
    %1257 = vmatprep.subr.mxu0 0.0
    %1258 = vmatpush1.msra.mxu0 0.0
    %1259 = vmatprep.subr.mxu0 0.0
    %1260 = vmatpush1.msra.mxu0 0.0
    %1261 = vmatprep.subr.mxu0 0.0
    %1262 = vmatpush1.msra.mxu0 0.0
    %1263 = vmatprep.subr.mxu0 0.0
    %1264 = vmatpush1.msra.mxu0 0.0
    %1265 = vmatprep.subr.mxu0 0.0
    %1266 = vmatpush1.msra.mxu0 0.0
    %1267 = vmatprep.subr.mxu0 0.0
    %1268 = vmatpush1.msra.mxu0 0.0
    %1269 = vmatprep.mubr.f32.mxu0 0.0
    %1270 = vmatmul.mubr.f32.gmra.mrb[0].mxu0 %v1201
    %v1271 = vpop.f32.mrb[0].mxu0
    %v1272 = vadd.f32 0.0, %v1271
    %v1273 = vpop.f32.mrb[0].mxu0
    %1274 = vmatprep.mubr.f32.mxu0 0.0
    %1275 = vmatmul.mubr.f32.gmra.mrb[0].mxu0 %v1202
    %v1276 = vpop.f32.mrb[0].mxu0
    %v1277 = vadd.f32 0.0, %v1276
    %v1278 = vpop.f32.mrb[0].mxu0
    %1279 = vmatprep.mubr.f32.mxu0 0.0
    %1280 = vmatmul.mubr.f32.gmra.mrb[0].mxu0 %v1203
    %v1281 = vpop.f32.mrb[0].mxu0
    %v1282 = vadd.f32 0.0, %v1281
    %v1283 = vpop.f32.mrb[0].mxu0
    %1284 = vmatprep.mubr.f32.mxu0 0.0
    %1285 = vmatmul.mubr.f32.gmra.mrb[0].mxu0 %v1204
    %v1286 = vpop.f32.mrb[0].mxu0
    %v1287 = vadd.f32 0.0, %v1286
    %v1288 = vpop.f32.mrb[0].mxu0
    %1289 = vdwg.mxu0
    %v1290 = vmax.f32 %v1272, %v1277
    %v1291 = vsub.f32 %v1272, %v1290
    %v1292 = vmul.f32 %v1291, 1.442695
    %v1293 = vpow.pop %v1292
    %v1294 = vsub.f32 %v1277, %v1290
    %v1295 = vmul.f32 %v1294, 1.442695
    %v1296 = vpow.pop %v1295
    %v1297 = vadd.f32 %v1293, %v1296
    %v1298 = vrcp.pop %v1297
    %v1299 = vmul.f32 1.0, %v1298
    %v1300 = vmul.f32 %v1293, %v1299
    %v1301 = vmul.f32 %v1296, %v1299
    %v1302 = vmax.f32 %v1282, %v1287
    %v1303 = vsub.f32 %v1282, %v1302
    %v1304 = vmul.f32 %v1303, 1.442695
    %v1305 = vpow.pop %v1304
    %v1306 = vsub.f32 %v1287, %v1302
    %v1307 = vmul.f32 %v1306, 1.442695
    %v1308 = vpow.pop %v1307
    %v1309 = vadd.f32 %v1305, %v1308
    %v1310 = vrcp.pop %v1309
    %v1311 = vmul.f32 1.0, %v1310
    %v1312 = vmul.f32 %v1305, %v1311
    %v1313 = vmul.f32 %v1308, %v1311
    %v1315 = vsel %vm487, %v1300, 0
    %v1318 = vsel %vm487, %v1301, 0
    %v1321 = vsel %vm487, %v1312, 0
    %v1324 = vsel %vm487, %v1313, 0
    %1326 = vmatprep.subr.mxu0 0.0
    %1327 = vmatpush1.msra.mxu0 %v502
    %1328 = vmatprep.subr.mxu0 0.0
    %1329 = vmatpush1.msra.mxu0 0.0
    %1330 = vmatprep.subr.mxu0 0.0
    %1331 = vmatpush1.msra.mxu0 0.0
    %1332 = vmatprep.subr.mxu0 0.0
    %1333 = vmatpush1.msra.mxu0 0.0
    %1334 = vmatprep.subr.mxu0 0.0
    %1335 = vmatpush1.msra.mxu0 0.0
    %1336 = vmatprep.subr.mxu0 0.0
    %1337 = vmatpush1.msra.mxu0 0.0
    %1338 = vmatprep.subr.mxu0 0.0
    %1339 = vmatpush1.msra.mxu0 0.0
    %1340 = vmatprep.subr.mxu0 0.0
    %1341 = vmatpush1.msra.mxu0 0.0
    %1342 = vmatprep.subr.mxu0 0.0
    %1343 = vmatpush1.msra.mxu0 0.0
    %1344 = vmatprep.subr.mxu0 0.0
    %1345 = vmatpush1.msra.mxu0 0.0
    %1346 = vmatprep.subr.mxu0 0.0
    %1347 = vmatpush1.msra.mxu0 0.0
    %1348 = vmatprep.subr.mxu0 0.0
    %1349 = vmatpush1.msra.mxu0 0.0
    %1350 = vmatprep.subr.mxu0 0.0
    %1351 = vmatpush1.msra.mxu0 0.0
    %1352 = vmatprep.subr.mxu0 0.0
    %1353 = vmatpush1.msra.mxu0 0.0
    %1354 = vmatprep.subr.mxu0 0.0
    %1355 = vmatpush1.msra.mxu0 0.0
    %1356 = vmatprep.subr.mxu0 0.0
    %1357 = vmatpush1.msra.mxu0 0.0
    %1358 = vmatprep.subr.mxu0 0.0
    %1359 = vmatpush1.msra.mxu0 0.0
    %1360 = vmatprep.subr.mxu0 0.0
    %1361 = vmatpush1.msra.mxu0 0.0
    %1362 = vmatprep.subr.mxu0 0.0
    %1363 = vmatpush1.msra.mxu0 0.0
    %1364 = vmatprep.subr.mxu0 0.0
    %1365 = vmatpush1.msra.mxu0 0.0
    %1366 = vmatprep.subr.mxu0 0.0
    %1367 = vmatpush1.msra.mxu0 0.0
    %1368 = vmatprep.subr.mxu0 0.0
    %1369 = vmatpush1.msra.mxu0 0.0
    %1370 = vmatprep.subr.mxu0 0.0
    %1371 = vmatpush1.msra.mxu0 0.0
    %1372 = vmatprep.subr.mxu0 0.0
    %1373 = vmatpush1.msra.mxu0 0.0
    %1374 = vmatprep.subr.mxu0 0.0
    %1375 = vmatpush1.msra.mxu0 0.0
    %1376 = vmatprep.subr.mxu0 0.0
    %1377 = vmatpush1.msra.mxu0 0.0
    %1378 = vmatprep.subr.mxu0 0.0
    %1379 = vmatpush1.msra.mxu0 0.0
    %1380 = vmatprep.subr.mxu0 0.0
    %1381 = vmatpush1.msra.mxu0 0.0
    %1382 = vmatprep.subr.mxu0 0.0
    %1383 = vmatpush1.msra.mxu0 0.0
    %1384 = vmatprep.subr.mxu0 0.0
    %1385 = vmatpush1.msra.mxu0 0.0
    %1386 = vmatprep.subr.mxu0 0.0
    %1387 = vmatpush1.msra.mxu0 0.0
    %1388 = vmatprep.subr.mxu0 0.0
    %1389 = vmatpush1.msra.mxu0 0.0
    %1390 = vmatprep.mubr.f32.mxu0 0.0
    %1391 = vmatmul.mubr.f32.gmra.mrb[0].mxu0 %v1315
    %v1392 = vpop.f32.mrb[0].mxu0
    %v1393 = vadd.f32 0.0, %v1392
    %v1394 = vpop.f32.mrb[0].mxu0
    %1395 = vmatprep.mubr.f32.mxu0 0.0
    %1396 = vmatmul.mubr.f32.gmra.mrb[0].mxu0 %v1318
    %v1397 = vpop.f32.mrb[0].mxu0
    %v1398 = vadd.f32 0.0, %v1397
    %v1399 = vpop.f32.mrb[0].mxu0
    %1400 = vmatprep.mubr.f32.mxu0 0.0
    %1401 = vmatmul.mubr.f32.gmra.mrb[0].mxu0 %v1321
    %v1402 = vpop.f32.mrb[0].mxu0
    %v1403 = vadd.f32 0.0, %v1402
    %v1404 = vpop.f32.mrb[0].mxu0
    %1405 = vmatprep.mubr.f32.mxu0 0.0
    %1406 = vmatmul.mubr.f32.gmra.mrb[0].mxu0 %v1324
    %v1407 = vpop.f32.mrb[0].mxu0
    %v1408 = vadd.f32 0.0, %v1407
    %v1409 = vpop.f32.mrb[0].mxu0
    %1410 = vdwg.mxu0
    %v1411 = vmul.f32 %v1393, %v1193
    %v1412 = vmul.f32 %v1398, %v1198
    %v1413 = vmul.f32 %v1403, %v1193
    %v1414 = vmul.f32 %v1408, %v1198
    %v1415 = vadd.f32 %v1411, %v1412
    %v1416 = vadd.f32 %v1413, %v1414
    %s1417 = scalar_lea.vmem %s8, 128
    %v1418 = vld [vmem:[%s1417] sm:$0xff]
    %v1419 = vld [vmem:[%s1417 + $0x8] sm:$0xff]
    %v1420 = vld [vmem:[%s1417 + $0x10] sm:$0xff]
    %v1421 = vld [vmem:[%s1417 + $0x18] sm:$0xff]
    %v1422 = vld [vmem:[%s1417 + $0x20] sm:$0xff]
    %v1423 = vld [vmem:[%s1417 + $0x28] sm:$0xff]
    %v1424 = vld [vmem:[%s1417 + $0x30] sm:$0xff]
    %v1425 = vld [vmem:[%s1417 + $0x38] sm:$0xff]
    %v1426 = vld [vmem:[%s1417 + $0x40] sm:$0xff]
    %v1427 = vld [vmem:[%s1417 + $0x48] sm:$0xff]
    %v1428 = vld [vmem:[%s1417 + $0x50] sm:$0xff]
    %v1429 = vld [vmem:[%s1417 + $0x58] sm:$0xff]
    %v1430 = vld [vmem:[%s1417 + $0x60] sm:$0xff]
    %v1431 = vld [vmem:[%s1417 + $0x68] sm:$0xff]
    %v1432 = vld [vmem:[%s1417 + $0x70] sm:$0xff]
    %v1433 = vld [vmem:[%s1417 + $0x78] sm:$0xff]
    %s1434 = scalar_lea.vmem %s11, 26
    %v1435 = vld [vmem:[%s1434] ss:$8 sm:$0x7]
    %v1437 = vlaneseq
    %v1438 = vshrl.u32 %v1437, 7
    %v1439 = vsub.s32 0, %v1438
    %v1440 = vrot.slane %v1435, %v1439
    %1442 = vmatprep.subr.mxu0 0.0
    %1443 = vmatpush1.msra.mxu0 %v1418
    %1444 = vmatprep.subr.mxu0 0.0
    %1445 = vmatpush1.msra.mxu0 %v1419
    %1446 = vmatprep.subr.mxu0 0.0
    %1447 = vmatpush1.msra.mxu0 %v1420
    %1448 = vmatprep.subr.mxu0 0.0
    %1449 = vmatpush1.msra.mxu0 %v1421
    %1450 = vmatprep.subr.mxu0 0.0
    %1451 = vmatpush1.msra.mxu0 %v1422
    %1452 = vmatprep.subr.mxu0 0.0
    %1453 = vmatpush1.msra.mxu0 %v1423
    %1454 = vmatprep.subr.mxu0 0.0
    %1455 = vmatpush1.msra.mxu0 %v1424
    %1456 = vmatprep.subr.mxu0 0.0
    %1457 = vmatpush1.msra.mxu0 %v1425
    %1458 = vmatprep.subr.mxu0 0.0
    %1459 = vmatpush1.msra.mxu0 %v1426
    %1460 = vmatprep.subr.mxu0 0.0
    %1461 = vmatpush1.msra.mxu0 %v1427
    %1462 = vmatprep.subr.mxu0 0.0
    %1463 = vmatpush1.msra.mxu0 %v1428
    %1464 = vmatprep.subr.mxu0 0.0
    %1465 = vmatpush1.msra.mxu0 %v1429
    %1466 = vmatprep.subr.mxu0 0.0
    %1467 = vmatpush1.msra.mxu0 %v1430
    %1468 = vmatprep.subr.mxu0 0.0
    %1469 = vmatpush1.msra.mxu0 %v1431
    %1470 = vmatprep.subr.mxu0 0.0
    %1471 = vmatpush1.msra.mxu0 %v1432
    %1472 = vmatprep.subr.mxu0 0.0
    %1473 = vmatpush1.msra.mxu0 %v1433
    %1474 = vmatprep.subr.mxu0 0.0
    %1475 = vmatpush1.msra.mxu0 0.0
    %1476 = vmatprep.subr.mxu0 0.0
    %1477 = vmatpush1.msra.mxu0 0.0
    %1478 = vmatprep.subr.mxu0 0.0
    %1479 = vmatpush1.msra.mxu0 0.0
    %1480 = vmatprep.subr.mxu0 0.0
    %1481 = vmatpush1.msra.mxu0 0.0
    %1482 = vmatprep.subr.mxu0 0.0
    %1483 = vmatpush1.msra.mxu0 0.0
    %1484 = vmatprep.subr.mxu0 0.0
    %1485 = vmatpush1.msra.mxu0 0.0
    %1486 = vmatprep.subr.mxu0 0.0
    %1487 = vmatpush1.msra.mxu0 0.0
    %1488 = vmatprep.subr.mxu0 0.0
    %1489 = vmatpush1.msra.mxu0 0.0
    %1490 = vmatprep.subr.mxu0 0.0
    %1491 = vmatpush1.msra.mxu0 0.0
    %1492 = vmatprep.subr.mxu0 0.0
    %1493 = vmatpush1.msra.mxu0 0.0
    %1494 = vmatprep.subr.mxu0 0.0
    %1495 = vmatpush1.msra.mxu0 0.0
    %1496 = vmatprep.subr.mxu0 0.0
    %1497 = vmatpush1.msra.mxu0 0.0
    %1498 = vmatprep.subr.mxu0 0.0
    %1499 = vmatpush1.msra.mxu0 0.0
    %1500 = vmatprep.subr.mxu0 0.0
    %1501 = vmatpush1.msra.mxu0 0.0
    %1502 = vmatprep.subr.mxu0 0.0
    %1503 = vmatpush1.msra.mxu0 0.0
    %1504 = vmatprep.subr.mxu0 0.0
    %1505 = vmatpush1.msra.mxu0 0.0
    %1506 = vmatprep.mubr.f32.mxu0 0.0
    %1507 = vmatmul.mubr.f32.gmra.mrb[0].mxu0 %v1415
    %v1508 = vpop.f32.mrb[0].mxu0
    %v1509 = vadd.f32 %v1440, %v1508
    %v1510 = vpop.f32.mrb[0].mxu0
    %1511 = vmatprep.mubr.f32.mxu0 0.0
    %1512 = vmatmul.mubr.f32.gmra.mrb[0].mxu0 %v1416
    %v1513 = vpop.f32.mrb[0].mxu0
    %v1514 = vadd.f32 %v1440, %v1513
    %v1515 = vpop.f32.mrb[0].mxu0
    %1516 = vdwg.mxu0
    %v1517 = vadd.f32 %v980, %v1509
    %v1518 = vadd.f32 %v981, %v1514
    %s1519 = scalar_lea.vmem %s11, 29
    %v1520 = vld [vmem:[%s1519] ss:$8 sm:$0x7]
    %s1521 = scalar_lea.vmem %s11, 30
    %v1522 = vld [vmem:[%s1521] ss:$8 sm:$0x7]
    %1523 = vadd.xlane.f32.xlu0 %v1517
    %v1524 = vpop.xlane.xlu0 %1523
    %1525 = vadd.xlane.f32.xlu0 %v1518
    %v1526 = vpop.xlane.xlu0 %1525
    %v1527 = vmul.f32 %v1524, %v704
    %v1528 = vmul.f32 %v1526, %v704
    %v1529 = vsub.f32 %v1517, %v1527
    %v1530 = vsub.f32 %v1518, %v1528
    %v1531 = vmul.f32 %v1529, %v1529
    %v1532 = vmul.f32 %v1530, %v1530
    %1533 = vadd.xlane.f32.xlu0 %v1531
    %v1534 = vpop.xlane.xlu0 %1533
    %1535 = vadd.xlane.f32.xlu0 %v1532
    %v1536 = vpop.xlane.xlu0 %1535
    %v1537 = vmul.f32 %v1534, %v704
    %v1538 = vmul.f32 %v1536, %v704
    %v1539 = vadd.f32 %v1537, 1e-05
    %v1540 = vadd.f32 %v1538, 1e-05
    %v1541 = vrsqrt.pop %v1539
    %v1542 = vrsqrt.pop %v1540
    %v1543 = vmul.f32 %v1529, %v1541
    %v1544 = vmul.f32 %v1530, %v1542
    %v1546 = vlaneseq
    %v1547 = vshrl.u32 %v1546, 7
    %v1548 = vsub.s32 0, %v1547
    %v1549 = vrot.slane %v1520, %v1548
    %v1551 = vmul.f32 %v1543, %v1549
    %v1552 = vmul.f32 %v1544, %v1549
    %v1554 = vlaneseq
    %v1555 = vshrl.u32 %v1554, 7
    %v1556 = vsub.s32 0, %v1555
    %v1557 = vrot.slane %v1522, %v1556
    %v1559 = vadd.f32 %v1551, %v1557
    %v1560 = vadd.f32 %v1552, %v1557
    %s1561 = scalar_lea.vmem %s6, 128
    %v1562 = vld [vmem:[%s1561] sm:$0xff]
    %v1563 = vld [vmem:[%s1561 + $0x8] sm:$0xff]
    %v1564 = vld [vmem:[%s1561 + $0x10] sm:$0xff]
    %v1565 = vld [vmem:[%s1561 + $0x18] sm:$0xff]
    %v1566 = vld [vmem:[%s1561 + $0x20] sm:$0xff]
    %v1567 = vld [vmem:[%s1561 + $0x28] sm:$0xff]
    %v1568 = vld [vmem:[%s1561 + $0x30] sm:$0xff]
    %v1569 = vld [vmem:[%s1561 + $0x38] sm:$0xff]
    %v1570 = vld [vmem:[%s1561 + $0x40] sm:$0xff]
    %v1571 = vld [vmem:[%s1561 + $0x48] sm:$0xff]
    %v1572 = vld [vmem:[%s1561 + $0x50] sm:$0xff]
    %v1573 = vld [vmem:[%s1561 + $0x58] sm:$0xff]
    %v1574 = vld [vmem:[%s1561 + $0x60] sm:$0xff]
    %v1575 = vld [vmem:[%s1561 + $0x68] sm:$0xff]
    %v1576 = vld [vmem:[%s1561 + $0x70] sm:$0xff]
    %v1577 = vld [vmem:[%s1561 + $0x78] sm:$0xff]
    %s1578 = scalar_lea.vmem %s11, 27
    %v1579 = vld [vmem:[%s1578] ss:$8 sm:$0x7]
    %v1581 = vlaneseq
    %v1582 = vshrl.u32 %v1581, 7
    %v1583 = vsub.s32 0, %v1582
    %v1584 = vrot.slane %v1579, %v1583
    %1586 = vmatprep.subr.mxu0 0.0
    %1587 = vmatpush1.msra.mxu0 %v1562
    %1588 = vmatprep.subr.mxu0 0.0
    %1589 = vmatpush1.msra.mxu0 %v1563
    %1590 = vmatprep.subr.mxu0 0.0
    %1591 = vmatpush1.msra.mxu0 %v1564
    %1592 = vmatprep.subr.mxu0 0.0
    %1593 = vmatpush1.msra.mxu0 %v1565
    %1594 = vmatprep.subr.mxu0 0.0
    %1595 = vmatpush1.msra.mxu0 %v1566
    %1596 = vmatprep.subr.mxu0 0.0
    %1597 = vmatpush1.msra.mxu0 %v1567
    %1598 = vmatprep.subr.mxu0 0.0
    %1599 = vmatpush1.msra.mxu0 %v1568
    %1600 = vmatprep.subr.mxu0 0.0
    %1601 = vmatpush1.msra.mxu0 %v1569
    %1602 = vmatprep.subr.mxu0 0.0
    %1603 = vmatpush1.msra.mxu0 %v1570
    %1604 = vmatprep.subr.mxu0 0.0
    %1605 = vmatpush1.msra.mxu0 %v1571
    %1606 = vmatprep.subr.mxu0 0.0
    %1607 = vmatpush1.msra.mxu0 %v1572
    %1608 = vmatprep.subr.mxu0 0.0
    %1609 = vmatpush1.msra.mxu0 %v1573
    %1610 = vmatprep.subr.mxu0 0.0
    %1611 = vmatpush1.msra.mxu0 %v1574
    %1612 = vmatprep.subr.mxu0 0.0
    %1613 = vmatpush1.msra.mxu0 %v1575
    %1614 = vmatprep.subr.mxu0 0.0
    %1615 = vmatpush1.msra.mxu0 %v1576
    %1616 = vmatprep.subr.mxu0 0.0
    %1617 = vmatpush1.msra.mxu0 %v1577
    %1618 = vmatprep.subr.mxu0 0.0
    %1619 = vmatpush1.msra.mxu0 0.0
    %1620 = vmatprep.subr.mxu0 0.0
    %1621 = vmatpush1.msra.mxu0 0.0
    %1622 = vmatprep.subr.mxu0 0.0
    %1623 = vmatpush1.msra.mxu0 0.0
    %1624 = vmatprep.subr.mxu0 0.0
    %1625 = vmatpush1.msra.mxu0 0.0
    %1626 = vmatprep.subr.mxu0 0.0
    %1627 = vmatpush1.msra.mxu0 0.0
    %1628 = vmatprep.subr.mxu0 0.0
    %1629 = vmatpush1.msra.mxu0 0.0
    %1630 = vmatprep.subr.mxu0 0.0
    %1631 = vmatpush1.msra.mxu0 0.0
    %1632 = vmatprep.subr.mxu0 0.0
    %1633 = vmatpush1.msra.mxu0 0.0
    %1634 = vmatprep.subr.mxu0 0.0
    %1635 = vmatpush1.msra.mxu0 0.0
    %1636 = vmatprep.subr.mxu0 0.0
    %1637 = vmatpush1.msra.mxu0 0.0
    %1638 = vmatprep.subr.mxu0 0.0
    %1639 = vmatpush1.msra.mxu0 0.0
    %1640 = vmatprep.subr.mxu0 0.0
    %1641 = vmatpush1.msra.mxu0 0.0
    %1642 = vmatprep.subr.mxu0 0.0
    %1643 = vmatpush1.msra.mxu0 0.0
    %1644 = vmatprep.subr.mxu0 0.0
    %1645 = vmatpush1.msra.mxu0 0.0
    %1646 = vmatprep.subr.mxu0 0.0
    %1647 = vmatpush1.msra.mxu0 0.0
    %1648 = vmatprep.subr.mxu0 0.0
    %1649 = vmatpush1.msra.mxu0 0.0
    %1650 = vmatprep.mubr.f32.mxu0 0.0
    %1651 = vmatmul.mubr.f32.gmra.mrb[0].mxu0 %v1559
    %v1652 = vpop.f32.mrb[0].mxu0
    %v1653 = vadd.f32 %v1584, %v1652
    %v1654 = vpop.f32.mrb[0].mxu0
    %1655 = vmatprep.mubr.f32.mxu0 0.0
    %1656 = vmatmul.mubr.f32.gmra.mrb[0].mxu0 %v1560
    %v1657 = vpop.f32.mrb[0].mxu0
    %v1658 = vadd.f32 %v1584, %v1657
    %v1659 = vpop.f32.mrb[0].mxu0
    %1660 = vdwg.mxu0
    %v1661 = vmax.f32 %v1653, 0.0
    %v1662 = vmax.f32 %v1658, 0.0
    %s1663 = scalar_lea.vmem %s7, 64
    %v1664 = vld [vmem:[%s1663] sm:$0xff]
    %v1665 = vld [vmem:[%s1663 + $0x8] sm:$0xff]
    %v1666 = vld [vmem:[%s1663 + $0x10] sm:$0xff]
    %v1667 = vld [vmem:[%s1663 + $0x18] sm:$0xff]
    %v1668 = vld [vmem:[%s1663 + $0x20] sm:$0xff]
    %v1669 = vld [vmem:[%s1663 + $0x28] sm:$0xff]
    %v1670 = vld [vmem:[%s1663 + $0x30] sm:$0xff]
    %v1671 = vld [vmem:[%s1663 + $0x38] sm:$0xff]
    %s1672 = scalar_lea.vmem %s11, 28
    %v1673 = vld [vmem:[%s1672] ss:$8 sm:$0x7]
    %v1675 = vlaneseq
    %v1676 = vshrl.u32 %v1675, 7
    %v1677 = vsub.s32 0, %v1676
    %v1678 = vrot.slane %v1673, %v1677
    %v1681 = vsel %vm856, %v1661, 0
    %v1684 = vsel %vm856, %v1662, 0
    %1686 = vmatprep.subr.mxu0 0.0
    %1687 = vmatpush1.msra.mxu0 %v1664
    %1688 = vmatprep.subr.mxu0 0.0
    %1689 = vmatpush1.msra.mxu0 %v1665
    %1690 = vmatprep.subr.mxu0 0.0
    %1691 = vmatpush1.msra.mxu0 %v1666
    %1692 = vmatprep.subr.mxu0 0.0
    %1693 = vmatpush1.msra.mxu0 %v1667
    %1694 = vmatprep.subr.mxu0 0.0
    %1695 = vmatpush1.msra.mxu0 %v1668
    %1696 = vmatprep.subr.mxu0 0.0
    %1697 = vmatpush1.msra.mxu0 %v1669
    %1698 = vmatprep.subr.mxu0 0.0
    %1699 = vmatpush1.msra.mxu0 %v1670
    %1700 = vmatprep.subr.mxu0 0.0
    %1701 = vmatpush1.msra.mxu0 %v1671
    %1702 = vmatprep.subr.mxu0 0.0
    %1703 = vmatpush1.msra.mxu0 0.0
    %1704 = vmatprep.subr.mxu0 0.0
    %1705 = vmatpush1.msra.mxu0 0.0
    %1706 = vmatprep.subr.mxu0 0.0
    %1707 = vmatpush1.msra.mxu0 0.0
    %1708 = vmatprep.subr.mxu0 0.0
    %1709 = vmatpush1.msra.mxu0 0.0
    %1710 = vmatprep.subr.mxu0 0.0
    %1711 = vmatpush1.msra.mxu0 0.0
    %1712 = vmatprep.subr.mxu0 0.0
    %1713 = vmatpush1.msra.mxu0 0.0
    %1714 = vmatprep.subr.mxu0 0.0
    %1715 = vmatpush1.msra.mxu0 0.0
    %1716 = vmatprep.subr.mxu0 0.0
    %1717 = vmatpush1.msra.mxu0 0.0
    %1718 = vmatprep.subr.mxu0 0.0
    %1719 = vmatpush1.msra.mxu0 0.0
    %1720 = vmatprep.subr.mxu0 0.0
    %1721 = vmatpush1.msra.mxu0 0.0
    %1722 = vmatprep.subr.mxu0 0.0
    %1723 = vmatpush1.msra.mxu0 0.0
    %1724 = vmatprep.subr.mxu0 0.0
    %1725 = vmatpush1.msra.mxu0 0.0
    %1726 = vmatprep.subr.mxu0 0.0
    %1727 = vmatpush1.msra.mxu0 0.0
    %1728 = vmatprep.subr.mxu0 0.0
    %1729 = vmatpush1.msra.mxu0 0.0
    %1730 = vmatprep.subr.mxu0 0.0
    %1731 = vmatpush1.msra.mxu0 0.0
    %1732 = vmatprep.subr.mxu0 0.0
    %1733 = vmatpush1.msra.mxu0 0.0
    %1734 = vmatprep.subr.mxu0 0.0
    %1735 = vmatpush1.msra.mxu0 0.0
    %1736 = vmatprep.subr.mxu0 0.0
    %1737 = vmatpush1.msra.mxu0 0.0
    %1738 = vmatprep.subr.mxu0 0.0
    %1739 = vmatpush1.msra.mxu0 0.0
    %1740 = vmatprep.subr.mxu0 0.0
    %1741 = vmatpush1.msra.mxu0 0.0
    %1742 = vmatprep.subr.mxu0 0.0
    %1743 = vmatpush1.msra.mxu0 0.0
    %1744 = vmatprep.subr.mxu0 0.0
    %1745 = vmatpush1.msra.mxu0 0.0
    %1746 = vmatprep.subr.mxu0 0.0
    %1747 = vmatpush1.msra.mxu0 0.0
    %1748 = vmatprep.subr.mxu0 0.0
    %1749 = vmatpush1.msra.mxu0 0.0
    %1750 = vmatprep.mubr.f32.mxu0 0.0
    %1751 = vmatmul.mubr.f32.gmra.mrb[0].mxu0 %v1681
    %v1752 = vpop.f32.mrb[0].mxu0
    %v1753 = vadd.f32 %v1678, %v1752
    %v1754 = vpop.f32.mrb[0].mxu0
    %1755 = vmatprep.mubr.f32.mxu0 0.0
    %1756 = vmatmul.mubr.f32.gmra.mrb[0].mxu0 %v1684
    %v1757 = vpop.f32.mrb[0].mxu0
    %v1758 = vadd.f32 %v1678, %v1757
    %v1759 = vpop.f32.mrb[0].mxu0
    %1760 = vdwg.mxu0
    %v1761 = vadd.f32 %v1559, %v1753
    %v1762 = vadd.f32 %v1560, %v1758
    %s1763 = scalar_lea.vmem %s11, 31
    %v1764 = vld [vmem:[%s1763] ss:$8 sm:$0x7]
    %s1765 = scalar_lea.vmem %s11, 48
    %v1766 = vld [vmem:[%s1765] ss:$8 sm:$0x7]
    %1767 = vadd.xlane.f32.xlu0 %v1761
    %v1768 = vpop.xlane.xlu0 %1767
    %1769 = vadd.xlane.f32.xlu0 %v1762
    %v1770 = vpop.xlane.xlu0 %1769
    %v1771 = vmul.f32 %v1768, %v704
    %v1772 = vmul.f32 %v1770, %v704
    %v1773 = vsub.f32 %v1761, %v1771
    %v1774 = vsub.f32 %v1762, %v1772
    %v1775 = vmul.f32 %v1773, %v1773
    %v1776 = vmul.f32 %v1774, %v1774
    %1777 = vadd.xlane.f32.xlu0 %v1775
    %v1778 = vpop.xlane.xlu0 %1777
    %1779 = vadd.xlane.f32.xlu0 %v1776
    %v1780 = vpop.xlane.xlu0 %1779
    %v1781 = vmul.f32 %v1778, %v704
    %v1782 = vmul.f32 %v1780, %v704
    %v1783 = vadd.f32 %v1781, 1e-05
    %v1784 = vadd.f32 %v1782, 1e-05
    %v1785 = vrsqrt.pop %v1783
    %v1786 = vrsqrt.pop %v1784
    %v1787 = vmul.f32 %v1773, %v1785
    %v1788 = vmul.f32 %v1774, %v1786
    %v1790 = vlaneseq
    %v1791 = vshrl.u32 %v1790, 7
    %v1792 = vsub.s32 0, %v1791
    %v1793 = vrot.slane %v1764, %v1792
    %v1795 = vmul.f32 %v1787, %v1793
    %v1796 = vmul.f32 %v1788, %v1793
    %v1798 = vlaneseq
    %v1799 = vshrl.u32 %v1798, 7
    %v1800 = vsub.s32 0, %v1799
    %v1801 = vrot.slane %v1766, %v1800
    %v1803 = vadd.f32 %v1795, %v1801
    %v1804 = vadd.f32 %v1796, %v1801
    %s1805 = scalar_lea.vmem %s11, 49
    %v1806 = vld [vmem:[%s1805] ss:$8 sm:$0x7]
    %s1807 = scalar_lea.vmem %s11, 50
    %v1808 = vld [vmem:[%s1807] ss:$8 sm:$0x7]
    %1809 = vadd.xlane.f32.xlu0 %v1803
    %v1810 = vpop.xlane.xlu0 %1809
    %1811 = vadd.xlane.f32.xlu0 %v1804
    %v1812 = vpop.xlane.xlu0 %1811
    %v1813 = vmul.f32 %v1810, %v704
    %v1814 = vmul.f32 %v1812, %v704
    %v1815 = vsub.f32 %v1803, %v1813
    %v1816 = vsub.f32 %v1804, %v1814
    %v1817 = vmul.f32 %v1815, %v1815
    %v1818 = vmul.f32 %v1816, %v1816
    %1819 = vadd.xlane.f32.xlu0 %v1817
    %v1820 = vpop.xlane.xlu0 %1819
    %1821 = vadd.xlane.f32.xlu0 %v1818
    %v1822 = vpop.xlane.xlu0 %1821
    %v1823 = vmul.f32 %v1820, %v704
    %v1824 = vmul.f32 %v1822, %v704
    %v1825 = vadd.f32 %v1823, 1e-05
    %v1826 = vadd.f32 %v1824, 1e-05
    %v1827 = vrsqrt.pop %v1825
    %v1828 = vrsqrt.pop %v1826
    %v1829 = vmul.f32 %v1815, %v1827
    %v1830 = vmul.f32 %v1816, %v1828
    %v1832 = vlaneseq
    %v1833 = vshrl.u32 %v1832, 7
    %v1834 = vsub.s32 0, %v1833
    %v1835 = vrot.slane %v1806, %v1834
    %v1837 = vmul.f32 %v1829, %v1835
    %v1838 = vmul.f32 %v1830, %v1835
    %v1840 = vlaneseq
    %v1841 = vshrl.u32 %v1840, 7
    %v1842 = vsub.s32 0, %v1841
    %v1843 = vrot.slane %v1808, %v1842
    %v1845 = vadd.f32 %v1837, %v1843
    %v1846 = vadd.f32 %v1838, %v1843
    %1847 = vst [vmem:[#allocation2] sm:$0xff] %v1845
    %1848 = vst [vmem:[#allocation2 + $0x8] sm:$0xff] %v1846
    %v1849 = vld [vmem:[#allocation2] ss:$8 sm:$0x3]
    %v1850 = vld [vmem:[%s3] sm:$0xff]
    %v1851 = vld [vmem:[%s3 + $0x8] sm:$0xff]
    %v1852 = vld [vmem:[%s3 + $0x10] sm:$0xff]
    %v1853 = vld [vmem:[%s3 + $0x18] sm:$0xff]
    %v1854 = vld [vmem:[%s3 + $0x20] sm:$0xff]
    %v1855 = vld [vmem:[%s3 + $0x28] sm:$0xff]
    %v1856 = vld [vmem:[%s3 + $0x30] sm:$0xff]
    %v1857 = vld [vmem:[%s3 + $0x38] sm:$0xff]
    %v1858 = vld [vmem:[%s3 + $0x40] sm:$0xff]
    %v1859 = vld [vmem:[%s3 + $0x48] sm:$0xff]
    %v1860 = vld [vmem:[%s3 + $0x50] sm:$0xff]
    %v1861 = vld [vmem:[%s3 + $0x58] sm:$0xff]
    %v1862 = vld [vmem:[%s3 + $0x60] sm:$0xff]
    %v1863 = vld [vmem:[%s3 + $0x68] sm:$0xff]
    %v1864 = vld [vmem:[%s3 + $0x70] sm:$0xff]
    %v1865 = vld [vmem:[%s3 + $0x78] sm:$0xff]
    %s1866 = scalar_lea.vmem [#allocation2], 1
    %v1867 = vld [vmem:[%s1866] ss:$8 sm:$0x3]
    %s1868 = scalar_lea.vmem %s3, 128
    %v1869 = vld [vmem:[%s1868] sm:$0xff]
    %v1870 = vld [vmem:[%s1868 + $0x8] sm:$0xff]
    %v1871 = vld [vmem:[%s1868 + $0x10] sm:$0xff]
    %v1872 = vld [vmem:[%s1868 + $0x18] sm:$0xff]
    %v1873 = vld [vmem:[%s1868 + $0x20] sm:$0xff]
    %v1874 = vld [vmem:[%s1868 + $0x28] sm:$0xff]
    %v1875 = vld [vmem:[%s1868 + $0x30] sm:$0xff]
    %v1876 = vld [vmem:[%s1868 + $0x38] sm:$0xff]
    %v1877 = vld [vmem:[%s1868 + $0x40] sm:$0xff]
    %v1878 = vld [vmem:[%s1868 + $0x48] sm:$0xff]
    %v1879 = vld [vmem:[%s1868 + $0x50] sm:$0xff]
    %v1880 = vld [vmem:[%s1868 + $0x58] sm:$0xff]
    %v1881 = vld [vmem:[%s1868 + $0x60] sm:$0xff]
    %v1882 = vld [vmem:[%s1868 + $0x68] sm:$0xff]
    %v1883 = vld [vmem:[%s1868 + $0x70] sm:$0xff]
    %v1884 = vld [vmem:[%s1868 + $0x78] sm:$0xff]
    %1885 = vmatprep.subr.mxu0 0.0
    %1886 = vmatpush1.msra.mxu0 %v1869
    %1887 = vmatprep.subr.mxu0 0.0
    %1888 = vmatpush1.msra.mxu0 %v1870
    %1889 = vmatprep.subr.mxu0 0.0
    %1890 = vmatpush1.msra.mxu0 %v1871
    %1891 = vmatprep.subr.mxu0 0.0
    %1892 = vmatpush1.msra.mxu0 %v1872
    %1893 = vmatprep.subr.mxu0 0.0
    %1894 = vmatpush1.msra.mxu0 %v1873
    %1895 = vmatprep.subr.mxu0 0.0
    %1896 = vmatpush1.msra.mxu0 %v1874
    %1897 = vmatprep.subr.mxu0 0.0
    %1898 = vmatpush1.msra.mxu0 %v1875
    %1899 = vmatprep.subr.mxu0 0.0
    %1900 = vmatpush1.msra.mxu0 %v1876
    %1901 = vmatprep.subr.mxu0 0.0
    %1902 = vmatpush1.msra.mxu0 %v1877
    %1903 = vmatprep.subr.mxu0 0.0
    %1904 = vmatpush1.msra.mxu0 %v1878
    %1905 = vmatprep.subr.mxu0 0.0
    %1906 = vmatpush1.msra.mxu0 %v1879
    %1907 = vmatprep.subr.mxu0 0.0
    %1908 = vmatpush1.msra.mxu0 %v1880
    %1909 = vmatprep.subr.mxu0 0.0
    %1910 = vmatpush1.msra.mxu0 %v1881
    %1911 = vmatprep.subr.mxu0 0.0
    %1912 = vmatpush1.msra.mxu0 %v1882
    %1913 = vmatprep.subr.mxu0 0.0
    %1914 = vmatpush1.msra.mxu0 %v1883
    %1915 = vmatprep.subr.mxu0 0.0
    %1916 = vmatpush1.msra.mxu0 %v1884
    %1917 = vmatprep.subr.mxu0 0.0
    %1918 = vmatpush1.msra.mxu0 0.0
    %1919 = vmatprep.subr.mxu0 0.0
    %1920 = vmatpush1.msra.mxu0 0.0
    %1921 = vmatprep.subr.mxu0 0.0
    %1922 = vmatpush1.msra.mxu0 0.0
    %1923 = vmatprep.subr.mxu0 0.0
    %1924 = vmatpush1.msra.mxu0 0.0
    %1925 = vmatprep.subr.mxu0 0.0
    %1926 = vmatpush1.msra.mxu0 0.0
    %1927 = vmatprep.subr.mxu0 0.0
    %1928 = vmatpush1.msra.mxu0 0.0
    %1929 = vmatprep.subr.mxu0 0.0
    %1930 = vmatpush1.msra.mxu0 0.0
    %1931 = vmatprep.subr.mxu0 0.0
    %1932 = vmatpush1.msra.mxu0 0.0
    %1933 = vmatprep.subr.mxu0 0.0
    %1934 = vmatpush1.msra.mxu0 0.0
    %1935 = vmatprep.subr.mxu0 0.0
    %1936 = vmatpush1.msra.mxu0 0.0
    %1937 = vmatprep.subr.mxu0 0.0
    %1938 = vmatpush1.msra.mxu0 0.0
    %1939 = vmatprep.subr.mxu0 0.0
    %1940 = vmatpush1.msra.mxu0 0.0
    %1941 = vmatprep.subr.mxu0 0.0
    %1942 = vmatpush1.msra.mxu0 0.0
    %1943 = vmatprep.subr.mxu0 0.0
    %1944 = vmatpush1.msra.mxu0 0.0
    %1945 = vmatprep.subr.mxu0 0.0
    %1946 = vmatpush1.msra.mxu0 0.0
    %1947 = vmatprep.subr.mxu0 0.0
    %1948 = vmatpush1.msra.mxu0 0.0
    %1949 = vmatprep.mubr.f32.mxu0 0.0
    %1950 = vmatmul.mubr.f32.gmra.mrb[0].mxu0 %v1867
    %v1951 = vpop.f32.mrb[0].mxu0
    %v1952 = vadd.f32 0.0, %v1951
    %v1953 = vpop.f32.mrb[0].mxu0
    %1954 = vdwg.mxu0
    %1955 = vmatprep.subr.mxu0 0.0
    %1956 = vmatpush1.msra.mxu0 %v1850
    %1957 = vmatprep.subr.mxu0 0.0
    %1958 = vmatpush1.msra.mxu0 %v1851
    %1959 = vmatprep.subr.mxu0 0.0
    %1960 = vmatpush1.msra.mxu0 %v1852
    %1961 = vmatprep.subr.mxu0 0.0
    %1962 = vmatpush1.msra.mxu0 %v1853
    %1963 = vmatprep.subr.mxu0 0.0
    %1964 = vmatpush1.msra.mxu0 %v1854
    %1965 = vmatprep.subr.mxu0 0.0
    %1966 = vmatpush1.msra.mxu0 %v1855
    %1967 = vmatprep.subr.mxu0 0.0
    %1968 = vmatpush1.msra.mxu0 %v1856
    %1969 = vmatprep.subr.mxu0 0.0
    %1970 = vmatpush1.msra.mxu0 %v1857
    %1971 = vmatprep.subr.mxu0 0.0
    %1972 = vmatpush1.msra.mxu0 %v1858
    %1973 = vmatprep.subr.mxu0 0.0
    %1974 = vmatpush1.msra.mxu0 %v1859
    %1975 = vmatprep.subr.mxu0 0.0
    %1976 = vmatpush1.msra.mxu0 %v1860
    %1977 = vmatprep.subr.mxu0 0.0
    %1978 = vmatpush1.msra.mxu0 %v1861
    %1979 = vmatprep.subr.mxu0 0.0
    %1980 = vmatpush1.msra.mxu0 %v1862
    %1981 = vmatprep.subr.mxu0 0.0
    %1982 = vmatpush1.msra.mxu0 %v1863
    %1983 = vmatprep.subr.mxu0 0.0
    %1984 = vmatpush1.msra.mxu0 %v1864
    %1985 = vmatprep.subr.mxu0 0.0
    %1986 = vmatpush1.msra.mxu0 %v1865
    %1987 = vmatprep.subr.mxu0 0.0
    %1988 = vmatpush1.msra.mxu0 0.0
    %1989 = vmatprep.subr.mxu0 0.0
    %1990 = vmatpush1.msra.mxu0 0.0
    %1991 = vmatprep.subr.mxu0 0.0
    %1992 = vmatpush1.msra.mxu0 0.0
    %1993 = vmatprep.subr.mxu0 0.0
    %1994 = vmatpush1.msra.mxu0 0.0
    %1995 = vmatprep.subr.mxu0 0.0
    %1996 = vmatpush1.msra.mxu0 0.0
    %1997 = vmatprep.subr.mxu0 0.0
    %1998 = vmatpush1.msra.mxu0 0.0
    %1999 = vmatprep.subr.mxu0 0.0
    %2000 = vmatpush1.msra.mxu0 0.0
    %2001 = vmatprep.subr.mxu0 0.0
    %2002 = vmatpush1.msra.mxu0 0.0
    %2003 = vmatprep.subr.mxu0 0.0
    %2004 = vmatpush1.msra.mxu0 0.0
    %2005 = vmatprep.subr.mxu0 0.0
    %2006 = vmatpush1.msra.mxu0 0.0
    %2007 = vmatprep.subr.mxu0 0.0
    %2008 = vmatpush1.msra.mxu0 0.0
    %2009 = vmatprep.subr.mxu0 0.0
    %2010 = vmatpush1.msra.mxu0 0.0
    %2011 = vmatprep.subr.mxu0 0.0
    %2012 = vmatpush1.msra.mxu0 0.0
    %2013 = vmatprep.subr.mxu0 0.0
    %2014 = vmatpush1.msra.mxu0 0.0
    %2015 = vmatprep.subr.mxu0 0.0
    %2016 = vmatpush1.msra.mxu0 0.0
    %2017 = vmatprep.subr.mxu0 0.0
    %2018 = vmatpush1.msra.mxu0 0.0
    %2019 = vmatprep.mubr.f32.mxu0 0.0
    %2020 = vmatmul.mubr.f32.gmra.mrb[0].mxu0 %v1849
    %v2021 = vpop.f32.mrb[0].mxu0
    %v2022 = vadd.f32 %v1952, %v2021
    %v2023 = vpop.f32.mrb[0].mxu0
    %2024 = vdwg.mxu0
    %s2025 = scalar_lea.vmem [#allocation2], 2
    %v2026 = vld [vmem:[%s2025] ss:$8 sm:$0x3]
    %s2027 = scalar_lea.vmem %s3, 256
    %v2028 = vld [vmem:[%s2027] sm:$0xff]
    %v2029 = vld [vmem:[%s2027 + $0x8] sm:$0xff]
    %v2030 = vld [vmem:[%s2027 + $0x10] sm:$0xff]
    %v2031 = vld [vmem:[%s2027 + $0x18] sm:$0xff]
    %v2032 = vld [vmem:[%s2027 + $0x20] sm:$0xff]
    %v2033 = vld [vmem:[%s2027 + $0x28] sm:$0xff]
    %v2034 = vld [vmem:[%s2027 + $0x30] sm:$0xff]
    %v2035 = vld [vmem:[%s2027 + $0x38] sm:$0xff]
    %v2036 = vld [vmem:[%s2027 + $0x40] sm:$0xff]
    %v2037 = vld [vmem:[%s2027 + $0x48] sm:$0xff]
    %v2038 = vld [vmem:[%s2027 + $0x50] sm:$0xff]
    %v2039 = vld [vmem:[%s2027 + $0x58] sm:$0xff]
    %v2040 = vld [vmem:[%s2027 + $0x60] sm:$0xff]
    %v2041 = vld [vmem:[%s2027 + $0x68] sm:$0xff]
    %v2042 = vld [vmem:[%s2027 + $0x70] sm:$0xff]
    %v2043 = vld [vmem:[%s2027 + $0x78] sm:$0xff]
    %2044 = vmatprep.subr.mxu0 0.0
    %2045 = vmatpush1.msra.mxu0 %v2028
    %2046 = vmatprep.subr.mxu0 0.0
    %2047 = vmatpush1.msra.mxu0 %v2029
    %2048 = vmatprep.subr.mxu0 0.0
    %2049 = vmatpush1.msra.mxu0 %v2030
    %2050 = vmatprep.subr.mxu0 0.0
    %2051 = vmatpush1.msra.mxu0 %v2031
    %2052 = vmatprep.subr.mxu0 0.0
    %2053 = vmatpush1.msra.mxu0 %v2032
    %2054 = vmatprep.subr.mxu0 0.0
    %2055 = vmatpush1.msra.mxu0 %v2033
    %2056 = vmatprep.subr.mxu0 0.0
    %2057 = vmatpush1.msra.mxu0 %v2034
    %2058 = vmatprep.subr.mxu0 0.0
    %2059 = vmatpush1.msra.mxu0 %v2035
    %2060 = vmatprep.subr.mxu0 0.0
    %2061 = vmatpush1.msra.mxu0 %v2036
    %2062 = vmatprep.subr.mxu0 0.0
    %2063 = vmatpush1.msra.mxu0 %v2037
    %2064 = vmatprep.subr.mxu0 0.0
    %2065 = vmatpush1.msra.mxu0 %v2038
    %2066 = vmatprep.subr.mxu0 0.0
    %2067 = vmatpush1.msra.mxu0 %v2039
    %2068 = vmatprep.subr.mxu0 0.0
    %2069 = vmatpush1.msra.mxu0 %v2040
    %2070 = vmatprep.subr.mxu0 0.0
    %2071 = vmatpush1.msra.mxu0 %v2041
    %2072 = vmatprep.subr.mxu0 0.0
    %2073 = vmatpush1.msra.mxu0 %v2042
    %2074 = vmatprep.subr.mxu0 0.0
    %2075 = vmatpush1.msra.mxu0 %v2043
    %2076 = vmatprep.subr.mxu0 0.0
    %2077 = vmatpush1.msra.mxu0 0.0
    %2078 = vmatprep.subr.mxu0 0.0
    %2079 = vmatpush1.msra.mxu0 0.0
    %2080 = vmatprep.subr.mxu0 0.0
    %2081 = vmatpush1.msra.mxu0 0.0
    %2082 = vmatprep.subr.mxu0 0.0
    %2083 = vmatpush1.msra.mxu0 0.0
    %2084 = vmatprep.subr.mxu0 0.0
    %2085 = vmatpush1.msra.mxu0 0.0
    %2086 = vmatprep.subr.mxu0 0.0
    %2087 = vmatpush1.msra.mxu0 0.0
    %2088 = vmatprep.subr.mxu0 0.0
    %2089 = vmatpush1.msra.mxu0 0.0
    %2090 = vmatprep.subr.mxu0 0.0
    %2091 = vmatpush1.msra.mxu0 0.0
    %2092 = vmatprep.subr.mxu0 0.0
    %2093 = vmatpush1.msra.mxu0 0.0
    %2094 = vmatprep.subr.mxu0 0.0
    %2095 = vmatpush1.msra.mxu0 0.0
    %2096 = vmatprep.subr.mxu0 0.0
    %2097 = vmatpush1.msra.mxu0 0.0
    %2098 = vmatprep.subr.mxu0 0.0
    %2099 = vmatpush1.msra.mxu0 0.0
    %2100 = vmatprep.subr.mxu0 0.0
    %2101 = vmatpush1.msra.mxu0 0.0
    %2102 = vmatprep.subr.mxu0 0.0
    %2103 = vmatpush1.msra.mxu0 0.0
    %2104 = vmatprep.subr.mxu0 0.0
    %2105 = vmatpush1.msra.mxu0 0.0
    %2106 = vmatprep.subr.mxu0 0.0
    %2107 = vmatpush1.msra.mxu0 0.0
    %2108 = vmatprep.mubr.f32.mxu0 0.0
    %2109 = vmatmul.mubr.f32.gmra.mrb[0].mxu0 %v2026
    %v2110 = vpop.f32.mrb[0].mxu0
    %v2111 = vadd.f32 0.0, %v2110
    %v2112 = vpop.f32.mrb[0].mxu0
    %2113 = vdwg.mxu0
    %v2114 = vadd.f32 %v2022, %v2111
    %s2115 = scalar_lea.vmem [#allocation2], 3
    %v2116 = vld [vmem:[%s2115] ss:$8 sm:$0x3]
    %s2117 = scalar_lea.vmem %s3, 384
    %v2118 = vld [vmem:[%s2117] sm:$0xff]
    %v2119 = vld [vmem:[%s2117 + $0x8] sm:$0xff]
    %v2120 = vld [vmem:[%s2117 + $0x10] sm:$0xff]
    %v2121 = vld [vmem:[%s2117 + $0x18] sm:$0xff]
    %v2122 = vld [vmem:[%s2117 + $0x20] sm:$0xff]
    %v2123 = vld [vmem:[%s2117 + $0x28] sm:$0xff]
    %v2124 = vld [vmem:[%s2117 + $0x30] sm:$0xff]
    %v2125 = vld [vmem:[%s2117 + $0x38] sm:$0xff]
    %v2126 = vld [vmem:[%s2117 + $0x40] sm:$0xff]
    %v2127 = vld [vmem:[%s2117 + $0x48] sm:$0xff]
    %v2128 = vld [vmem:[%s2117 + $0x50] sm:$0xff]
    %v2129 = vld [vmem:[%s2117 + $0x58] sm:$0xff]
    %v2130 = vld [vmem:[%s2117 + $0x60] sm:$0xff]
    %v2131 = vld [vmem:[%s2117 + $0x68] sm:$0xff]
    %v2132 = vld [vmem:[%s2117 + $0x70] sm:$0xff]
    %v2133 = vld [vmem:[%s2117 + $0x78] sm:$0xff]
    %2134 = vmatprep.subr.mxu0 0.0
    %2135 = vmatpush1.msra.mxu0 %v2118
    %2136 = vmatprep.subr.mxu0 0.0
    %2137 = vmatpush1.msra.mxu0 %v2119
    %2138 = vmatprep.subr.mxu0 0.0
    %2139 = vmatpush1.msra.mxu0 %v2120
    %2140 = vmatprep.subr.mxu0 0.0
    %2141 = vmatpush1.msra.mxu0 %v2121
    %2142 = vmatprep.subr.mxu0 0.0
    %2143 = vmatpush1.msra.mxu0 %v2122
    %2144 = vmatprep.subr.mxu0 0.0
    %2145 = vmatpush1.msra.mxu0 %v2123
    %2146 = vmatprep.subr.mxu0 0.0
    %2147 = vmatpush1.msra.mxu0 %v2124
    %2148 = vmatprep.subr.mxu0 0.0
    %2149 = vmatpush1.msra.mxu0 %v2125
    %2150 = vmatprep.subr.mxu0 0.0
    %2151 = vmatpush1.msra.mxu0 %v2126
    %2152 = vmatprep.subr.mxu0 0.0
    %2153 = vmatpush1.msra.mxu0 %v2127
    %2154 = vmatprep.subr.mxu0 0.0
    %2155 = vmatpush1.msra.mxu0 %v2128
    %2156 = vmatprep.subr.mxu0 0.0
    %2157 = vmatpush1.msra.mxu0 %v2129
    %2158 = vmatprep.subr.mxu0 0.0
    %2159 = vmatpush1.msra.mxu0 %v2130
    %2160 = vmatprep.subr.mxu0 0.0
    %2161 = vmatpush1.msra.mxu0 %v2131
    %2162 = vmatprep.subr.mxu0 0.0
    %2163 = vmatpush1.msra.mxu0 %v2132
    %2164 = vmatprep.subr.mxu0 0.0
    %2165 = vmatpush1.msra.mxu0 %v2133
    %2166 = vmatprep.subr.mxu0 0.0
    %2167 = vmatpush1.msra.mxu0 0.0
    %2168 = vmatprep.subr.mxu0 0.0
    %2169 = vmatpush1.msra.mxu0 0.0
    %2170 = vmatprep.subr.mxu0 0.0
    %2171 = vmatpush1.msra.mxu0 0.0
    %2172 = vmatprep.subr.mxu0 0.0
    %2173 = vmatpush1.msra.mxu0 0.0
    %2174 = vmatprep.subr.mxu0 0.0
    %2175 = vmatpush1.msra.mxu0 0.0
    %2176 = vmatprep.subr.mxu0 0.0
    %2177 = vmatpush1.msra.mxu0 0.0
    %2178 = vmatprep.subr.mxu0 0.0
    %2179 = vmatpush1.msra.mxu0 0.0
    %2180 = vmatprep.subr.mxu0 0.0
    %2181 = vmatpush1.msra.mxu0 0.0
    %2182 = vmatprep.subr.mxu0 0.0
    %2183 = vmatpush1.msra.mxu0 0.0
    %2184 = vmatprep.subr.mxu0 0.0
    %2185 = vmatpush1.msra.mxu0 0.0
    %2186 = vmatprep.subr.mxu0 0.0
    %2187 = vmatpush1.msra.mxu0 0.0
    %2188 = vmatprep.subr.mxu0 0.0
    %2189 = vmatpush1.msra.mxu0 0.0
    %2190 = vmatprep.subr.mxu0 0.0
    %2191 = vmatpush1.msra.mxu0 0.0
    %2192 = vmatprep.subr.mxu0 0.0
    %2193 = vmatpush1.msra.mxu0 0.0
    %2194 = vmatprep.subr.mxu0 0.0
    %2195 = vmatpush1.msra.mxu0 0.0
    %2196 = vmatprep.subr.mxu0 0.0
    %2197 = vmatpush1.msra.mxu0 0.0
    %2198 = vmatprep.mubr.f32.mxu0 0.0
    %2199 = vmatmul.mubr.f32.gmra.mrb[0].mxu0 %v2116
    %v2200 = vpop.f32.mrb[0].mxu0
    %v2201 = vadd.f32 0.0, %v2200
    %v2202 = vpop.f32.mrb[0].mxu0
    %2203 = vdwg.mxu0
    %v2204 = vadd.f32 %v2114, %v2201
    %s2205 = scalar_lea.vmem [#allocation2], 4
    %v2206 = vld [vmem:[%s2205] ss:$8 sm:$0x3]
    %s2207 = scalar_lea.vmem %s3, 512
    %v2208 = vld [vmem:[%s2207] sm:$0xff]
    %v2209 = vld [vmem:[%s2207 + $0x8] sm:$0xff]
    %v2210 = vld [vmem:[%s2207 + $0x10] sm:$0xff]
    %v2211 = vld [vmem:[%s2207 + $0x18] sm:$0xff]
    %v2212 = vld [vmem:[%s2207 + $0x20] sm:$0xff]
    %v2213 = vld [vmem:[%s2207 + $0x28] sm:$0xff]
    %v2214 = vld [vmem:[%s2207 + $0x30] sm:$0xff]
    %v2215 = vld [vmem:[%s2207 + $0x38] sm:$0xff]
    %v2216 = vld [vmem:[%s2207 + $0x40] sm:$0xff]
    %v2217 = vld [vmem:[%s2207 + $0x48] sm:$0xff]
    %v2218 = vld [vmem:[%s2207 + $0x50] sm:$0xff]
    %v2219 = vld [vmem:[%s2207 + $0x58] sm:$0xff]
    %v2220 = vld [vmem:[%s2207 + $0x60] sm:$0xff]
    %v2221 = vld [vmem:[%s2207 + $0x68] sm:$0xff]
    %v2222 = vld [vmem:[%s2207 + $0x70] sm:$0xff]
    %v2223 = vld [vmem:[%s2207 + $0x78] sm:$0xff]
    %2224 = vmatprep.subr.mxu0 0.0
    %2225 = vmatpush1.msra.mxu0 %v2208
    %2226 = vmatprep.subr.mxu0 0.0
    %2227 = vmatpush1.msra.mxu0 %v2209
    %2228 = vmatprep.subr.mxu0 0.0
    %2229 = vmatpush1.msra.mxu0 %v2210
    %2230 = vmatprep.subr.mxu0 0.0
    %2231 = vmatpush1.msra.mxu0 %v2211
    %2232 = vmatprep.subr.mxu0 0.0
    %2233 = vmatpush1.msra.mxu0 %v2212
    %2234 = vmatprep.subr.mxu0 0.0
    %2235 = vmatpush1.msra.mxu0 %v2213
    %2236 = vmatprep.subr.mxu0 0.0
    %2237 = vmatpush1.msra.mxu0 %v2214
    %2238 = vmatprep.subr.mxu0 0.0
    %2239 = vmatpush1.msra.mxu0 %v2215
    %2240 = vmatprep.subr.mxu0 0.0
    %2241 = vmatpush1.msra.mxu0 %v2216
    %2242 = vmatprep.subr.mxu0 0.0
    %2243 = vmatpush1.msra.mxu0 %v2217
    %2244 = vmatprep.subr.mxu0 0.0
    %2245 = vmatpush1.msra.mxu0 %v2218
    %2246 = vmatprep.subr.mxu0 0.0
    %2247 = vmatpush1.msra.mxu0 %v2219
    %2248 = vmatprep.subr.mxu0 0.0
    %2249 = vmatpush1.msra.mxu0 %v2220
    %2250 = vmatprep.subr.mxu0 0.0
    %2251 = vmatpush1.msra.mxu0 %v2221
    %2252 = vmatprep.subr.mxu0 0.0
    %2253 = vmatpush1.msra.mxu0 %v2222
    %2254 = vmatprep.subr.mxu0 0.0
    %2255 = vmatpush1.msra.mxu0 %v2223
    %2256 = vmatprep.subr.mxu0 0.0
    %2257 = vmatpush1.msra.mxu0 0.0
    %2258 = vmatprep.subr.mxu0 0.0
    %2259 = vmatpush1.msra.mxu0 0.0
    %2260 = vmatprep.subr.mxu0 0.0
    %2261 = vmatpush1.msra.mxu0 0.0
    %2262 = vmatprep.subr.mxu0 0.0
    %2263 = vmatpush1.msra.mxu0 0.0
    %2264 = vmatprep.subr.mxu0 0.0
    %2265 = vmatpush1.msra.mxu0 0.0
    %2266 = vmatprep.subr.mxu0 0.0
    %2267 = vmatpush1.msra.mxu0 0.0
    %2268 = vmatprep.subr.mxu0 0.0
    %2269 = vmatpush1.msra.mxu0 0.0
    %2270 = vmatprep.subr.mxu0 0.0
    %2271 = vmatpush1.msra.mxu0 0.0
    %2272 = vmatprep.subr.mxu0 0.0
    %2273 = vmatpush1.msra.mxu0 0.0
    %2274 = vmatprep.subr.mxu0 0.0
    %2275 = vmatpush1.msra.mxu0 0.0
    %2276 = vmatprep.subr.mxu0 0.0
    %2277 = vmatpush1.msra.mxu0 0.0
    %2278 = vmatprep.subr.mxu0 0.0
    %2279 = vmatpush1.msra.mxu0 0.0
    %2280 = vmatprep.subr.mxu0 0.0
    %2281 = vmatpush1.msra.mxu0 0.0
    %2282 = vmatprep.subr.mxu0 0.0
    %2283 = vmatpush1.msra.mxu0 0.0
    %2284 = vmatprep.subr.mxu0 0.0
    %2285 = vmatpush1.msra.mxu0 0.0
    %2286 = vmatprep.subr.mxu0 0.0
    %2287 = vmatpush1.msra.mxu0 0.0
    %2288 = vmatprep.mubr.f32.mxu0 0.0
    %2289 = vmatmul.mubr.f32.gmra.mrb[0].mxu0 %v2206
    %v2290 = vpop.f32.mrb[0].mxu0
    %v2291 = vadd.f32 0.0, %v2290
    %v2292 = vpop.f32.mrb[0].mxu0
    %2293 = vdwg.mxu0
    %v2294 = vadd.f32 %v2204, %v2291
    %s2295 = scalar_lea.vmem [#allocation2], 5
    %v2296 = vld [vmem:[%s2295] ss:$8 sm:$0x3]
    %s2297 = scalar_lea.vmem %s3, 640
    %v2298 = vld [vmem:[%s2297] sm:$0xff]
    %v2299 = vld [vmem:[%s2297 + $0x8] sm:$0xff]
    %v2300 = vld [vmem:[%s2297 + $0x10] sm:$0xff]
    %v2301 = vld [vmem:[%s2297 + $0x18] sm:$0xff]
    %v2302 = vld [vmem:[%s2297 + $0x20] sm:$0xff]
    %v2303 = vld [vmem:[%s2297 + $0x28] sm:$0xff]
    %v2304 = vld [vmem:[%s2297 + $0x30] sm:$0xff]
    %v2305 = vld [vmem:[%s2297 + $0x38] sm:$0xff]
    %v2306 = vld [vmem:[%s2297 + $0x40] sm:$0xff]
    %v2307 = vld [vmem:[%s2297 + $0x48] sm:$0xff]
    %v2308 = vld [vmem:[%s2297 + $0x50] sm:$0xff]
    %v2309 = vld [vmem:[%s2297 + $0x58] sm:$0xff]
    %v2310 = vld [vmem:[%s2297 + $0x60] sm:$0xff]
    %v2311 = vld [vmem:[%s2297 + $0x68] sm:$0xff]
    %v2312 = vld [vmem:[%s2297 + $0x70] sm:$0xff]
    %v2313 = vld [vmem:[%s2297 + $0x78] sm:$0xff]
    %2314 = vmatprep.subr.mxu0 0.0
    %2315 = vmatpush1.msra.mxu0 %v2298
    %2316 = vmatprep.subr.mxu0 0.0
    %2317 = vmatpush1.msra.mxu0 %v2299
    %2318 = vmatprep.subr.mxu0 0.0
    %2319 = vmatpush1.msra.mxu0 %v2300
    %2320 = vmatprep.subr.mxu0 0.0
    %2321 = vmatpush1.msra.mxu0 %v2301
    %2322 = vmatprep.subr.mxu0 0.0
    %2323 = vmatpush1.msra.mxu0 %v2302
    %2324 = vmatprep.subr.mxu0 0.0
    %2325 = vmatpush1.msra.mxu0 %v2303
    %2326 = vmatprep.subr.mxu0 0.0
    %2327 = vmatpush1.msra.mxu0 %v2304
    %2328 = vmatprep.subr.mxu0 0.0
    %2329 = vmatpush1.msra.mxu0 %v2305
    %2330 = vmatprep.subr.mxu0 0.0
    %2331 = vmatpush1.msra.mxu0 %v2306
    %2332 = vmatprep.subr.mxu0 0.0
    %2333 = vmatpush1.msra.mxu0 %v2307
    %2334 = vmatprep.subr.mxu0 0.0
    %2335 = vmatpush1.msra.mxu0 %v2308
    %2336 = vmatprep.subr.mxu0 0.0
    %2337 = vmatpush1.msra.mxu0 %v2309
    %2338 = vmatprep.subr.mxu0 0.0
    %2339 = vmatpush1.msra.mxu0 %v2310
    %2340 = vmatprep.subr.mxu0 0.0
    %2341 = vmatpush1.msra.mxu0 %v2311
    %2342 = vmatprep.subr.mxu0 0.0
    %2343 = vmatpush1.msra.mxu0 %v2312
    %2344 = vmatprep.subr.mxu0 0.0
    %2345 = vmatpush1.msra.mxu0 %v2313
    %2346 = vmatprep.subr.mxu0 0.0
    %2347 = vmatpush1.msra.mxu0 0.0
    %2348 = vmatprep.subr.mxu0 0.0
    %2349 = vmatpush1.msra.mxu0 0.0
    %2350 = vmatprep.subr.mxu0 0.0
    %2351 = vmatpush1.msra.mxu0 0.0
    %2352 = vmatprep.subr.mxu0 0.0
    %2353 = vmatpush1.msra.mxu0 0.0
    %2354 = vmatprep.subr.mxu0 0.0
    %2355 = vmatpush1.msra.mxu0 0.0
    %2356 = vmatprep.subr.mxu0 0.0
    %2357 = vmatpush1.msra.mxu0 0.0
    %2358 = vmatprep.subr.mxu0 0.0
    %2359 = vmatpush1.msra.mxu0 0.0
    %2360 = vmatprep.subr.mxu0 0.0
    %2361 = vmatpush1.msra.mxu0 0.0
    %2362 = vmatprep.subr.mxu0 0.0
    %2363 = vmatpush1.msra.mxu0 0.0
    %2364 = vmatprep.subr.mxu0 0.0
    %2365 = vmatpush1.msra.mxu0 0.0
    %2366 = vmatprep.subr.mxu0 0.0
    %2367 = vmatpush1.msra.mxu0 0.0
    %2368 = vmatprep.subr.mxu0 0.0
    %2369 = vmatpush1.msra.mxu0 0.0
    %2370 = vmatprep.subr.mxu0 0.0
    %2371 = vmatpush1.msra.mxu0 0.0
    %2372 = vmatprep.subr.mxu0 0.0
    %2373 = vmatpush1.msra.mxu0 0.0
    %2374 = vmatprep.subr.mxu0 0.0
    %2375 = vmatpush1.msra.mxu0 0.0
    %2376 = vmatprep.subr.mxu0 0.0
    %2377 = vmatpush1.msra.mxu0 0.0
    %2378 = vmatprep.mubr.f32.mxu0 0.0
    %2379 = vmatmul.mubr.f32.gmra.mrb[0].mxu0 %v2296
    %v2380 = vpop.f32.mrb[0].mxu0
    %v2381 = vadd.f32 0.0, %v2380
    %v2382 = vpop.f32.mrb[0].mxu0
    %2383 = vdwg.mxu0
    %v2384 = vadd.f32 %v2294, %v2381
    %s2385 = scalar_lea.vmem [#allocation2], 6
    %v2386 = vld [vmem:[%s2385] ss:$8 sm:$0x3]
    %s2387 = scalar_lea.vmem %s3, 768
    %v2388 = vld [vmem:[%s2387] sm:$0xff]
    %v2389 = vld [vmem:[%s2387 + $0x8] sm:$0xff]
    %v2390 = vld [vmem:[%s2387 + $0x10] sm:$0xff]
    %v2391 = vld [vmem:[%s2387 + $0x18] sm:$0xff]
    %v2392 = vld [vmem:[%s2387 + $0x20] sm:$0xff]
    %v2393 = vld [vmem:[%s2387 + $0x28] sm:$0xff]
    %v2394 = vld [vmem:[%s2387 + $0x30] sm:$0xff]
    %v2395 = vld [vmem:[%s2387 + $0x38] sm:$0xff]
    %v2396 = vld [vmem:[%s2387 + $0x40] sm:$0xff]
    %v2397 = vld [vmem:[%s2387 + $0x48] sm:$0xff]
    %v2398 = vld [vmem:[%s2387 + $0x50] sm:$0xff]
    %v2399 = vld [vmem:[%s2387 + $0x58] sm:$0xff]
    %v2400 = vld [vmem:[%s2387 + $0x60] sm:$0xff]
    %v2401 = vld [vmem:[%s2387 + $0x68] sm:$0xff]
    %v2402 = vld [vmem:[%s2387 + $0x70] sm:$0xff]
    %v2403 = vld [vmem:[%s2387 + $0x78] sm:$0xff]
    %2404 = vmatprep.subr.mxu0 0.0
    %2405 = vmatpush1.msra.mxu0 %v2388
    %2406 = vmatprep.subr.mxu0 0.0
    %2407 = vmatpush1.msra.mxu0 %v2389
    %2408 = vmatprep.subr.mxu0 0.0
    %2409 = vmatpush1.msra.mxu0 %v2390
    %2410 = vmatprep.subr.mxu0 0.0
    %2411 = vmatpush1.msra.mxu0 %v2391
    %2412 = vmatprep.subr.mxu0 0.0
    %2413 = vmatpush1.msra.mxu0 %v2392
    %2414 = vmatprep.subr.mxu0 0.0
    %2415 = vmatpush1.msra.mxu0 %v2393
    %2416 = vmatprep.subr.mxu0 0.0
    %2417 = vmatpush1.msra.mxu0 %v2394
    %2418 = vmatprep.subr.mxu0 0.0
    %2419 = vmatpush1.msra.mxu0 %v2395
    %2420 = vmatprep.subr.mxu0 0.0
    %2421 = vmatpush1.msra.mxu0 %v2396
    %2422 = vmatprep.subr.mxu0 0.0
    %2423 = vmatpush1.msra.mxu0 %v2397
    %2424 = vmatprep.subr.mxu0 0.0
    %2425 = vmatpush1.msra.mxu0 %v2398
    %2426 = vmatprep.subr.mxu0 0.0
    %2427 = vmatpush1.msra.mxu0 %v2399
    %2428 = vmatprep.subr.mxu0 0.0
    %2429 = vmatpush1.msra.mxu0 %v2400
    %2430 = vmatprep.subr.mxu0 0.0
    %2431 = vmatpush1.msra.mxu0 %v2401
    %2432 = vmatprep.subr.mxu0 0.0
    %2433 = vmatpush1.msra.mxu0 %v2402
    %2434 = vmatprep.subr.mxu0 0.0
    %2435 = vmatpush1.msra.mxu0 %v2403
    %2436 = vmatprep.subr.mxu0 0.0
    %2437 = vmatpush1.msra.mxu0 0.0
    %2438 = vmatprep.subr.mxu0 0.0
    %2439 = vmatpush1.msra.mxu0 0.0
    %2440 = vmatprep.subr.mxu0 0.0
    %2441 = vmatpush1.msra.mxu0 0.0
    %2442 = vmatprep.subr.mxu0 0.0
    %2443 = vmatpush1.msra.mxu0 0.0
    %2444 = vmatprep.subr.mxu0 0.0
    %2445 = vmatpush1.msra.mxu0 0.0
    %2446 = vmatprep.subr.mxu0 0.0
    %2447 = vmatpush1.msra.mxu0 0.0
    %2448 = vmatprep.subr.mxu0 0.0
    %2449 = vmatpush1.msra.mxu0 0.0
    %2450 = vmatprep.subr.mxu0 0.0
    %2451 = vmatpush1.msra.mxu0 0.0
    %2452 = vmatprep.subr.mxu0 0.0
    %2453 = vmatpush1.msra.mxu0 0.0
    %2454 = vmatprep.subr.mxu0 0.0
    %2455 = vmatpush1.msra.mxu0 0.0
    %2456 = vmatprep.subr.mxu0 0.0
    %2457 = vmatpush1.msra.mxu0 0.0
    %2458 = vmatprep.subr.mxu0 0.0
    %2459 = vmatpush1.msra.mxu0 0.0
    %2460 = vmatprep.subr.mxu0 0.0
    %2461 = vmatpush1.msra.mxu0 0.0
    %2462 = vmatprep.subr.mxu0 0.0
    %2463 = vmatpush1.msra.mxu0 0.0
    %2464 = vmatprep.subr.mxu0 0.0
    %2465 = vmatpush1.msra.mxu0 0.0
    %2466 = vmatprep.subr.mxu0 0.0
    %2467 = vmatpush1.msra.mxu0 0.0
    %2468 = vmatprep.mubr.f32.mxu0 0.0
    %2469 = vmatmul.mubr.f32.gmra.mrb[0].mxu0 %v2386
    %v2470 = vpop.f32.mrb[0].mxu0
    %v2471 = vadd.f32 0.0, %v2470
    %v2472 = vpop.f32.mrb[0].mxu0
    %2473 = vdwg.mxu0
    %v2474 = vadd.f32 %v2384, %v2471
    %s2475 = scalar_lea.vmem [#allocation2], 7
    %v2476 = vld [vmem:[%s2475] ss:$8 sm:$0x3]
    %s2477 = scalar_lea.vmem %s3, 896
    %v2478 = vld [vmem:[%s2477] sm:$0xff]
    %v2479 = vld [vmem:[%s2477 + $0x8] sm:$0xff]
    %v2480 = vld [vmem:[%s2477 + $0x10] sm:$0xff]
    %v2481 = vld [vmem:[%s2477 + $0x18] sm:$0xff]
    %v2482 = vld [vmem:[%s2477 + $0x20] sm:$0xff]
    %v2483 = vld [vmem:[%s2477 + $0x28] sm:$0xff]
    %v2484 = vld [vmem:[%s2477 + $0x30] sm:$0xff]
    %v2485 = vld [vmem:[%s2477 + $0x38] sm:$0xff]
    %v2486 = vld [vmem:[%s2477 + $0x40] sm:$0xff]
    %v2487 = vld [vmem:[%s2477 + $0x48] sm:$0xff]
    %v2488 = vld [vmem:[%s2477 + $0x50] sm:$0xff]
    %v2489 = vld [vmem:[%s2477 + $0x58] sm:$0xff]
    %v2490 = vld [vmem:[%s2477 + $0x60] sm:$0xff]
    %v2491 = vld [vmem:[%s2477 + $0x68] sm:$0xff]
    %v2492 = vld [vmem:[%s2477 + $0x70] sm:$0xff]
    %v2493 = vld [vmem:[%s2477 + $0x78] sm:$0xff]
    %2494 = vmatprep.subr.mxu0 0.0
    %2495 = vmatpush1.msra.mxu0 %v2478
    %2496 = vmatprep.subr.mxu0 0.0
    %2497 = vmatpush1.msra.mxu0 %v2479
    %2498 = vmatprep.subr.mxu0 0.0
    %2499 = vmatpush1.msra.mxu0 %v2480
    %2500 = vmatprep.subr.mxu0 0.0
    %2501 = vmatpush1.msra.mxu0 %v2481
    %2502 = vmatprep.subr.mxu0 0.0
    %2503 = vmatpush1.msra.mxu0 %v2482
    %2504 = vmatprep.subr.mxu0 0.0
    %2505 = vmatpush1.msra.mxu0 %v2483
    %2506 = vmatprep.subr.mxu0 0.0
    %2507 = vmatpush1.msra.mxu0 %v2484
    %2508 = vmatprep.subr.mxu0 0.0
    %2509 = vmatpush1.msra.mxu0 %v2485
    %2510 = vmatprep.subr.mxu0 0.0
    %2511 = vmatpush1.msra.mxu0 %v2486
    %2512 = vmatprep.subr.mxu0 0.0
    %2513 = vmatpush1.msra.mxu0 %v2487
    %2514 = vmatprep.subr.mxu0 0.0
    %2515 = vmatpush1.msra.mxu0 %v2488
    %2516 = vmatprep.subr.mxu0 0.0
    %2517 = vmatpush1.msra.mxu0 %v2489
    %2518 = vmatprep.subr.mxu0 0.0
    %2519 = vmatpush1.msra.mxu0 %v2490
    %2520 = vmatprep.subr.mxu0 0.0
    %2521 = vmatpush1.msra.mxu0 %v2491
    %2522 = vmatprep.subr.mxu0 0.0
    %2523 = vmatpush1.msra.mxu0 %v2492
    %2524 = vmatprep.subr.mxu0 0.0
    %2525 = vmatpush1.msra.mxu0 %v2493
    %2526 = vmatprep.subr.mxu0 0.0
    %2527 = vmatpush1.msra.mxu0 0.0
    %2528 = vmatprep.subr.mxu0 0.0
    %2529 = vmatpush1.msra.mxu0 0.0
    %2530 = vmatprep.subr.mxu0 0.0
    %2531 = vmatpush1.msra.mxu0 0.0
    %2532 = vmatprep.subr.mxu0 0.0
    %2533 = vmatpush1.msra.mxu0 0.0
    %2534 = vmatprep.subr.mxu0 0.0
    %2535 = vmatpush1.msra.mxu0 0.0
    %2536 = vmatprep.subr.mxu0 0.0
    %2537 = vmatpush1.msra.mxu0 0.0
    %2538 = vmatprep.subr.mxu0 0.0
    %2539 = vmatpush1.msra.mxu0 0.0
    %2540 = vmatprep.subr.mxu0 0.0
    %2541 = vmatpush1.msra.mxu0 0.0
    %2542 = vmatprep.subr.mxu0 0.0
    %2543 = vmatpush1.msra.mxu0 0.0
    %2544 = vmatprep.subr.mxu0 0.0
    %2545 = vmatpush1.msra.mxu0 0.0
    %2546 = vmatprep.subr.mxu0 0.0
    %2547 = vmatpush1.msra.mxu0 0.0
    %2548 = vmatprep.subr.mxu0 0.0
    %2549 = vmatpush1.msra.mxu0 0.0
    %2550 = vmatprep.subr.mxu0 0.0
    %2551 = vmatpush1.msra.mxu0 0.0
    %2552 = vmatprep.subr.mxu0 0.0
    %2553 = vmatpush1.msra.mxu0 0.0
    %2554 = vmatprep.subr.mxu0 0.0
    %2555 = vmatpush1.msra.mxu0 0.0
    %2556 = vmatprep.subr.mxu0 0.0
    %2557 = vmatpush1.msra.mxu0 0.0
    %2558 = vmatprep.mubr.f32.mxu0 0.0
    %2559 = vmatmul.mubr.f32.gmra.mrb[0].mxu0 %v2476
    %v2560 = vpop.f32.mrb[0].mxu0
    %v2561 = vadd.f32 0.0, %v2560
    %v2562 = vpop.f32.mrb[0].mxu0
    %2563 = vdwg.mxu0
    %v2564 = vadd.f32 %v2474, %v2561
    %v2565 = vld [vmem:[%s1] sm:$0x3]
    %v2566 = vld [vmem:[%s12] sm:$0xff]
    %v2568 = vsel %vm72, %v2565, 0
    %2570 = vmatprep.subr.mxu0 0.0
    %2571 = vmatpush1.msra.mxu0 %v2566
    %2572 = vmatprep.subr.mxu0 0.0
    %2573 = vmatpush1.msra.mxu0 0.0
    %2574 = vmatprep.subr.mxu0 0.0
    %2575 = vmatpush1.msra.mxu0 0.0
    %2576 = vmatprep.subr.mxu0 0.0
    %2577 = vmatpush1.msra.mxu0 0.0
    %2578 = vmatprep.subr.mxu0 0.0
    %2579 = vmatpush1.msra.mxu0 0.0
    %2580 = vmatprep.subr.mxu0 0.0
    %2581 = vmatpush1.msra.mxu0 0.0
    %2582 = vmatprep.subr.mxu0 0.0
    %2583 = vmatpush1.msra.mxu0 0.0
    %2584 = vmatprep.subr.mxu0 0.0
    %2585 = vmatpush1.msra.mxu0 0.0
    %2586 = vmatprep.subr.mxu0 0.0
    %2587 = vmatpush1.msra.mxu0 0.0
    %2588 = vmatprep.subr.mxu0 0.0
    %2589 = vmatpush1.msra.mxu0 0.0
    %2590 = vmatprep.subr.mxu0 0.0
    %2591 = vmatpush1.msra.mxu0 0.0
    %2592 = vmatprep.subr.mxu0 0.0
    %2593 = vmatpush1.msra.mxu0 0.0
    %2594 = vmatprep.subr.mxu0 0.0
    %2595 = vmatpush1.msra.mxu0 0.0
    %2596 = vmatprep.subr.mxu0 0.0
    %2597 = vmatpush1.msra.mxu0 0.0
    %2598 = vmatprep.subr.mxu0 0.0
    %2599 = vmatpush1.msra.mxu0 0.0
    %2600 = vmatprep.subr.mxu0 0.0
    %2601 = vmatpush1.msra.mxu0 0.0
    %2602 = vmatprep.subr.mxu0 0.0
    %2603 = vmatpush1.msra.mxu0 0.0
    %2604 = vmatprep.subr.mxu0 0.0
    %2605 = vmatpush1.msra.mxu0 0.0
    %2606 = vmatprep.subr.mxu0 0.0
    %2607 = vmatpush1.msra.mxu0 0.0
    %2608 = vmatprep.subr.mxu0 0.0
    %2609 = vmatpush1.msra.mxu0 0.0
    %2610 = vmatprep.subr.mxu0 0.0
    %2611 = vmatpush1.msra.mxu0 0.0
    %2612 = vmatprep.subr.mxu0 0.0
    %2613 = vmatpush1.msra.mxu0 0.0
    %2614 = vmatprep.subr.mxu0 0.0
    %2615 = vmatpush1.msra.mxu0 0.0
    %2616 = vmatprep.subr.mxu0 0.0
    %2617 = vmatpush1.msra.mxu0 0.0
    %2618 = vmatprep.subr.mxu0 0.0
    %2619 = vmatpush1.msra.mxu0 0.0
    %2620 = vmatprep.subr.mxu0 0.0
    %2621 = vmatpush1.msra.mxu0 0.0
    %2622 = vmatprep.subr.mxu0 0.0
    %2623 = vmatpush1.msra.mxu0 0.0
    %2624 = vmatprep.subr.mxu0 0.0
    %2625 = vmatpush1.msra.mxu0 0.0
    %2626 = vmatprep.subr.mxu0 0.0
    %2627 = vmatpush1.msra.mxu0 0.0
    %2628 = vmatprep.subr.mxu0 0.0
    %2629 = vmatpush1.msra.mxu0 0.0
    %2630 = vmatprep.subr.mxu0 0.0
    %2631 = vmatpush1.msra.mxu0 0.0
    %2632 = vmatprep.subr.mxu0 0.0
    %2633 = vmatpush1.msra.mxu0 0.0
    %2634 = vmatprep.mubr.f32.mxu0 0.0
    %2635 = vmatmul.mubr.f32.gmra.mrb[0].mxu0 %v2568
    %v2636 = vpop.f32.mrb[0].mxu0
    %v2637 = vadd.f32 0.0, %v2636
    %v2638 = vpop.f32.mrb[0].mxu0
    %2639 = vdwg.mxu0
    %v2640 = vadd.f32 %v2564, %v2637
    %s2641 = scalar_lea.vmem %s11, 51
    %v2642 = vld [vmem:[%s2641] ss:$8 sm:$0x7]
    %v2644 = vlaneseq
    %v2645 = vshrl.u32 %v2644, 7
    %v2646 = vsub.s32 0, %v2645
    %v2647 = vrot.slane %v2642, %v2646
    %v2649 = vadd.f32 %v2640, %v2647
    %v2650 = vld [vmem:[%s2] sm:$0xff]
    %v2651 = vld [vmem:[%s2 + $0x8] sm:$0xff]
    %v2652 = vld [vmem:[%s2 + $0x10] sm:$0xff]
    %v2653 = vld [vmem:[%s2 + $0x18] sm:$0xff]
    %v2654 = vld [vmem:[%s2 + $0x20] sm:$0xff]
    %v2655 = vld [vmem:[%s2 + $0x28] sm:$0xff]
    %v2656 = vld [vmem:[%s2 + $0x30] sm:$0xff]
    %v2657 = vld [vmem:[%s2 + $0x38] sm:$0xff]
    %s2658 = scalar_lea.vmem %s11, 52
    %v2659 = vld [vmem:[%s2658] ss:$8 sm:$0x7]
    %v2661 = vlaneseq
    %v2662 = vshrl.u32 %v2661, 7
    %v2663 = vsub.s32 0, %v2662
    %v2664 = vrot.slane %v2659, %v2663
    %v2667 = vsel %vm856, %v2649, 0
    %2669 = vmatprep.subr.mxu0 0.0
    %2670 = vmatpush1.msra.mxu0 %v2650
    %2671 = vmatprep.subr.mxu0 0.0
    %2672 = vmatpush1.msra.mxu0 %v2651
    %2673 = vmatprep.subr.mxu0 0.0
    %2674 = vmatpush1.msra.mxu0 %v2652
    %2675 = vmatprep.subr.mxu0 0.0
    %2676 = vmatpush1.msra.mxu0 %v2653
    %2677 = vmatprep.subr.mxu0 0.0
    %2678 = vmatpush1.msra.mxu0 %v2654
    %2679 = vmatprep.subr.mxu0 0.0
    %2680 = vmatpush1.msra.mxu0 %v2655
    %2681 = vmatprep.subr.mxu0 0.0
    %2682 = vmatpush1.msra.mxu0 %v2656
    %2683 = vmatprep.subr.mxu0 0.0
    %2684 = vmatpush1.msra.mxu0 %v2657
    %2685 = vmatprep.subr.mxu0 0.0
    %2686 = vmatpush1.msra.mxu0 0.0
    %2687 = vmatprep.subr.mxu0 0.0
    %2688 = vmatpush1.msra.mxu0 0.0
    %2689 = vmatprep.subr.mxu0 0.0
    %2690 = vmatpush1.msra.mxu0 0.0
    %2691 = vmatprep.subr.mxu0 0.0
    %2692 = vmatpush1.msra.mxu0 0.0
    %2693 = vmatprep.subr.mxu0 0.0
    %2694 = vmatpush1.msra.mxu0 0.0
    %2695 = vmatprep.subr.mxu0 0.0
    %2696 = vmatpush1.msra.mxu0 0.0
    %2697 = vmatprep.subr.mxu0 0.0
    %2698 = vmatpush1.msra.mxu0 0.0
    %2699 = vmatprep.subr.mxu0 0.0
    %2700 = vmatpush1.msra.mxu0 0.0
    %2701 = vmatprep.subr.mxu0 0.0
    %2702 = vmatpush1.msra.mxu0 0.0
    %2703 = vmatprep.subr.mxu0 0.0
    %2704 = vmatpush1.msra.mxu0 0.0
    %2705 = vmatprep.subr.mxu0 0.0
    %2706 = vmatpush1.msra.mxu0 0.0
    %2707 = vmatprep.subr.mxu0 0.0
    %2708 = vmatpush1.msra.mxu0 0.0
    %2709 = vmatprep.subr.mxu0 0.0
    %2710 = vmatpush1.msra.mxu0 0.0
    %2711 = vmatprep.subr.mxu0 0.0
    %2712 = vmatpush1.msra.mxu0 0.0
    %2713 = vmatprep.subr.mxu0 0.0
    %2714 = vmatpush1.msra.mxu0 0.0
    %2715 = vmatprep.subr.mxu0 0.0
    %2716 = vmatpush1.msra.mxu0 0.0
    %2717 = vmatprep.subr.mxu0 0.0
    %2718 = vmatpush1.msra.mxu0 0.0
    %2719 = vmatprep.subr.mxu0 0.0
    %2720 = vmatpush1.msra.mxu0 0.0
    %2721 = vmatprep.subr.mxu0 0.0
    %2722 = vmatpush1.msra.mxu0 0.0
    %2723 = vmatprep.subr.mxu0 0.0
    %2724 = vmatpush1.msra.mxu0 0.0
    %2725 = vmatprep.subr.mxu0 0.0
    %2726 = vmatpush1.msra.mxu0 0.0
    %2727 = vmatprep.subr.mxu0 0.0
    %2728 = vmatpush1.msra.mxu0 0.0
    %2729 = vmatprep.subr.mxu0 0.0
    %2730 = vmatpush1.msra.mxu0 0.0
    %2731 = vmatprep.subr.mxu0 0.0
    %2732 = vmatpush1.msra.mxu0 0.0
    %2733 = vmatprep.mubr.f32.mxu0 0.0
    %2734 = vmatmul.mubr.f32.gmra.mrb[0].mxu0 %v2667
    %v2735 = vpop.f32.mrb[0].mxu0
    %v2736 = vadd.f32 %v2664, %v2735
    %v2737 = vpop.f32.mrb[0].mxu0
    %2738 = vdwg.mxu0
    %vm2739 = vcmask 41984
    %2740 = vst.msk [vmem:[#allocation3] sm:$0x3] %vm2739, %v2736
    // Predicated region
    $region54: #{drought_net_forward.1} parent=1 // pred_check
      _
    $region55: #{drought_net_forward.1} parent=1 // pred_check_branch
      %2742 = sbr.rel (0) target = $region57
    $region56: #{drought_net_forward.1} parent=1 // pred_region
      %s2744 = ssub.s32 32, 32
      %2745 = vsyncadd [#allocation4], %s2744
      %s2747 = sshll.u32 [#allocation3], 4
      %s2748 = int_to_ptr.vmem [resolvable:$true] %s2747
      %2750 = dma.vmem_to_hbm [thread:$0]  %s2748, 32, %s13, [#allocation4]
    $region57: #{drought_net_forward.1} parent=1 // pred_fallthru
      _
    // Predicated region
    $region58: #{drought_net_forward.1} parent=1 // pred_check
      _
    $region59: #{drought_net_forward.1} parent=1 // pred_check_branch
      %2752 = sbr.rel (0) target = $region61
    $region60: #{drought_net_forward.1} parent=1 // pred_region
      %2753 = dma.done [#allocation4], 32
    $region61: #{drought_net_forward.1} parent=1 // pred_fallthru
      _
    %2754 = vsyncpa [#allocation4], 1

</llo_original>
